<compile_context>
chip_gen: v5e
topology: v5e:2x2
jax: 0.10.0
libtpu: 0.0.40
codegen_flags: <defaults>
</compile_context>

<pallas_src>
import jax
import jax.numpy as jnp
import numpy as np
from jax.experimental import pallas as pl
from jax.experimental.pallas import tpu as pltpu

# ---------------------------------------------------------------------------
# Geometry (default config: 1x38x50 input, flatten = 16*8*11 = 1408).
# ---------------------------------------------------------------------------
_H, _W = 38, 50
_NC1, _NC2 = 6, 16           # conv1 / conv2 output channels
_HO1, _WO1 = 36, 48          # conv1 valid output
_HP1, _WP1 = 18, 24          # pool1 output
_HO2, _WO2 = 16, 22          # conv2 valid output
_HP2, _WP2 = 8, 11           # pool2 output
_K1 = _NC1 * _WO1 - 1        # 287: lane-sparse pool1 row width (col (c,v) at 48c+2v)
_K2 = _NC2 * _WO2 - 1        # 351: lane-sparse pool2 row width (col (c,u) at 22c+2u)


# ---------------------------------------------------------------------------
# Fused kernel (one image per grid step).
# ---------------------------------------------------------------------------
def _lenet_kernel(x_ref, t1_ref, b1_ref, t2_ref, b2_ref,
                  wfc1_ref, bfc1_ref, wfc2_ref, bfc2_ref, wfc3_ref, bfc3_ref,
                  out_ref, c1_ref, p1_ref, c2_ref):
    f32 = jnp.float32
    bf16 = jnp.bfloat16

    # ---- conv1 + bias + ReLU: 3 banded MXU matmuls over W ------------------
    # c1[i, 48*c + j] = relu(conv1)[c, i, j]
    acc1 = jnp.dot(x_ref[0, 0:_HO1, :].astype(bf16), t1_ref[0],
                   preferred_element_type=f32)
    acc1 = acc1 + jnp.dot(x_ref[0, 1:_HO1 + 1, :].astype(bf16), t1_ref[1],
                          preferred_element_type=f32)
    acc1 = acc1 + jnp.dot(x_ref[0, 2:_HO1 + 2, :].astype(bf16), t1_ref[2],
                          preferred_element_type=f32)
    c1_ref[...] = jnp.maximum(acc1 + b1_ref[...], 0.0)          # (36, 288)

    # ---- pool1 (2x2/2): H via row pairs, W via shifted-lane max ------------
    # p1[r, 48*c + 2*v] = pool1[c, r, v]; the other (finite) lanes are junk
    # that T2's zero weight rows ignore.
    for r in range(_HP1):                                        # 18 rows
        rowmax = jnp.maximum(c1_ref[pl.ds(2 * r, 1), :],
                             c1_ref[pl.ds(2 * r + 1, 1), :])     # (1, 288)
        p1_ref[pl.ds(r, 1), :] = jnp.maximum(rowmax[:, 0:_K1],
                                             rowmax[:, 1:_K1 + 1])

    # ---- conv2 + bias + ReLU: 3 banded MXU matmuls --------------------------
    # c2[r, 22*co + w] = relu(conv2)[co, r, w]   (dense output columns)
    acc2 = jnp.dot(p1_ref[0:_HO2, :].astype(bf16), t2_ref[0],
                   preferred_element_type=f32)
    acc2 = acc2 + jnp.dot(p1_ref[1:_HO2 + 1, :].astype(bf16), t2_ref[1],
                          preferred_element_type=f32)
    acc2 = acc2 + jnp.dot(p1_ref[2:_HO2 + 2, :].astype(bf16), t2_ref[2],
                          preferred_element_type=f32)
    c2_ref[...] = jnp.maximum(acc2 + b2_ref[...], 0.0)           # (16, 352)

    # ---- pool2 + flatten folded into fc1: 8 small MXU dots ------------------
    # pool2 row h is lane-sparse at 22*co + 2*u; torch's NCHW flatten index
    # (co*88 + h*11 + u) is absorbed into the zero-padded rows of wfc1[h].
    acc_fc = bfc1_ref[...]                                       # (1, 128)
    for h in range(_HP2):                                        # 8 rows
        q = jnp.maximum(c2_ref[pl.ds(2 * h, 1), :],
                        c2_ref[pl.ds(2 * h + 1, 1), :])          # (1, 352)
        p2row = jnp.maximum(q[:, 0:_K2], q[:, 1:_K2 + 1])        # (1, 351)
        acc_fc = acc_fc + jnp.dot(p2row.astype(bf16), wfc1_ref[h],
                                  preferred_element_type=f32)
    h1 = jnp.maximum(acc_fc, 0.0)                                # (1, 128)

    # ---- fc2 -> ReLU -> fc3 (bf16 operands, f32 accumulation) ---------------
    h2 = jnp.dot(h1.astype(bf16), wfc2_ref[...], preferred_element_type=f32)
    h2 = jnp.maximum(h2 + bfc2_ref[...], 0.0)                    # (1, 32)
    out_ref[0] = (jnp.dot(h2.astype(bf16), wfc3_ref[...],
                          preferred_element_type=f32) + bfc3_ref[...])


def _fused_forward(x3, pp):
    B = x3.shape[0]
    n_out = pp["wfc3"].shape[1]

    def full(a):
        return pl.BlockSpec(a.shape, lambda b, nd=a.ndim: (0,) * nd)

    grid_spec = pltpu.PrefetchScalarGridSpec(
        num_scalar_prefetch=0,
        grid=(B,),
        in_specs=[
            pl.BlockSpec((1, _H, _W), lambda b: (b, 0, 0)),      # x (per image)
            full(pp["t1"]), full(pp["b1row"]),
            full(pp["t2"]), full(pp["b2row"]),
            full(pp["wfc1"]), full(pp["bfc1"]),
            full(pp["wfc2"]), full(pp["bfc2"]),
            full(pp["wfc3"]), full(pp["bfc3"]),
        ],
        out_specs=pl.BlockSpec((1, 1, n_out), lambda b: (b, 0, 0)),
        scratch_shapes=[
            pltpu.VMEM((_HO1, _NC1 * _WO1), jnp.float32),        # conv1 out (36, 288)
            pltpu.VMEM((_HP1, _K1), jnp.float32),                # pool1    (18, 287)
            pltpu.VMEM((_HO2, _NC2 * _WO2), jnp.float32),        # conv2 out (16, 352)
        ],
    )
    y = pl.pallas_call(
        _lenet_kernel,
        out_shape=jax.ShapeDtypeStruct((B, 1, n_out), jnp.float32),
        grid_spec=grid_spec,
        compiler_params=pltpu.CompilerParams(
            dimension_semantics=("parallel",)),                  # megacore on v7x
    )(x3, pp["t1"], pp["b1row"], pp["t2"], pp["b2row"],
      pp["wfc1"], pp["bfc1"], pp["wfc2"], pp["bfc2"], pp["wfc3"], pp["bfc3"])
    return y[:, 0, :]


# ---------------------------------------------------------------------------
# One-time parameter repack: conv weights -> band (Toeplitz) matrices, fc1 ->
# per-pooled-row weights with the lane-sparse pool2 layout absorbed as zero
# rows.  Plain numpy, outside the per-call forward.
# ---------------------------------------------------------------------------
def prepare_params(p):
    w1 = np.asarray(p["conv1_w"], np.float32)        # (6, 1, 3, 3)
    b1 = np.asarray(p["conv1_b"], np.float32)        # (6,)
    w2 = np.asarray(p["conv2_w"], np.float32)        # (16, 6, 3, 3)
    b2 = np.asarray(p["conv2_b"], np.float32)        # (16,)
    f1w = np.asarray(p["fc1_w"], np.float32)         # (128, 1408)

    # conv1 bands: T1[di, j+dj, 48*c + j] = w1[c, 0, di, dj]
    t1 = np.zeros((3, _W, _NC1 * _WO1), np.float32)              # (3, 50, 288)
    j = np.arange(_WO1)
    for di in range(3):
        for dj in range(3):
            for c in range(_NC1):
                t1[di, j + dj, c * _WO1 + j] = w1[c, 0, di, dj]
    b1row = np.repeat(b1, _WO1)[None, :]                         # (1, 288)

    # conv2 bands on the lane-sparse pool1 layout:
    #   T2[di, 48*ci + 2*(w+dj), 22*co + w] = w2[co, ci, di, dj]
    t2 = np.zeros((3, _K1, _NC2 * _WO2), np.float32)             # (3, 287, 352)
    wp = np.arange(_WO2)
    for di in range(3):
        for dj in range(3):
            for ci in range(_NC1):
                for co in range(_NC2):
                    t2[di, _WO1 * ci + 2 * (wp + dj),
                       _WO2 * co + wp] = w2[co, ci, di, dj]
    b2row = np.repeat(b2, _WO2)[None, :]                         # (1, 352)

    # fc1 per pooled row h on the lane-sparse pool2 layout:
    #   Wfc1[h, 22*co + 2*u, n] = fc1_w[n, co*88 + h*11 + u]
    wfc1 = np.zeros((_HP2, _K2, f1w.shape[0]), np.float32)       # (8, 351, 128)
    u = np.arange(_WP2)
    for h in range(_HP2):
        for co in range(_NC2):
            cols = co * (_HP2 * _WP2) + h * _WP2 + u
            wfc1[h, _WO2 * co + 2 * u, :] = f1w[:, cols].T

    return {
        "t1": jnp.asarray(t1, jnp.bfloat16),
        "b1row": jnp.asarray(b1row, jnp.float32),
        "t2": jnp.asarray(t2, jnp.bfloat16),
        "b2row": jnp.asarray(b2row, jnp.float32),
        "wfc1": jnp.asarray(wfc1, jnp.bfloat16),
        "bfc1": jnp.asarray(np.asarray(p["fc1_b"], np.float32)[None, :]),
        "wfc2": jnp.asarray(np.asarray(p["fc2_w"], np.float32).T, jnp.bfloat16),
        "bfc2": jnp.asarray(np.asarray(p["fc2_b"], np.float32)[None, :]),
        "wfc3": jnp.asarray(np.asarray(p["fc3_w"], np.float32).T, jnp.bfloat16),
        "bfc3": jnp.asarray(np.asarray(p["fc3_b"], np.float32)[None, :]),
    }


# ---------------------------------------------------------------------------
# Forward (host glue = squeeze channel only).
# ---------------------------------------------------------------------------
def lenet_timit_forward(x_nchw, prepped):
    B, Cin, H, W = x_nchw.shape
    if (Cin, H, W) != (1, _H, _W):
        raise ValueError("kernel is specialized to the default 1x38x50 input")
    x3 = x_nchw[:, 0].astype(jnp.float32)             # (B, 38, 50)
    return _fused_forward(x3, prepped)


# ---------------------------------------------------------------------------
# Deterministic PyTorch-default-style init + pure-JAX reference.
# ---------------------------------------------------------------------------
def init_params(key, input_channels=1, output_size=2):
    def unif(k, shape, fan_in):
        bound = 1.0 / np.sqrt(fan_in)
        return jax.random.uniform(k, shape, jnp.float32, -bound, bound)

    ks = jax.random.split(key, 10)
    return {
        "conv1_w": unif(ks[0], (6, input_channels, 3, 3), input_channels * 9),
        "conv1_b": unif(ks[1], (6,), input_channels * 9),
        "conv2_w": unif(ks[2], (16, 6, 3, 3), 6 * 9),
        "conv2_b": unif(ks[3], (16,), 6 * 9),
        "fc1_w": unif(ks[4], (128, 1408), 1408),
        "fc1_b": unif(ks[5], (128,), 1408),
        "fc2_w": unif(ks[6], (32, 128), 128),
        "fc2_b": unif(ks[7], (32,), 128),
        "fc3_w": unif(ks[8], (output_size, 32), 32),
        "fc3_b": unif(ks[9], (output_size,), 32),
    }


def reference_forward(x, p):
    hi = jax.lax.Precision.HIGHEST

    def conv(a, w, b):
        y = jax.lax.conv_general_dilated(
            a, w, window_strides=(1, 1), padding="VALID",
            dimension_numbers=("NCHW", "OIHW", "NCHW"), precision=hi)
        return y + b[None, :, None, None]

    def pool(a):
        return jax.lax.reduce_window(a, -jnp.inf, jax.lax.max,
                                     (1, 1, 2, 2), (1, 1, 2, 2), "VALID")

    a = pool(jax.nn.relu(conv(x, p["conv1_w"], p["conv1_b"])))
    a = pool(jax.nn.relu(conv(a, p["conv2_w"], p["conv2_b"])))
    a = a.reshape(a.shape[0], -1)
    a = jax.nn.relu(jnp.dot(a, p["fc1_w"].T, precision=hi) + p["fc1_b"])
    a = jax.nn.relu(jnp.dot(a, p["fc2_w"].T, precision=hi) + p["fc2_b"])
    return jnp.dot(a, p["fc3_w"].T, precision=hi) + p["fc3_b"]


if __name__ == "__main__":
    key = jax.random.PRNGKey(0)
    k_x, k_p = jax.random.split(key)
    # TIMIT-style spectrogram input (B, C, H, W) = (2, 1, 38, 50):
    #   conv1 -> 36x48, pool -> 18x24, conv2 -> 16x22, pool -> 8x11,
    #   flatten -> 16*8*11 = 1408 (matches fc1's input size).
    x = jax.random.normal(k_x, (2, 1, 38, 50), jnp.float32)
    params = init_params(k_p, input_channels=1, output_size=2)
    prepped = prepare_params(params)          # one-time weight repack

    fwd = jax.jit(lenet_timit_forward)
    out = jax.block_until_ready(fwd(x, prepped))
    assert out.shape == (2, 2)

    ref = reference_forward(x, params)
    np.testing.assert_allclose(np.asarray(out), np.asarray(ref),
                               rtol=1e-2, atol=1e-2)
    print("KERNEL_OK")
</pallas_src>

<mosaic_0001>
module attributes {stable_mosaic.version = 11 : i64} {
  func.func @_lenet_kernel(%arg0: i32, %arg1: memref<1x38x50xf32, #tpu.memory_space<vmem>>, %arg2: memref<3x50x288xbf16, #tpu.memory_space<vmem>>, %arg3: memref<1x288xf32, #tpu.memory_space<vmem>>, %arg4: memref<3x287x352xbf16, #tpu.memory_space<vmem>>, %arg5: memref<1x352xf32, #tpu.memory_space<vmem>>, %arg6: memref<8x351x128xbf16, #tpu.memory_space<vmem>>, %arg7: memref<1x128xf32, #tpu.memory_space<vmem>>, %arg8: memref<128x32xbf16, #tpu.memory_space<vmem>>, %arg9: memref<1x32xf32, #tpu.memory_space<vmem>>, %arg10: memref<32x2xbf16, #tpu.memory_space<vmem>>, %arg11: memref<1x2xf32, #tpu.memory_space<vmem>>, %arg12: memref<1x1x2xf32, #tpu.memory_space<vmem>>, %arg13: memref<36x288xf32, #tpu.memory_space<vmem>>, %arg14: memref<18x287xf32, #tpu.memory_space<vmem>>, %arg15: memref<16x352xf32, #tpu.memory_space<vmem>>) attributes {dimension_semantics = [#tpu.dimension_semantics<parallel>], iteration_bounds = array<i64: 2>, scalar_prefetch = 0 : i64, scratch_operands = 3 : i64, tpu.core_type = #tpu.core_type<tc>, window_params = [{transform_indices = @transform_0, window_bounds = array<i64: 1, 38, 50>}, {pipeline_mode = #tpu.pipeline_mode<synchronous>, transform_indices = @transform_1, window_bounds = array<i64: 3, 50, 288>}, {pipeline_mode = #tpu.pipeline_mode<synchronous>, transform_indices = @transform_2, window_bounds = array<i64: 1, 288>}, {pipeline_mode = #tpu.pipeline_mode<synchronous>, transform_indices = @transform_3, window_bounds = array<i64: 3, 287, 352>}, {pipeline_mode = #tpu.pipeline_mode<synchronous>, transform_indices = @transform_4, window_bounds = array<i64: 1, 352>}, {pipeline_mode = #tpu.pipeline_mode<synchronous>, transform_indices = @transform_5, window_bounds = array<i64: 8, 351, 128>}, {pipeline_mode = #tpu.pipeline_mode<synchronous>, transform_indices = @transform_6, window_bounds = array<i64: 1, 128>}, {pipeline_mode = #tpu.pipeline_mode<synchronous>, transform_indices = @transform_7, window_bounds = array<i64: 128, 32>}, {pipeline_mode = #tpu.pipeline_mode<synchronous>, transform_indices = @transform_8, window_bounds = array<i64: 1, 32>}, {pipeline_mode = #tpu.pipeline_mode<synchronous>, transform_indices = @transform_9, window_bounds = array<i64: 32, 2>}, {pipeline_mode = #tpu.pipeline_mode<synchronous>, transform_indices = @transform_10, window_bounds = array<i64: 1, 2>}, {transform_indices = @transform_11, window_bounds = array<i64: 1, 1, 2>}]} {
    %c0 = arith.constant 0 : index
    %c0_0 = arith.constant 0 : index
    %c0_1 = arith.constant 0 : index
    %0 = vector.load %arg1[%c0, %c0_0, %c0_1] : memref<1x38x50xf32, #tpu.memory_space<vmem>>, vector<1x36x50xf32>
    %1 = vector.shape_cast %0 : vector<1x36x50xf32> to vector<36x50xf32>
    %2 = arith.truncf %1 : vector<36x50xf32> to vector<36x50xbf16>
    %c0_2 = arith.constant 0 : index
    %c0_3 = arith.constant 0 : index
    %c0_4 = arith.constant 0 : index
    %3 = vector.load %arg2[%c0_2, %c0_3, %c0_4] : memref<3x50x288xbf16, #tpu.memory_space<vmem>>, vector<1x50x288xbf16>
    %4 = vector.shape_cast %3 : vector<1x50x288xbf16> to vector<50x288xbf16>
    %cst = arith.constant dense<0.000000e+00> : vector<36x288xf32>
    %5 = tpu.matmul %2, %4, %cst {dimension_numbers = #tpu.dot_dimension_numbers<[1], [0], [0], [1], [0, 0, 1, 1], [], []>} : vector<36x50xbf16>, vector<50x288xbf16>, vector<36x288xf32> -> vector<36x288xf32>
    %c0_5 = arith.constant 0 : index
    %c1 = arith.constant 1 : index
    %c0_6 = arith.constant 0 : index
    %6 = vector.load %arg1[%c0_5, %c1, %c0_6] : memref<1x38x50xf32, #tpu.memory_space<vmem>>, vector<1x36x50xf32>
    %7 = vector.shape_cast %6 : vector<1x36x50xf32> to vector<36x50xf32>
    %8 = arith.truncf %7 : vector<36x50xf32> to vector<36x50xbf16>
    %c1_7 = arith.constant 1 : index
    %c0_8 = arith.constant 0 : index
    %c0_9 = arith.constant 0 : index
    %9 = vector.load %arg2[%c1_7, %c0_8, %c0_9] : memref<3x50x288xbf16, #tpu.memory_space<vmem>>, vector<1x50x288xbf16>
    %10 = vector.shape_cast %9 : vector<1x50x288xbf16> to vector<50x288xbf16>
    %cst_10 = arith.constant dense<0.000000e+00> : vector<36x288xf32>
    %11 = tpu.matmul %8, %10, %cst_10 {dimension_numbers = #tpu.dot_dimension_numbers<[1], [0], [0], [1], [0, 0, 1, 1], [], []>} : vector<36x50xbf16>, vector<50x288xbf16>, vector<36x288xf32> -> vector<36x288xf32>
    %12 = arith.addf %5, %11 : vector<36x288xf32>
    %c0_11 = arith.constant 0 : index
    %c2 = arith.constant 2 : index
    %c0_12 = arith.constant 0 : index
    %13 = vector.load %arg1[%c0_11, %c2, %c0_12] : memref<1x38x50xf32, #tpu.memory_space<vmem>>, vector<1x36x50xf32>
    %14 = vector.shape_cast %13 : vector<1x36x50xf32> to vector<36x50xf32>
    %15 = arith.truncf %14 : vector<36x50xf32> to vector<36x50xbf16>
    %c2_13 = arith.constant 2 : index
    %c0_14 = arith.constant 0 : index
    %c0_15 = arith.constant 0 : index
    %16 = vector.load %arg2[%c2_13, %c0_14, %c0_15] : memref<3x50x288xbf16, #tpu.memory_space<vmem>>, vector<1x50x288xbf16>
    %17 = vector.shape_cast %16 : vector<1x50x288xbf16> to vector<50x288xbf16>
    %cst_16 = arith.constant dense<0.000000e+00> : vector<36x288xf32>
    %18 = tpu.matmul %15, %17, %cst_16 {dimension_numbers = #tpu.dot_dimension_numbers<[1], [0], [0], [1], [0, 0, 1, 1], [], []>} : vector<36x50xbf16>, vector<50x288xbf16>, vector<36x288xf32> -> vector<36x288xf32>
    %19 = arith.addf %12, %18 : vector<36x288xf32>
    %c0_17 = arith.constant 0 : index
    %c0_18 = arith.constant 0 : index
    %20 = vector.load %arg3[%c0_17, %c0_18] : memref<1x288xf32, #tpu.memory_space<vmem>>, vector<1x288xf32>
    %21 = vector.broadcast %20 : vector<1x288xf32> to vector<36x288xf32>
    %22 = arith.addf %19, %21 : vector<36x288xf32>
    %cst_19 = arith.constant 0.000000e+00 : f32
    %23 = vector.broadcast %cst_19 : f32 to vector<36x288xf32>
    %24 = arith.maximumf %22, %23 : vector<36x288xf32>
    %c0_20 = arith.constant 0 : index
    %c0_21 = arith.constant 0 : index
    %25 = vector.load %arg13[%c0_20, %c0_21] : memref<36x288xf32, #tpu.memory_space<vmem>>, vector<36x288xf32>
    tpu.vector_store %arg13[%c0_20, %c0_21], %24 {strides = array<i32>} : memref<36x288xf32, #tpu.memory_space<vmem>>, vector<36x288xf32>,
    %c0_22 = arith.constant 0 : index
    %c0_23 = arith.constant 0 : index
    %26 = vector.load %arg13[%c0_22, %c0_23] : memref<36x288xf32, #tpu.memory_space<vmem>>, vector<1x288xf32>
    %c1_24 = arith.constant 1 : index
    %c0_25 = arith.constant 0 : index
    %27 = vector.load %arg13[%c1_24, %c0_25] : memref<36x288xf32, #tpu.memory_space<vmem>>, vector<1x288xf32>
    %28 = arith.maximumf %26, %27 : vector<1x288xf32>
    %29 = vector.extract_strided_slice %28 {offsets = [0, 0], sizes = [1, 287], strides = [1, 1]} : vector<1x288xf32> to vector<1x287xf32>
    %30 = vector.extract_strided_slice %28 {offsets = [0, 1], sizes = [1, 287], strides = [1, 1]} : vector<1x288xf32> to vector<1x287xf32>
    %31 = arith.maximumf %29, %30 : vector<1x287xf32>
    %c0_26 = arith.constant 0 : index
    %c0_27 = arith.constant 0 : index
    %32 = vector.load %arg14[%c0_26, %c0_27] : memref<18x287xf32, #tpu.memory_space<vmem>>, vector<1x287xf32>
    tpu.vector_store %arg14[%c0_26, %c0_27], %31 {strides = array<i32>} : memref<18x287xf32, #tpu.memory_space<vmem>>, vector<1x287xf32>,
    %c2_28 = arith.constant 2 : index
    %c0_29 = arith.constant 0 : index
    %33 = vector.load %arg13[%c2_28, %c0_29] : memref<36x288xf32, #tpu.memory_space<vmem>>, vector<1x288xf32>
    %c3 = arith.constant 3 : index
    %c0_30 = arith.constant 0 : index
    %34 = vector.load %arg13[%c3, %c0_30] : memref<36x288xf32, #tpu.memory_space<vmem>>, vector<1x288xf32>
    %35 = arith.maximumf %33, %34 : vector<1x288xf32>
    %36 = vector.extract_strided_slice %35 {offsets = [0, 0], sizes = [1, 287], strides = [1, 1]} : vector<1x288xf32> to vector<1x287xf32>
    %37 = vector.extract_strided_slice %35 {offsets = [0, 1], sizes = [1, 287], strides = [1, 1]} : vector<1x288xf32> to vector<1x287xf32>
    %38 = arith.maximumf %36, %37 : vector<1x287xf32>
    %c1_31 = arith.constant 1 : index
    %c0_32 = arith.constant 0 : index
    %39 = vector.load %arg14[%c1_31, %c0_32] : memref<18x287xf32, #tpu.memory_space<vmem>>, vector<1x287xf32>
    tpu.vector_store %arg14[%c1_31, %c0_32], %38 {strides = array<i32>} : memref<18x287xf32, #tpu.memory_space<vmem>>, vector<1x287xf32>,
    %c4 = arith.constant 4 : index
    %c0_33 = arith.constant 0 : index
    %40 = vector.load %arg13[%c4, %c0_33] : memref<36x288xf32, #tpu.memory_space<vmem>>, vector<1x288xf32>
    %c5 = arith.constant 5 : index
    %c0_34 = arith.constant 0 : index
    %41 = vector.load %arg13[%c5, %c0_34] : memref<36x288xf32, #tpu.memory_space<vmem>>, vector<1x288xf32>
    %42 = arith.maximumf %40, %41 : vector<1x288xf32>
    %43 = vector.extract_strided_slice %42 {offsets = [0, 0], sizes = [1, 287], strides = [1, 1]} : vector<1x288xf32> to vector<1x287xf32>
    %44 = vector.extract_strided_slice %42 {offsets = [0, 1], sizes = [1, 287], strides = [1, 1]} : vector<1x288xf32> to vector<1x287xf32>
    %45 = arith.maximumf %43, %44 : vector<1x287xf32>
    %c2_35 = arith.constant 2 : index
    %c0_36 = arith.constant 0 : index
    %46 = vector.load %arg14[%c2_35, %c0_36] : memref<18x287xf32, #tpu.memory_space<vmem>>, vector<1x287xf32>
    tpu.vector_store %arg14[%c2_35, %c0_36], %45 {strides = array<i32>} : memref<18x287xf32, #tpu.memory_space<vmem>>, vector<1x287xf32>,
    %c6 = arith.constant 6 : index
    %c0_37 = arith.constant 0 : index
    %47 = vector.load %arg13[%c6, %c0_37] : memref<36x288xf32, #tpu.memory_space<vmem>>, vector<1x288xf32>
    %c7 = arith.constant 7 : index
    %c0_38 = arith.constant 0 : index
    %48 = vector.load %arg13[%c7, %c0_38] : memref<36x288xf32, #tpu.memory_space<vmem>>, vector<1x288xf32>
    %49 = arith.maximumf %47, %48 : vector<1x288xf32>
    %50 = vector.extract_strided_slice %49 {offsets = [0, 0], sizes = [1, 287], strides = [1, 1]} : vector<1x288xf32> to vector<1x287xf32>
    %51 = vector.extract_strided_slice %49 {offsets = [0, 1], sizes = [1, 287], strides = [1, 1]} : vector<1x288xf32> to vector<1x287xf32>
    %52 = arith.maximumf %50, %51 : vector<1x287xf32>
    %c3_39 = arith.constant 3 : index
    %c0_40 = arith.constant 0 : index
    %53 = vector.load %arg14[%c3_39, %c0_40] : memref<18x287xf32, #tpu.memory_space<vmem>>, vector<1x287xf32>
    tpu.vector_store %arg14[%c3_39, %c0_40], %52 {strides = array<i32>} : memref<18x287xf32, #tpu.memory_space<vmem>>, vector<1x287xf32>,
    %c8 = arith.constant 8 : index
    %c0_41 = arith.constant 0 : index
    %54 = vector.load %arg13[%c8, %c0_41] : memref<36x288xf32, #tpu.memory_space<vmem>>, vector<1x288xf32>
    %c9 = arith.constant 9 : index
    %c0_42 = arith.constant 0 : index
    %55 = vector.load %arg13[%c9, %c0_42] : memref<36x288xf32, #tpu.memory_space<vmem>>, vector<1x288xf32>
    %56 = arith.maximumf %54, %55 : vector<1x288xf32>
    %57 = vector.extract_strided_slice %56 {offsets = [0, 0], sizes = [1, 287], strides = [1, 1]} : vector<1x288xf32> to vector<1x287xf32>
    %58 = vector.extract_strided_slice %56 {offsets = [0, 1], sizes = [1, 287], strides = [1, 1]} : vector<1x288xf32> to vector<1x287xf32>
    %59 = arith.maximumf %57, %58 : vector<1x287xf32>
    %c4_43 = arith.constant 4 : index
    %c0_44 = arith.constant 0 : index
    %60 = vector.load %arg14[%c4_43, %c0_44] : memref<18x287xf32, #tpu.memory_space<vmem>>, vector<1x287xf32>
    tpu.vector_store %arg14[%c4_43, %c0_44], %59 {strides = array<i32>} : memref<18x287xf32, #tpu.memory_space<vmem>>, vector<1x287xf32>,
    %c10 = arith.constant 10 : index
    %c0_45 = arith.constant 0 : index
    %61 = vector.load %arg13[%c10, %c0_45] : memref<36x288xf32, #tpu.memory_space<vmem>>, vector<1x288xf32>
    %c11 = arith.constant 11 : index
    %c0_46 = arith.constant 0 : index
    %62 = vector.load %arg13[%c11, %c0_46] : memref<36x288xf32, #tpu.memory_space<vmem>>, vector<1x288xf32>
    %63 = arith.maximumf %61, %62 : vector<1x288xf32>
    %64 = vector.extract_strided_slice %63 {offsets = [0, 0], sizes = [1, 287], strides = [1, 1]} : vector<1x288xf32> to vector<1x287xf32>
    %65 = vector.extract_strided_slice %63 {offsets = [0, 1], sizes = [1, 287], strides = [1, 1]} : vector<1x288xf32> to vector<1x287xf32>
    %66 = arith.maximumf %64, %65 : vector<1x287xf32>
    %c5_47 = arith.constant 5 : index
    %c0_48 = arith.constant 0 : index
    %67 = vector.load %arg14[%c5_47, %c0_48] : memref<18x287xf32, #tpu.memory_space<vmem>>, vector<1x287xf32>
    tpu.vector_store %arg14[%c5_47, %c0_48], %66 {strides = array<i32>} : memref<18x287xf32, #tpu.memory_space<vmem>>, vector<1x287xf32>,
    %c12 = arith.constant 12 : index
    %c0_49 = arith.constant 0 : index
    %68 = vector.load %arg13[%c12, %c0_49] : memref<36x288xf32, #tpu.memory_space<vmem>>, vector<1x288xf32>
    %c13 = arith.constant 13 : index
    %c0_50 = arith.constant 0 : index
    %69 = vector.load %arg13[%c13, %c0_50] : memref<36x288xf32, #tpu.memory_space<vmem>>, vector<1x288xf32>
    %70 = arith.maximumf %68, %69 : vector<1x288xf32>
    %71 = vector.extract_strided_slice %70 {offsets = [0, 0], sizes = [1, 287], strides = [1, 1]} : vector<1x288xf32> to vector<1x287xf32>
    %72 = vector.extract_strided_slice %70 {offsets = [0, 1], sizes = [1, 287], strides = [1, 1]} : vector<1x288xf32> to vector<1x287xf32>
    %73 = arith.maximumf %71, %72 : vector<1x287xf32>
    %c6_51 = arith.constant 6 : index
    %c0_52 = arith.constant 0 : index
    %74 = vector.load %arg14[%c6_51, %c0_52] : memref<18x287xf32, #tpu.memory_space<vmem>>, vector<1x287xf32>
    tpu.vector_store %arg14[%c6_51, %c0_52], %73 {strides = array<i32>} : memref<18x287xf32, #tpu.memory_space<vmem>>, vector<1x287xf32>,
    %c14 = arith.constant 14 : index
    %c0_53 = arith.constant 0 : index
    %75 = vector.load %arg13[%c14, %c0_53] : memref<36x288xf32, #tpu.memory_space<vmem>>, vector<1x288xf32>
    %c15 = arith.constant 15 : index
    %c0_54 = arith.constant 0 : index
    %76 = vector.load %arg13[%c15, %c0_54] : memref<36x288xf32, #tpu.memory_space<vmem>>, vector<1x288xf32>
    %77 = arith.maximumf %75, %76 : vector<1x288xf32>
    %78 = vector.extract_strided_slice %77 {offsets = [0, 0], sizes = [1, 287], strides = [1, 1]} : vector<1x288xf32> to vector<1x287xf32>
    %79 = vector.extract_strided_slice %77 {offsets = [0, 1], sizes = [1, 287], strides = [1, 1]} : vector<1x288xf32> to vector<1x287xf32>
    %80 = arith.maximumf %78, %79 : vector<1x287xf32>
    %c7_55 = arith.constant 7 : index
    %c0_56 = arith.constant 0 : index
    %81 = vector.load %arg14[%c7_55, %c0_56] : memref<18x287xf32, #tpu.memory_space<vmem>>, vector<1x287xf32>
    tpu.vector_store %arg14[%c7_55, %c0_56], %80 {strides = array<i32>} : memref<18x287xf32, #tpu.memory_space<vmem>>, vector<1x287xf32>,
    %c16 = arith.constant 16 : index
    %c0_57 = arith.constant 0 : index
    %82 = vector.load %arg13[%c16, %c0_57] : memref<36x288xf32, #tpu.memory_space<vmem>>, vector<1x288xf32>
    %c17 = arith.constant 17 : index
    %c0_58 = arith.constant 0 : index
    %83 = vector.load %arg13[%c17, %c0_58] : memref<36x288xf32, #tpu.memory_space<vmem>>, vector<1x288xf32>
    %84 = arith.maximumf %82, %83 : vector<1x288xf32>
    %85 = vector.extract_strided_slice %84 {offsets = [0, 0], sizes = [1, 287], strides = [1, 1]} : vector<1x288xf32> to vector<1x287xf32>
    %86 = vector.extract_strided_slice %84 {offsets = [0, 1], sizes = [1, 287], strides = [1, 1]} : vector<1x288xf32> to vector<1x287xf32>
    %87 = arith.maximumf %85, %86 : vector<1x287xf32>
    %c8_59 = arith.constant 8 : index
    %c0_60 = arith.constant 0 : index
    %88 = vector.load %arg14[%c8_59, %c0_60] : memref<18x287xf32, #tpu.memory_space<vmem>>, vector<1x287xf32>
    tpu.vector_store %arg14[%c8_59, %c0_60], %87 {strides = array<i32>} : memref<18x287xf32, #tpu.memory_space<vmem>>, vector<1x287xf32>,
    %c18 = arith.constant 18 : index
    %c0_61 = arith.constant 0 : index
    %89 = vector.load %arg13[%c18, %c0_61] : memref<36x288xf32, #tpu.memory_space<vmem>>, vector<1x288xf32>
    %c19 = arith.constant 19 : index
    %c0_62 = arith.constant 0 : index
    %90 = vector.load %arg13[%c19, %c0_62] : memref<36x288xf32, #tpu.memory_space<vmem>>, vector<1x288xf32>
    %91 = arith.maximumf %89, %90 : vector<1x288xf32>
    %92 = vector.extract_strided_slice %91 {offsets = [0, 0], sizes = [1, 287], strides = [1, 1]} : vector<1x288xf32> to vector<1x287xf32>
    %93 = vector.extract_strided_slice %91 {offsets = [0, 1], sizes = [1, 287], strides = [1, 1]} : vector<1x288xf32> to vector<1x287xf32>
    %94 = arith.maximumf %92, %93 : vector<1x287xf32>
    %c9_63 = arith.constant 9 : index
    %c0_64 = arith.constant 0 : index
    %95 = vector.load %arg14[%c9_63, %c0_64] : memref<18x287xf32, #tpu.memory_space<vmem>>, vector<1x287xf32>
    tpu.vector_store %arg14[%c9_63, %c0_64], %94 {strides = array<i32>} : memref<18x287xf32, #tpu.memory_space<vmem>>, vector<1x287xf32>,
    %c20 = arith.constant 20 : index
    %c0_65 = arith.constant 0 : index
    %96 = vector.load %arg13[%c20, %c0_65] : memref<36x288xf32, #tpu.memory_space<vmem>>, vector<1x288xf32>
    %c21 = arith.constant 21 : index
    %c0_66 = arith.constant 0 : index
    %97 = vector.load %arg13[%c21, %c0_66] : memref<36x288xf32, #tpu.memory_space<vmem>>, vector<1x288xf32>
    %98 = arith.maximumf %96, %97 : vector<1x288xf32>
    %99 = vector.extract_strided_slice %98 {offsets = [0, 0], sizes = [1, 287], strides = [1, 1]} : vector<1x288xf32> to vector<1x287xf32>
    %100 = vector.extract_strided_slice %98 {offsets = [0, 1], sizes = [1, 287], strides = [1, 1]} : vector<1x288xf32> to vector<1x287xf32>
    %101 = arith.maximumf %99, %100 : vector<1x287xf32>
    %c10_67 = arith.constant 10 : index
    %c0_68 = arith.constant 0 : index
    %102 = vector.load %arg14[%c10_67, %c0_68] : memref<18x287xf32, #tpu.memory_space<vmem>>, vector<1x287xf32>
    tpu.vector_store %arg14[%c10_67, %c0_68], %101 {strides = array<i32>} : memref<18x287xf32, #tpu.memory_space<vmem>>, vector<1x287xf32>,
    %c22 = arith.constant 22 : index
    %c0_69 = arith.constant 0 : index
    %103 = vector.load %arg13[%c22, %c0_69] : memref<36x288xf32, #tpu.memory_space<vmem>>, vector<1x288xf32>
    %c23 = arith.constant 23 : index
    %c0_70 = arith.constant 0 : index
    %104 = vector.load %arg13[%c23, %c0_70] : memref<36x288xf32, #tpu.memory_space<vmem>>, vector<1x288xf32>
    %105 = arith.maximumf %103, %104 : vector<1x288xf32>
    %106 = vector.extract_strided_slice %105 {offsets = [0, 0], sizes = [1, 287], strides = [1, 1]} : vector<1x288xf32> to vector<1x287xf32>
    %107 = vector.extract_strided_slice %105 {offsets = [0, 1], sizes = [1, 287], strides = [1, 1]} : vector<1x288xf32> to vector<1x287xf32>
    %108 = arith.maximumf %106, %107 : vector<1x287xf32>
    %c11_71 = arith.constant 11 : index
    %c0_72 = arith.constant 0 : index
    %109 = vector.load %arg14[%c11_71, %c0_72] : memref<18x287xf32, #tpu.memory_space<vmem>>, vector<1x287xf32>
    tpu.vector_store %arg14[%c11_71, %c0_72], %108 {strides = array<i32>} : memref<18x287xf32, #tpu.memory_space<vmem>>, vector<1x287xf32>,
    %c24 = arith.constant 24 : index
    %c0_73 = arith.constant 0 : index
    %110 = vector.load %arg13[%c24, %c0_73] : memref<36x288xf32, #tpu.memory_space<vmem>>, vector<1x288xf32>
    %c25 = arith.constant 25 : index
    %c0_74 = arith.constant 0 : index
    %111 = vector.load %arg13[%c25, %c0_74] : memref<36x288xf32, #tpu.memory_space<vmem>>, vector<1x288xf32>
    %112 = arith.maximumf %110, %111 : vector<1x288xf32>
    %113 = vector.extract_strided_slice %112 {offsets = [0, 0], sizes = [1, 287], strides = [1, 1]} : vector<1x288xf32> to vector<1x287xf32>
    %114 = vector.extract_strided_slice %112 {offsets = [0, 1], sizes = [1, 287], strides = [1, 1]} : vector<1x288xf32> to vector<1x287xf32>
    %115 = arith.maximumf %113, %114 : vector<1x287xf32>
    %c12_75 = arith.constant 12 : index
    %c0_76 = arith.constant 0 : index
    %116 = vector.load %arg14[%c12_75, %c0_76] : memref<18x287xf32, #tpu.memory_space<vmem>>, vector<1x287xf32>
    tpu.vector_store %arg14[%c12_75, %c0_76], %115 {strides = array<i32>} : memref<18x287xf32, #tpu.memory_space<vmem>>, vector<1x287xf32>,
    %c26 = arith.constant 26 : index
    %c0_77 = arith.constant 0 : index
    %117 = vector.load %arg13[%c26, %c0_77] : memref<36x288xf32, #tpu.memory_space<vmem>>, vector<1x288xf32>
    %c27 = arith.constant 27 : index
    %c0_78 = arith.constant 0 : index
    %118 = vector.load %arg13[%c27, %c0_78] : memref<36x288xf32, #tpu.memory_space<vmem>>, vector<1x288xf32>
    %119 = arith.maximumf %117, %118 : vector<1x288xf32>
    %120 = vector.extract_strided_slice %119 {offsets = [0, 0], sizes = [1, 287], strides = [1, 1]} : vector<1x288xf32> to vector<1x287xf32>
    %121 = vector.extract_strided_slice %119 {offsets = [0, 1], sizes = [1, 287], strides = [1, 1]} : vector<1x288xf32> to vector<1x287xf32>
    %122 = arith.maximumf %120, %121 : vector<1x287xf32>
    %c13_79 = arith.constant 13 : index
    %c0_80 = arith.constant 0 : index
    %123 = vector.load %arg14[%c13_79, %c0_80] : memref<18x287xf32, #tpu.memory_space<vmem>>, vector<1x287xf32>
    tpu.vector_store %arg14[%c13_79, %c0_80], %122 {strides = array<i32>} : memref<18x287xf32, #tpu.memory_space<vmem>>, vector<1x287xf32>,
    %c28 = arith.constant 28 : index
    %c0_81 = arith.constant 0 : index
    %124 = vector.load %arg13[%c28, %c0_81] : memref<36x288xf32, #tpu.memory_space<vmem>>, vector<1x288xf32>
    %c29 = arith.constant 29 : index
    %c0_82 = arith.constant 0 : index
    %125 = vector.load %arg13[%c29, %c0_82] : memref<36x288xf32, #tpu.memory_space<vmem>>, vector<1x288xf32>
    %126 = arith.maximumf %124, %125 : vector<1x288xf32>
    %127 = vector.extract_strided_slice %126 {offsets = [0, 0], sizes = [1, 287], strides = [1, 1]} : vector<1x288xf32> to vector<1x287xf32>
    %128 = vector.extract_strided_slice %126 {offsets = [0, 1], sizes = [1, 287], strides = [1, 1]} : vector<1x288xf32> to vector<1x287xf32>
    %129 = arith.maximumf %127, %128 : vector<1x287xf32>
    %c14_83 = arith.constant 14 : index
    %c0_84 = arith.constant 0 : index
    %130 = vector.load %arg14[%c14_83, %c0_84] : memref<18x287xf32, #tpu.memory_space<vmem>>, vector<1x287xf32>
    tpu.vector_store %arg14[%c14_83, %c0_84], %129 {strides = array<i32>} : memref<18x287xf32, #tpu.memory_space<vmem>>, vector<1x287xf32>,
    %c30 = arith.constant 30 : index
    %c0_85 = arith.constant 0 : index
    %131 = vector.load %arg13[%c30, %c0_85] : memref<36x288xf32, #tpu.memory_space<vmem>>, vector<1x288xf32>
    %c31 = arith.constant 31 : index
    %c0_86 = arith.constant 0 : index
    %132 = vector.load %arg13[%c31, %c0_86] : memref<36x288xf32, #tpu.memory_space<vmem>>, vector<1x288xf32>
    %133 = arith.maximumf %131, %132 : vector<1x288xf32>
    %134 = vector.extract_strided_slice %133 {offsets = [0, 0], sizes = [1, 287], strides = [1, 1]} : vector<1x288xf32> to vector<1x287xf32>
    %135 = vector.extract_strided_slice %133 {offsets = [0, 1], sizes = [1, 287], strides = [1, 1]} : vector<1x288xf32> to vector<1x287xf32>
    %136 = arith.maximumf %134, %135 : vector<1x287xf32>
    %c15_87 = arith.constant 15 : index
    %c0_88 = arith.constant 0 : index
    %137 = vector.load %arg14[%c15_87, %c0_88] : memref<18x287xf32, #tpu.memory_space<vmem>>, vector<1x287xf32>
    tpu.vector_store %arg14[%c15_87, %c0_88], %136 {strides = array<i32>} : memref<18x287xf32, #tpu.memory_space<vmem>>, vector<1x287xf32>,
    %c32 = arith.constant 32 : index
    %c0_89 = arith.constant 0 : index
    %138 = vector.load %arg13[%c32, %c0_89] : memref<36x288xf32, #tpu.memory_space<vmem>>, vector<1x288xf32>
    %c33 = arith.constant 33 : index
    %c0_90 = arith.constant 0 : index
    %139 = vector.load %arg13[%c33, %c0_90] : memref<36x288xf32, #tpu.memory_space<vmem>>, vector<1x288xf32>
    %140 = arith.maximumf %138, %139 : vector<1x288xf32>
    %141 = vector.extract_strided_slice %140 {offsets = [0, 0], sizes = [1, 287], strides = [1, 1]} : vector<1x288xf32> to vector<1x287xf32>
    %142 = vector.extract_strided_slice %140 {offsets = [0, 1], sizes = [1, 287], strides = [1, 1]} : vector<1x288xf32> to vector<1x287xf32>
    %143 = arith.maximumf %141, %142 : vector<1x287xf32>
    %c16_91 = arith.constant 16 : index
    %c0_92 = arith.constant 0 : index
    %144 = vector.load %arg14[%c16_91, %c0_92] : memref<18x287xf32, #tpu.memory_space<vmem>>, vector<1x287xf32>
    tpu.vector_store %arg14[%c16_91, %c0_92], %143 {strides = array<i32>} : memref<18x287xf32, #tpu.memory_space<vmem>>, vector<1x287xf32>,
    %c34 = arith.constant 34 : index
    %c0_93 = arith.constant 0 : index
    %145 = vector.load %arg13[%c34, %c0_93] : memref<36x288xf32, #tpu.memory_space<vmem>>, vector<1x288xf32>
    %c35 = arith.constant 35 : index
    %c0_94 = arith.constant 0 : index
    %146 = vector.load %arg13[%c35, %c0_94] : memref<36x288xf32, #tpu.memory_space<vmem>>, vector<1x288xf32>
    %147 = arith.maximumf %145, %146 : vector<1x288xf32>
    %148 = vector.extract_strided_slice %147 {offsets = [0, 0], sizes = [1, 287], strides = [1, 1]} : vector<1x288xf32> to vector<1x287xf32>
    %149 = vector.extract_strided_slice %147 {offsets = [0, 1], sizes = [1, 287], strides = [1, 1]} : vector<1x288xf32> to vector<1x287xf32>
    %150 = arith.maximumf %148, %149 : vector<1x287xf32>
    %c17_95 = arith.constant 17 : index
    %c0_96 = arith.constant 0 : index
    %151 = vector.load %arg14[%c17_95, %c0_96] : memref<18x287xf32, #tpu.memory_space<vmem>>, vector<1x287xf32>
    tpu.vector_store %arg14[%c17_95, %c0_96], %150 {strides = array<i32>} : memref<18x287xf32, #tpu.memory_space<vmem>>, vector<1x287xf32>,
    %c0_97 = arith.constant 0 : index
    %c0_98 = arith.constant 0 : index
    %152 = vector.load %arg14[%c0_97, %c0_98] : memref<18x287xf32, #tpu.memory_space<vmem>>, vector<16x287xf32>
    %153 = arith.truncf %152 : vector<16x287xf32> to vector<16x287xbf16>
    %c0_99 = arith.constant 0 : index
    %c0_100 = arith.constant 0 : index
    %c0_101 = arith.constant 0 : index
    %154 = vector.load %arg4[%c0_99, %c0_100, %c0_101] : memref<3x287x352xbf16, #tpu.memory_space<vmem>>, vector<1x287x352xbf16>
    %155 = vector.shape_cast %154 : vector<1x287x352xbf16> to vector<287x352xbf16>
    %cst_102 = arith.constant dense<0.000000e+00> : vector<16x352xf32>
    %156 = tpu.matmul %153, %155, %cst_102 {dimension_numbers = #tpu.dot_dimension_numbers<[1], [0], [0], [1], [0, 0, 1, 1], [], []>} : vector<16x287xbf16>, vector<287x352xbf16>, vector<16x352xf32> -> vector<16x352xf32>
    %c1_103 = arith.constant 1 : index
    %c0_104 = arith.constant 0 : index
    %157 = vector.load %arg14[%c1_103, %c0_104] : memref<18x287xf32, #tpu.memory_space<vmem>>, vector<16x287xf32>
    %158 = arith.truncf %157 : vector<16x287xf32> to vector<16x287xbf16>
    %c1_105 = arith.constant 1 : index
    %c0_106 = arith.constant 0 : index
    %c0_107 = arith.constant 0 : index
    %159 = vector.load %arg4[%c1_105, %c0_106, %c0_107] : memref<3x287x352xbf16, #tpu.memory_space<vmem>>, vector<1x287x352xbf16>
    %160 = vector.shape_cast %159 : vector<1x287x352xbf16> to vector<287x352xbf16>
    %cst_108 = arith.constant dense<0.000000e+00> : vector<16x352xf32>
    %161 = tpu.matmul %158, %160, %cst_108 {dimension_numbers = #tpu.dot_dimension_numbers<[1], [0], [0], [1], [0, 0, 1, 1], [], []>} : vector<16x287xbf16>, vector<287x352xbf16>, vector<16x352xf32> -> vector<16x352xf32>
    %162 = arith.addf %156, %161 : vector<16x352xf32>
    %c2_109 = arith.constant 2 : index
    %c0_110 = arith.constant 0 : index
    %163 = vector.load %arg14[%c2_109, %c0_110] : memref<18x287xf32, #tpu.memory_space<vmem>>, vector<16x287xf32>
    %164 = arith.truncf %163 : vector<16x287xf32> to vector<16x287xbf16>
    %c2_111 = arith.constant 2 : index
    %c0_112 = arith.constant 0 : index
    %c0_113 = arith.constant 0 : index
    %165 = vector.load %arg4[%c2_111, %c0_112, %c0_113] : memref<3x287x352xbf16, #tpu.memory_space<vmem>>, vector<1x287x352xbf16>
    %166 = vector.shape_cast %165 : vector<1x287x352xbf16> to vector<287x352xbf16>
    %cst_114 = arith.constant dense<0.000000e+00> : vector<16x352xf32>
    %167 = tpu.matmul %164, %166, %cst_114 {dimension_numbers = #tpu.dot_dimension_numbers<[1], [0], [0], [1], [0, 0, 1, 1], [], []>} : vector<16x287xbf16>, vector<287x352xbf16>, vector<16x352xf32> -> vector<16x352xf32>
    %168 = arith.addf %162, %167 : vector<16x352xf32>
    %c0_115 = arith.constant 0 : index
    %c0_116 = arith.constant 0 : index
    %169 = vector.load %arg5[%c0_115, %c0_116] : memref<1x352xf32, #tpu.memory_space<vmem>>, vector<1x352xf32>
    %170 = vector.broadcast %169 : vector<1x352xf32> to vector<16x352xf32>
    %171 = arith.addf %168, %170 : vector<16x352xf32>
    %cst_117 = arith.constant 0.000000e+00 : f32
    %172 = vector.broadcast %cst_117 : f32 to vector<16x352xf32>
    %173 = arith.maximumf %171, %172 : vector<16x352xf32>
    %c0_118 = arith.constant 0 : index
    %c0_119 = arith.constant 0 : index
    %174 = vector.load %arg15[%c0_118, %c0_119] : memref<16x352xf32, #tpu.memory_space<vmem>>, vector<16x352xf32>
    tpu.vector_store %arg15[%c0_118, %c0_119], %173 {strides = array<i32>} : memref<16x352xf32, #tpu.memory_space<vmem>>, vector<16x352xf32>,
    %c0_120 = arith.constant 0 : index
    %c0_121 = arith.constant 0 : index
    %175 = vector.load %arg7[%c0_120, %c0_121] : memref<1x128xf32, #tpu.memory_space<vmem>>, vector<1x128xf32>
    %c0_122 = arith.constant 0 : index
    %c0_123 = arith.constant 0 : index
    %176 = vector.load %arg15[%c0_122, %c0_123] : memref<16x352xf32, #tpu.memory_space<vmem>>, vector<1x352xf32>
    %c1_124 = arith.constant 1 : index
    %c0_125 = arith.constant 0 : index
    %177 = vector.load %arg15[%c1_124, %c0_125] : memref<16x352xf32, #tpu.memory_space<vmem>>, vector<1x352xf32>
    %178 = arith.maximumf %176, %177 : vector<1x352xf32>
    %179 = vector.extract_strided_slice %178 {offsets = [0, 0], sizes = [1, 351], strides = [1, 1]} : vector<1x352xf32> to vector<1x351xf32>
    %180 = vector.extract_strided_slice %178 {offsets = [0, 1], sizes = [1, 351], strides = [1, 1]} : vector<1x352xf32> to vector<1x351xf32>
    %181 = arith.maximumf %179, %180 : vector<1x351xf32>
    %182 = arith.truncf %181 : vector<1x351xf32> to vector<1x351xbf16>
    %c0_126 = arith.constant 0 : index
    %c0_127 = arith.constant 0 : index
    %c0_128 = arith.constant 0 : index
    %183 = vector.load %arg6[%c0_126, %c0_127, %c0_128] : memref<8x351x128xbf16, #tpu.memory_space<vmem>>, vector<1x351x128xbf16>
    %184 = vector.shape_cast %183 : vector<1x351x128xbf16> to vector<351x128xbf16>
    %cst_129 = arith.constant dense<0.000000e+00> : vector<1x128xf32>
    %185 = tpu.matmul %182, %184, %cst_129 {dimension_numbers = #tpu.dot_dimension_numbers<[1], [0], [0], [1], [0, 0, 1, 1], [], []>} : vector<1x351xbf16>, vector<351x128xbf16>, vector<1x128xf32> -> vector<1x128xf32>
    %186 = arith.addf %175, %185 : vector<1x128xf32>
    %c2_130 = arith.constant 2 : index
    %c0_131 = arith.constant 0 : index
    %187 = vector.load %arg15[%c2_130, %c0_131] : memref<16x352xf32, #tpu.memory_space<vmem>>, vector<1x352xf32>
    %c3_132 = arith.constant 3 : index
    %c0_133 = arith.constant 0 : index
    %188 = vector.load %arg15[%c3_132, %c0_133] : memref<16x352xf32, #tpu.memory_space<vmem>>, vector<1x352xf32>
    %189 = arith.maximumf %187, %188 : vector<1x352xf32>
    %190 = vector.extract_strided_slice %189 {offsets = [0, 0], sizes = [1, 351], strides = [1, 1]} : vector<1x352xf32> to vector<1x351xf32>
    %191 = vector.extract_strided_slice %189 {offsets = [0, 1], sizes = [1, 351], strides = [1, 1]} : vector<1x352xf32> to vector<1x351xf32>
    %192 = arith.maximumf %190, %191 : vector<1x351xf32>
    %193 = arith.truncf %192 : vector<1x351xf32> to vector<1x351xbf16>
    %c1_134 = arith.constant 1 : index
    %c0_135 = arith.constant 0 : index
    %c0_136 = arith.constant 0 : index
    %194 = vector.load %arg6[%c1_134, %c0_135, %c0_136] : memref<8x351x128xbf16, #tpu.memory_space<vmem>>, vector<1x351x128xbf16>
    %195 = vector.shape_cast %194 : vector<1x351x128xbf16> to vector<351x128xbf16>
    %cst_137 = arith.constant dense<0.000000e+00> : vector<1x128xf32>
    %196 = tpu.matmul %193, %195, %cst_137 {dimension_numbers = #tpu.dot_dimension_numbers<[1], [0], [0], [1], [0, 0, 1, 1], [], []>} : vector<1x351xbf16>, vector<351x128xbf16>, vector<1x128xf32> -> vector<1x128xf32>
    %197 = arith.addf %186, %196 : vector<1x128xf32>
    %c4_138 = arith.constant 4 : index
    %c0_139 = arith.constant 0 : index
    %198 = vector.load %arg15[%c4_138, %c0_139] : memref<16x352xf32, #tpu.memory_space<vmem>>, vector<1x352xf32>
    %c5_140 = arith.constant 5 : index
    %c0_141 = arith.constant 0 : index
    %199 = vector.load %arg15[%c5_140, %c0_141] : memref<16x352xf32, #tpu.memory_space<vmem>>, vector<1x352xf32>
    %200 = arith.maximumf %198, %199 : vector<1x352xf32>
    %201 = vector.extract_strided_slice %200 {offsets = [0, 0], sizes = [1, 351], strides = [1, 1]} : vector<1x352xf32> to vector<1x351xf32>
    %202 = vector.extract_strided_slice %200 {offsets = [0, 1], sizes = [1, 351], strides = [1, 1]} : vector<1x352xf32> to vector<1x351xf32>
    %203 = arith.maximumf %201, %202 : vector<1x351xf32>
    %204 = arith.truncf %203 : vector<1x351xf32> to vector<1x351xbf16>
    %c2_142 = arith.constant 2 : index
    %c0_143 = arith.constant 0 : index
    %c0_144 = arith.constant 0 : index
    %205 = vector.load %arg6[%c2_142, %c0_143, %c0_144] : memref<8x351x128xbf16, #tpu.memory_space<vmem>>, vector<1x351x128xbf16>
    %206 = vector.shape_cast %205 : vector<1x351x128xbf16> to vector<351x128xbf16>
    %cst_145 = arith.constant dense<0.000000e+00> : vector<1x128xf32>
    %207 = tpu.matmul %204, %206, %cst_145 {dimension_numbers = #tpu.dot_dimension_numbers<[1], [0], [0], [1], [0, 0, 1, 1], [], []>} : vector<1x351xbf16>, vector<351x128xbf16>, vector<1x128xf32> -> vector<1x128xf32>
    %208 = arith.addf %197, %207 : vector<1x128xf32>
    %c6_146 = arith.constant 6 : index
    %c0_147 = arith.constant 0 : index
    %209 = vector.load %arg15[%c6_146, %c0_147] : memref<16x352xf32, #tpu.memory_space<vmem>>, vector<1x352xf32>
    %c7_148 = arith.constant 7 : index
    %c0_149 = arith.constant 0 : index
    %210 = vector.load %arg15[%c7_148, %c0_149] : memref<16x352xf32, #tpu.memory_space<vmem>>, vector<1x352xf32>
    %211 = arith.maximumf %209, %210 : vector<1x352xf32>
    %212 = vector.extract_strided_slice %211 {offsets = [0, 0], sizes = [1, 351], strides = [1, 1]} : vector<1x352xf32> to vector<1x351xf32>
    %213 = vector.extract_strided_slice %211 {offsets = [0, 1], sizes = [1, 351], strides = [1, 1]} : vector<1x352xf32> to vector<1x351xf32>
    %214 = arith.maximumf %212, %213 : vector<1x351xf32>
    %215 = arith.truncf %214 : vector<1x351xf32> to vector<1x351xbf16>
    %c3_150 = arith.constant 3 : index
    %c0_151 = arith.constant 0 : index
    %c0_152 = arith.constant 0 : index
    %216 = vector.load %arg6[%c3_150, %c0_151, %c0_152] : memref<8x351x128xbf16, #tpu.memory_space<vmem>>, vector<1x351x128xbf16>
    %217 = vector.shape_cast %216 : vector<1x351x128xbf16> to vector<351x128xbf16>
    %cst_153 = arith.constant dense<0.000000e+00> : vector<1x128xf32>
    %218 = tpu.matmul %215, %217, %cst_153 {dimension_numbers = #tpu.dot_dimension_numbers<[1], [0], [0], [1], [0, 0, 1, 1], [], []>} : vector<1x351xbf16>, vector<351x128xbf16>, vector<1x128xf32> -> vector<1x128xf32>
    %219 = arith.addf %208, %218 : vector<1x128xf32>
    %c8_154 = arith.constant 8 : index
    %c0_155 = arith.constant 0 : index
    %220 = vector.load %arg15[%c8_154, %c0_155] : memref<16x352xf32, #tpu.memory_space<vmem>>, vector<1x352xf32>
    %c9_156 = arith.constant 9 : index
    %c0_157 = arith.constant 0 : index
    %221 = vector.load %arg15[%c9_156, %c0_157] : memref<16x352xf32, #tpu.memory_space<vmem>>, vector<1x352xf32>
    %222 = arith.maximumf %220, %221 : vector<1x352xf32>
    %223 = vector.extract_strided_slice %222 {offsets = [0, 0], sizes = [1, 351], strides = [1, 1]} : vector<1x352xf32> to vector<1x351xf32>
    %224 = vector.extract_strided_slice %222 {offsets = [0, 1], sizes = [1, 351], strides = [1, 1]} : vector<1x352xf32> to vector<1x351xf32>
    %225 = arith.maximumf %223, %224 : vector<1x351xf32>
    %226 = arith.truncf %225 : vector<1x351xf32> to vector<1x351xbf16>
    %c4_158 = arith.constant 4 : index
    %c0_159 = arith.constant 0 : index
    %c0_160 = arith.constant 0 : index
    %227 = vector.load %arg6[%c4_158, %c0_159, %c0_160] : memref<8x351x128xbf16, #tpu.memory_space<vmem>>, vector<1x351x128xbf16>
    %228 = vector.shape_cast %227 : vector<1x351x128xbf16> to vector<351x128xbf16>
    %cst_161 = arith.constant dense<0.000000e+00> : vector<1x128xf32>
    %229 = tpu.matmul %226, %228, %cst_161 {dimension_numbers = #tpu.dot_dimension_numbers<[1], [0], [0], [1], [0, 0, 1, 1], [], []>} : vector<1x351xbf16>, vector<351x128xbf16>, vector<1x128xf32> -> vector<1x128xf32>
    %230 = arith.addf %219, %229 : vector<1x128xf32>
    %c10_162 = arith.constant 10 : index
    %c0_163 = arith.constant 0 : index
    %231 = vector.load %arg15[%c10_162, %c0_163] : memref<16x352xf32, #tpu.memory_space<vmem>>, vector<1x352xf32>
    %c11_164 = arith.constant 11 : index
    %c0_165 = arith.constant 0 : index
    %232 = vector.load %arg15[%c11_164, %c0_165] : memref<16x352xf32, #tpu.memory_space<vmem>>, vector<1x352xf32>
    %233 = arith.maximumf %231, %232 : vector<1x352xf32>
    %234 = vector.extract_strided_slice %233 {offsets = [0, 0], sizes = [1, 351], strides = [1, 1]} : vector<1x352xf32> to vector<1x351xf32>
    %235 = vector.extract_strided_slice %233 {offsets = [0, 1], sizes = [1, 351], strides = [1, 1]} : vector<1x352xf32> to vector<1x351xf32>
    %236 = arith.maximumf %234, %235 : vector<1x351xf32>
    %237 = arith.truncf %236 : vector<1x351xf32> to vector<1x351xbf16>
    %c5_166 = arith.constant 5 : index
    %c0_167 = arith.constant 0 : index
    %c0_168 = arith.constant 0 : index
    %238 = vector.load %arg6[%c5_166, %c0_167, %c0_168] : memref<8x351x128xbf16, #tpu.memory_space<vmem>>, vector<1x351x128xbf16>
    %239 = vector.shape_cast %238 : vector<1x351x128xbf16> to vector<351x128xbf16>
    %cst_169 = arith.constant dense<0.000000e+00> : vector<1x128xf32>
    %240 = tpu.matmul %237, %239, %cst_169 {dimension_numbers = #tpu.dot_dimension_numbers<[1], [0], [0], [1], [0, 0, 1, 1], [], []>} : vector<1x351xbf16>, vector<351x128xbf16>, vector<1x128xf32> -> vector<1x128xf32>
    %241 = arith.addf %230, %240 : vector<1x128xf32>
    %c12_170 = arith.constant 12 : index
    %c0_171 = arith.constant 0 : index
    %242 = vector.load %arg15[%c12_170, %c0_171] : memref<16x352xf32, #tpu.memory_space<vmem>>, vector<1x352xf32>
    %c13_172 = arith.constant 13 : index
    %c0_173 = arith.constant 0 : index
    %243 = vector.load %arg15[%c13_172, %c0_173] : memref<16x352xf32, #tpu.memory_space<vmem>>, vector<1x352xf32>
    %244 = arith.maximumf %242, %243 : vector<1x352xf32>
    %245 = vector.extract_strided_slice %244 {offsets = [0, 0], sizes = [1, 351], strides = [1, 1]} : vector<1x352xf32> to vector<1x351xf32>
    %246 = vector.extract_strided_slice %244 {offsets = [0, 1], sizes = [1, 351], strides = [1, 1]} : vector<1x352xf32> to vector<1x351xf32>
    %247 = arith.maximumf %245, %246 : vector<1x351xf32>
    %248 = arith.truncf %247 : vector<1x351xf32> to vector<1x351xbf16>
    %c6_174 = arith.constant 6 : index
    %c0_175 = arith.constant 0 : index
    %c0_176 = arith.constant 0 : index
    %249 = vector.load %arg6[%c6_174, %c0_175, %c0_176] : memref<8x351x128xbf16, #tpu.memory_space<vmem>>, vector<1x351x128xbf16>
    %250 = vector.shape_cast %249 : vector<1x351x128xbf16> to vector<351x128xbf16>
    %cst_177 = arith.constant dense<0.000000e+00> : vector<1x128xf32>
    %251 = tpu.matmul %248, %250, %cst_177 {dimension_numbers = #tpu.dot_dimension_numbers<[1], [0], [0], [1], [0, 0, 1, 1], [], []>} : vector<1x351xbf16>, vector<351x128xbf16>, vector<1x128xf32> -> vector<1x128xf32>
    %252 = arith.addf %241, %251 : vector<1x128xf32>
    %c14_178 = arith.constant 14 : index
    %c0_179 = arith.constant 0 : index
    %253 = vector.load %arg15[%c14_178, %c0_179] : memref<16x352xf32, #tpu.memory_space<vmem>>, vector<1x352xf32>
    %c15_180 = arith.constant 15 : index
    %c0_181 = arith.constant 0 : index
    %254 = vector.load %arg15[%c15_180, %c0_181] : memref<16x352xf32, #tpu.memory_space<vmem>>, vector<1x352xf32>
    %255 = arith.maximumf %253, %254 : vector<1x352xf32>
    %256 = vector.extract_strided_slice %255 {offsets = [0, 0], sizes = [1, 351], strides = [1, 1]} : vector<1x352xf32> to vector<1x351xf32>
    %257 = vector.extract_strided_slice %255 {offsets = [0, 1], sizes = [1, 351], strides = [1, 1]} : vector<1x352xf32> to vector<1x351xf32>
    %258 = arith.maximumf %256, %257 : vector<1x351xf32>
    %259 = arith.truncf %258 : vector<1x351xf32> to vector<1x351xbf16>
    %c7_182 = arith.constant 7 : index
    %c0_183 = arith.constant 0 : index
    %c0_184 = arith.constant 0 : index
    %260 = vector.load %arg6[%c7_182, %c0_183, %c0_184] : memref<8x351x128xbf16, #tpu.memory_space<vmem>>, vector<1x351x128xbf16>
    %261 = vector.shape_cast %260 : vector<1x351x128xbf16> to vector<351x128xbf16>
    %cst_185 = arith.constant dense<0.000000e+00> : vector<1x128xf32>
    %262 = tpu.matmul %259, %261, %cst_185 {dimension_numbers = #tpu.dot_dimension_numbers<[1], [0], [0], [1], [0, 0, 1, 1], [], []>} : vector<1x351xbf16>, vector<351x128xbf16>, vector<1x128xf32> -> vector<1x128xf32>
    %263 = arith.addf %252, %262 : vector<1x128xf32>
    %cst_186 = arith.constant 0.000000e+00 : f32
    %264 = vector.broadcast %cst_186 : f32 to vector<1x128xf32>
    %265 = arith.maximumf %263, %264 : vector<1x128xf32>
    %266 = arith.truncf %265 : vector<1x128xf32> to vector<1x128xbf16>
    %c0_187 = arith.constant 0 : index
    %c0_188 = arith.constant 0 : index
    %267 = vector.load %arg8[%c0_187, %c0_188] : memref<128x32xbf16, #tpu.memory_space<vmem>>, vector<128x32xbf16>
    %cst_189 = arith.constant dense<0.000000e+00> : vector<1x32xf32>
    %268 = tpu.matmul %266, %267, %cst_189 {dimension_numbers = #tpu.dot_dimension_numbers<[1], [0], [0], [1], [0, 0, 1, 1], [], []>} : vector<1x128xbf16>, vector<128x32xbf16>, vector<1x32xf32> -> vector<1x32xf32>
    %c0_190 = arith.constant 0 : index
    %c0_191 = arith.constant 0 : index
    %269 = vector.load %arg9[%c0_190, %c0_191] : memref<1x32xf32, #tpu.memory_space<vmem>>, vector<1x32xf32>
    %270 = arith.addf %268, %269 : vector<1x32xf32>
    %cst_192 = arith.constant 0.000000e+00 : f32
    %271 = vector.broadcast %cst_192 : f32 to vector<1x32xf32>
    %272 = arith.maximumf %270, %271 : vector<1x32xf32>
    %273 = arith.truncf %272 : vector<1x32xf32> to vector<1x32xbf16>
    %c0_193 = arith.constant 0 : index
    %c0_194 = arith.constant 0 : index
    %274 = vector.load %arg10[%c0_193, %c0_194] : memref<32x2xbf16, #tpu.memory_space<vmem>>, vector<32x2xbf16>
    %cst_195 = arith.constant dense<0.000000e+00> : vector<1x2xf32>
    %275 = tpu.matmul %273, %274, %cst_195 {dimension_numbers = #tpu.dot_dimension_numbers<[1], [0], [0], [1], [0, 0, 1, 1], [], []>} : vector<1x32xbf16>, vector<32x2xbf16>, vector<1x2xf32> -> vector<1x2xf32>
    %c0_196 = arith.constant 0 : index
    %c0_197 = arith.constant 0 : index
    %276 = vector.load %arg11[%c0_196, %c0_197] : memref<1x2xf32, #tpu.memory_space<vmem>>, vector<1x2xf32>
    %277 = arith.addf %275, %276 : vector<1x2xf32>
    %c0_198 = arith.constant 0 : index
    %c0_199 = arith.constant 0 : index
    %c0_200 = arith.constant 0 : index
    %278 = vector.load %arg12[%c0_198, %c0_199, %c0_200] : memref<1x1x2xf32, #tpu.memory_space<vmem>>, vector<1x1x2xf32>
    %279 = vector.shape_cast %278 : vector<1x1x2xf32> to vector<1x2xf32>
    %280 = vector.shape_cast %277 : vector<1x2xf32> to vector<1x1x2xf32>
    tpu.vector_store %arg12[%c0_198, %c0_199, %c0_200], %280 {strides = array<i32>} : memref<1x1x2xf32, #tpu.memory_space<vmem>>, vector<1x1x2xf32>,
    return
  }
  func.func @transform_0(%arg0: i32) -> (i32, i32, i32) {
    %c0_i32 = arith.constant 0 : i32
    %c0_i32_0 = arith.constant 0 : i32
    %c0_i32_1 = arith.constant 0 : i32
    return %arg0, %c0_i32, %c0_i32_0 : i32, i32, i32
  }
  func.func @transform_1(%arg0: i32) -> (i32, i32, i32) {
    %c0_i32 = arith.constant 0 : i32
    %c0_i32_0 = arith.constant 0 : i32
    %c0_i32_1 = arith.constant 0 : i32
    %c0_i32_2 = arith.constant 0 : i32
    return %c0_i32, %c0_i32_0, %c0_i32_1 : i32, i32, i32
  }
  func.func @transform_2(%arg0: i32) -> (i32, i32) {
    %c0_i32 = arith.constant 0 : i32
    %c0_i32_0 = arith.constant 0 : i32
    %c0_i32_1 = arith.constant 0 : i32
    return %c0_i32, %c0_i32_0 : i32, i32
  }
  func.func @transform_3(%arg0: i32) -> (i32, i32, i32) {
    %c0_i32 = arith.constant 0 : i32
    %c0_i32_0 = arith.constant 0 : i32
    %c0_i32_1 = arith.constant 0 : i32
    %c0_i32_2 = arith.constant 0 : i32
    return %c0_i32, %c0_i32_0, %c0_i32_1 : i32, i32, i32
  }
  func.func @transform_4(%arg0: i32) -> (i32, i32) {
    %c0_i32 = arith.constant 0 : i32
    %c0_i32_0 = arith.constant 0 : i32
    %c0_i32_1 = arith.constant 0 : i32
    return %c0_i32, %c0_i32_0 : i32, i32
  }
  func.func @transform_5(%arg0: i32) -> (i32, i32, i32) {
    %c0_i32 = arith.constant 0 : i32
    %c0_i32_0 = arith.constant 0 : i32
    %c0_i32_1 = arith.constant 0 : i32
    %c0_i32_2 = arith.constant 0 : i32
    return %c0_i32, %c0_i32_0, %c0_i32_1 : i32, i32, i32
  }
  func.func @transform_6(%arg0: i32) -> (i32, i32) {
    %c0_i32 = arith.constant 0 : i32
    %c0_i32_0 = arith.constant 0 : i32
    %c0_i32_1 = arith.constant 0 : i32
    return %c0_i32, %c0_i32_0 : i32, i32
  }
  func.func @transform_7(%arg0: i32) -> (i32, i32) {
    %c0_i32 = arith.constant 0 : i32
    %c0_i32_0 = arith.constant 0 : i32
    %c0_i32_1 = arith.constant 0 : i32
    return %c0_i32, %c0_i32_0 : i32, i32
  }
  func.func @transform_8(%arg0: i32) -> (i32, i32) {
    %c0_i32 = arith.constant 0 : i32
    %c0_i32_0 = arith.constant 0 : i32
    %c0_i32_1 = arith.constant 0 : i32
    return %c0_i32, %c0_i32_0 : i32, i32
  }
  func.func @transform_9(%arg0: i32) -> (i32, i32) {
    %c0_i32 = arith.constant 0 : i32
    %c0_i32_0 = arith.constant 0 : i32
    %c0_i32_1 = arith.constant 0 : i32
    return %c0_i32, %c0_i32_0 : i32, i32
  }
  func.func @transform_10(%arg0: i32) -> (i32, i32) {
    %c0_i32 = arith.constant 0 : i32
    %c0_i32_0 = arith.constant 0 : i32
    %c0_i32_1 = arith.constant 0 : i32
    return %c0_i32, %c0_i32_0 : i32, i32
  }
  func.func @transform_11(%arg0: i32) -> (i32, i32, i32) {
    %c0_i32 = arith.constant 0 : i32
    %c0_i32_0 = arith.constant 0 : i32
    %c0_i32_1 = arith.constant 0 : i32
    return %arg0, %c0_i32, %c0_i32_0 : i32, i32, i32
  }
}

</mosaic_0001>

<llo_original>
// kernel: lenet_timit_forward.1
$region0: #{lenet_timit_forward.1}
  #allocation0 [shape = 'u32[]', space=smem, size = 0x4, offset = 0x4, fixed_abs, tag = 'smem constant byte address 0x4 - core index']
  #allocation1 [shape = 'u32[72,128]{1,0:T(1,128)}', space=vmem, size = 0x9000, scoped, tag = 'internal scratch']
  #allocation2 [shape = 'f32[36,288]{1,0:T(8,128)}', space=vmem, size = 0xf000, scoped, tag = 'scratch operand']
  #allocation3 [shape = 'f32[18,287]{1,0:T(8,128)}', space=vmem, size = 0x9000, scoped, tag = 'scratch operand']
  #allocation4 [shape = 'f32[16,352]{1,0:T(8,128)}', space=vmem, size = 0x6000, scoped, tag = 'scratch operand']
  %s0 = inlined_call_operand.vmem [shape: f32[2,38,50], index: 0, kind: input, shape index: {}]
  %s1 = inlined_call_operand.vmem [shape: bf16[3,50,288], index: 1, kind: input, shape index: {}]
  %s2 = inlined_call_operand.vmem [shape: f32[1,288], index: 2, kind: input, shape index: {}]
  %s3 = inlined_call_operand.vmem [shape: bf16[3,287,352], index: 3, kind: input, shape index: {}]
  %s4 = inlined_call_operand.vmem [shape: f32[1,352], index: 4, kind: input, shape index: {}]
  %s5 = inlined_call_operand.vmem [shape: bf16[8,351,128], index: 5, kind: input, shape index: {}]
  %s6 = inlined_call_operand.vmem [shape: f32[1,128], index: 6, kind: input, shape index: {}]
  %s7 = inlined_call_operand.vmem [shape: bf16[128,32], index: 7, kind: input, shape index: {}]
  %s8 = inlined_call_operand.vmem [shape: f32[1,32], index: 8, kind: input, shape index: {}]
  %s9 = inlined_call_operand.vmem [shape: bf16[32,2], index: 9, kind: input, shape index: {}]
  %s10 = inlined_call_operand.vmem [shape: f32[1,2], index: 10, kind: input, shape index: {}]
  %s11 = inlined_call_operand.hbm [shape: f32[2,1,2], index: 11, kind: output, shape index: {}]
  %s12 = sld [smem:[#allocation0]]
  $region77: #{lenet_timit_forward.1} parent=0
    _
  %s14 = ssub.s32 1, %s12
  %s15 = scalar_select 0, %s14, %s12
  $region1: #{lenet_timit_forward.1} parent=0
    #allocation5 [shape = 'u8[1024]{0}', space=vmem, size = 0x400, scoped, tag = 'output window, operand 0']
    #allocation6 [shape = 's32[2]{0}', space=sflag, size = 0x8, scoped, tag = 'scoped memory for lenet_timit_forward.1']
    %16 = vsyncpa [#allocation6], 0
    %s17 = scalar_lea.sflag [#allocation6], 1
    %18 = vsyncpa %s17, 0
    loop: start=0, step=1, limit=4
    $region2: #{lenet_timit_forward.1} parent=1 // loop_pre_header
      _
    $region3: #{lenet_timit_forward.1} parent=1 // loop_header
      %s20 = sphi 0, %s24
      %p21 = scmp.ge.s32.totalorder %s20, 4
      %s30 = sphi 0, %s32
      %s33 = sphi 0, %s30
      %s34 = sphi 0, %s33
      %s50 = sphi 0, %s34
      %s54 = sphi 0, %s54
      %s56 = sphi 0, %s54
      %s57 = sphi 0, %s56
      %s71 = sphi 0, %s57
      %s75 = sphi 0, %s75
      %s77 = sphi 0, %s75
      %s78 = sphi 0, %s77
      %s92 = sphi 0, %s78
      %s96 = sphi 0, %s96
      %s98 = sphi 0, %s96
      %s99 = sphi 0, %s98
      %s113 = sphi 0, %s99
      %s117 = sphi 0, %s117
      %s119 = sphi 0, %s117
      %s120 = sphi 0, %s119
      %s134 = sphi 0, %s120
      %s138 = sphi 0, %s138
      %s140 = sphi 0, %s138
      %s141 = sphi 0, %s140
      %s155 = sphi 0, %s141
      %s159 = sphi 0, %s159
      %s161 = sphi 0, %s159
      %s162 = sphi 0, %s161
      %s176 = sphi 0, %s162
      %s180 = sphi 0, %s180
      %s182 = sphi 0, %s180
      %s183 = sphi 0, %s182
      %s197 = sphi 0, %s183
      %s201 = sphi 0, %s201
      %s203 = sphi 0, %s201
      %s204 = sphi 0, %s203
      %s218 = sphi 0, %s204
      %s222 = sphi 0, %s222
      %s224 = sphi 0, %s222
      %s225 = sphi 0, %s224
      %s239 = sphi 0, %s225
      %s243 = sphi 0, %s243
      %s245 = sphi 0, %s243
      %s246 = sphi 0, %s245
      %s260 = sphi 0, %s246
      %s266 = sphi 0, %s268
      %s269 = sphi 0, %s266
      %s270 = sphi 0, %s269
      %s286 = sphi 0, %s270
    $region4: #{lenet_timit_forward.1} parent=1 // loop_header_branch
      %23 = sbr.rel (%p21) target = $region8
    $region5: #{lenet_timit_forward.1} parent=1 // loop_body
      %s25 = ssub.s32 %s20, 1
      %s26 = ssub.s32 %s20, 2
      %s27 = sadd.s32 %s20, 1
      %s28 = ssub.s32 %s20, %s27
      %p29 = scmp.eq.s32.totalorder %s28, 0
      %s31 = sadd.s32 %s30, 1
      %s32 = scalar_select %p29, %s30, %s31
      %p35 = pneg %p29
      %p36 = scmp.eq.s32.totalorder %s20, 1
      %p37 = por %p35, %p36
      %p38 = scmp.ne.s32.totalorder %s30, %s33
      %p39 = scmp.eq.s32.totalorder %s20, 0
      %p40 = por %p38, %p39
      %p41 = scmp.ne.s32.totalorder %s30, %s33
      %p42 = scmp.eq.s32.totalorder %s25, 1
      %p43 = por %p41, %p42
      %p44 = scmp.ne.s32.totalorder %s33, %s34
      %p45 = scmp.eq.s32.totalorder %s25, 0
      %p46 = por %p44, %p45
      %p47 = scmp.ne.s32.totalorder %s33, %s34
      %p48 = scmp.eq.s32.totalorder %s26, 1
      %p49 = por %p47, %p48
      %p51 = scmp.ne.s32.totalorder %s34, %s50
      %p52 = scmp.eq.s32.totalorder %s26, 0
      %p53 = por %p51, %p52
      %s55 = sadd.s32 %s54, 1
      %p58 = scmp.eq.s32.totalorder %s20, 1
      %p59 = scmp.ne.s32.totalorder %s54, %s56
      %p60 = scmp.eq.s32.totalorder %s20, 0
      %p61 = por %p59, %p60
      %p62 = scmp.ne.s32.totalorder %s54, %s56
      %p63 = scmp.eq.s32.totalorder %s25, 1
      %p64 = por %p62, %p63
      %p65 = scmp.ne.s32.totalorder %s56, %s57
      %p66 = scmp.eq.s32.totalorder %s25, 0
      %p67 = por %p65, %p66
      %p68 = scmp.ne.s32.totalorder %s56, %s57
      %p69 = scmp.eq.s32.totalorder %s26, 1
      %p70 = por %p68, %p69
      %p72 = scmp.ne.s32.totalorder %s57, %s71
      %p73 = scmp.eq.s32.totalorder %s26, 0
      %p74 = por %p72, %p73
      %s76 = sadd.s32 %s75, 1
      %p79 = scmp.eq.s32.totalorder %s20, 1
      %p80 = scmp.ne.s32.totalorder %s75, %s77
      %p81 = scmp.eq.s32.totalorder %s20, 0
      %p82 = por %p80, %p81
      %p83 = scmp.ne.s32.totalorder %s75, %s77
      %p84 = scmp.eq.s32.totalorder %s25, 1
      %p85 = por %p83, %p84
      %p86 = scmp.ne.s32.totalorder %s77, %s78
      %p87 = scmp.eq.s32.totalorder %s25, 0
      %p88 = por %p86, %p87
      %p89 = scmp.ne.s32.totalorder %s77, %s78
      %p90 = scmp.eq.s32.totalorder %s26, 1
      %p91 = por %p89, %p90
      %p93 = scmp.ne.s32.totalorder %s78, %s92
      %p94 = scmp.eq.s32.totalorder %s26, 0
      %p95 = por %p93, %p94
      %s97 = sadd.s32 %s96, 1
      %p100 = scmp.eq.s32.totalorder %s20, 1
      %p101 = scmp.ne.s32.totalorder %s96, %s98
      %p102 = scmp.eq.s32.totalorder %s20, 0
      %p103 = por %p101, %p102
      %p104 = scmp.ne.s32.totalorder %s96, %s98
      %p105 = scmp.eq.s32.totalorder %s25, 1
      %p106 = por %p104, %p105
      %p107 = scmp.ne.s32.totalorder %s98, %s99
      %p108 = scmp.eq.s32.totalorder %s25, 0
      %p109 = por %p107, %p108
      %p110 = scmp.ne.s32.totalorder %s98, %s99
      %p111 = scmp.eq.s32.totalorder %s26, 1
      %p112 = por %p110, %p111
      %p114 = scmp.ne.s32.totalorder %s99, %s113
      %p115 = scmp.eq.s32.totalorder %s26, 0
      %p116 = por %p114, %p115
      %s118 = sadd.s32 %s117, 1
      %p121 = scmp.eq.s32.totalorder %s20, 1
      %p122 = scmp.ne.s32.totalorder %s117, %s119
      %p123 = scmp.eq.s32.totalorder %s20, 0
      %p124 = por %p122, %p123
      %p125 = scmp.ne.s32.totalorder %s117, %s119
      %p126 = scmp.eq.s32.totalorder %s25, 1
      %p127 = por %p125, %p126
      %p128 = scmp.ne.s32.totalorder %s119, %s120
      %p129 = scmp.eq.s32.totalorder %s25, 0
      %p130 = por %p128, %p129
      %p131 = scmp.ne.s32.totalorder %s119, %s120
      %p132 = scmp.eq.s32.totalorder %s26, 1
      %p133 = por %p131, %p132
      %p135 = scmp.ne.s32.totalorder %s120, %s134
      %p136 = scmp.eq.s32.totalorder %s26, 0
      %p137 = por %p135, %p136
      %s139 = sadd.s32 %s138, 1
      %p142 = scmp.eq.s32.totalorder %s20, 1
      %p143 = scmp.ne.s32.totalorder %s138, %s140
      %p144 = scmp.eq.s32.totalorder %s20, 0
      %p145 = por %p143, %p144
      %p146 = scmp.ne.s32.totalorder %s138, %s140
      %p147 = scmp.eq.s32.totalorder %s25, 1
      %p148 = por %p146, %p147
      %p149 = scmp.ne.s32.totalorder %s140, %s141
      %p150 = scmp.eq.s32.totalorder %s25, 0
      %p151 = por %p149, %p150
      %p152 = scmp.ne.s32.totalorder %s140, %s141
      %p153 = scmp.eq.s32.totalorder %s26, 1
      %p154 = por %p152, %p153
      %p156 = scmp.ne.s32.totalorder %s141, %s155
      %p157 = scmp.eq.s32.totalorder %s26, 0
      %p158 = por %p156, %p157
      %s160 = sadd.s32 %s159, 1
      %p163 = scmp.eq.s32.totalorder %s20, 1
      %p164 = scmp.ne.s32.totalorder %s159, %s161
      %p165 = scmp.eq.s32.totalorder %s20, 0
      %p166 = por %p164, %p165
      %p167 = scmp.ne.s32.totalorder %s159, %s161
      %p168 = scmp.eq.s32.totalorder %s25, 1
      %p169 = por %p167, %p168
      %p170 = scmp.ne.s32.totalorder %s161, %s162
      %p171 = scmp.eq.s32.totalorder %s25, 0
      %p172 = por %p170, %p171
      %p173 = scmp.ne.s32.totalorder %s161, %s162
      %p174 = scmp.eq.s32.totalorder %s26, 1
      %p175 = por %p173, %p174
      %p177 = scmp.ne.s32.totalorder %s162, %s176
      %p178 = scmp.eq.s32.totalorder %s26, 0
      %p179 = por %p177, %p178
      %s181 = sadd.s32 %s180, 1
      %p184 = scmp.eq.s32.totalorder %s20, 1
      %p185 = scmp.ne.s32.totalorder %s180, %s182
      %p186 = scmp.eq.s32.totalorder %s20, 0
      %p187 = por %p185, %p186
      %p188 = scmp.ne.s32.totalorder %s180, %s182
      %p189 = scmp.eq.s32.totalorder %s25, 1
      %p190 = por %p188, %p189
      %p191 = scmp.ne.s32.totalorder %s182, %s183
      %p192 = scmp.eq.s32.totalorder %s25, 0
      %p193 = por %p191, %p192
      %p194 = scmp.ne.s32.totalorder %s182, %s183
      %p195 = scmp.eq.s32.totalorder %s26, 1
      %p196 = por %p194, %p195
      %p198 = scmp.ne.s32.totalorder %s183, %s197
      %p199 = scmp.eq.s32.totalorder %s26, 0
      %p200 = por %p198, %p199
      %s202 = sadd.s32 %s201, 1
      %p205 = scmp.eq.s32.totalorder %s20, 1
      %p206 = scmp.ne.s32.totalorder %s201, %s203
      %p207 = scmp.eq.s32.totalorder %s20, 0
      %p208 = por %p206, %p207
      %p209 = scmp.ne.s32.totalorder %s201, %s203
      %p210 = scmp.eq.s32.totalorder %s25, 1
      %p211 = por %p209, %p210
      %p212 = scmp.ne.s32.totalorder %s203, %s204
      %p213 = scmp.eq.s32.totalorder %s25, 0
      %p214 = por %p212, %p213
      %p215 = scmp.ne.s32.totalorder %s203, %s204
      %p216 = scmp.eq.s32.totalorder %s26, 1
      %p217 = por %p215, %p216
      %p219 = scmp.ne.s32.totalorder %s204, %s218
      %p220 = scmp.eq.s32.totalorder %s26, 0
      %p221 = por %p219, %p220
      %s223 = sadd.s32 %s222, 1
      %p226 = scmp.eq.s32.totalorder %s20, 1
      %p227 = scmp.ne.s32.totalorder %s222, %s224
      %p228 = scmp.eq.s32.totalorder %s20, 0
      %p229 = por %p227, %p228
      %p230 = scmp.ne.s32.totalorder %s222, %s224
      %p231 = scmp.eq.s32.totalorder %s25, 1
      %p232 = por %p230, %p231
      %p233 = scmp.ne.s32.totalorder %s224, %s225
      %p234 = scmp.eq.s32.totalorder %s25, 0
      %p235 = por %p233, %p234
      %p236 = scmp.ne.s32.totalorder %s224, %s225
      %p237 = scmp.eq.s32.totalorder %s26, 1
      %p238 = por %p236, %p237
      %p240 = scmp.ne.s32.totalorder %s225, %s239
      %p241 = scmp.eq.s32.totalorder %s26, 0
      %p242 = por %p240, %p241
      %s244 = sadd.s32 %s243, 1
      %p247 = scmp.eq.s32.totalorder %s20, 1
      %p248 = scmp.ne.s32.totalorder %s243, %s245
      %p249 = scmp.eq.s32.totalorder %s20, 0
      %p250 = por %p248, %p249
      %p251 = scmp.ne.s32.totalorder %s243, %s245
      %p252 = scmp.eq.s32.totalorder %s25, 1
      %p253 = por %p251, %p252
      %p254 = scmp.ne.s32.totalorder %s245, %s246
      %p255 = scmp.eq.s32.totalorder %s25, 0
      %p256 = por %p254, %p255
      %p257 = scmp.ne.s32.totalorder %s245, %s246
      %p258 = scmp.eq.s32.totalorder %s26, 1
      %p259 = por %p257, %p258
      %p261 = scmp.ne.s32.totalorder %s246, %s260
      %p262 = scmp.eq.s32.totalorder %s26, 0
      %p263 = por %p261, %p262
      %s264 = ssub.s32 %s20, %s27
      %p265 = scmp.eq.s32.totalorder %s264, 0
      %s267 = sadd.s32 %s266, 1
      %s268 = scalar_select %p265, %s266, %s267
      %p271 = pneg %p265
      %p272 = scmp.eq.s32.totalorder %s20, 1
      %p273 = por %p271, %p272
      %p274 = scmp.ne.s32.totalorder %s266, %s269
      %p275 = scmp.eq.s32.totalorder %s20, 0
      %p276 = por %p274, %p275
      %p277 = scmp.ne.s32.totalorder %s266, %s269
      %p278 = scmp.eq.s32.totalorder %s25, 1
      %p279 = por %p277, %p278
      %p280 = scmp.ne.s32.totalorder %s269, %s270
      %p281 = scmp.eq.s32.totalorder %s25, 0
      %p282 = por %p280, %p281
      %p283 = scmp.ne.s32.totalorder %s269, %s270
      %p284 = scmp.eq.s32.totalorder %s26, 1
      %p285 = por %p283, %p284
      %p287 = scmp.ne.s32.totalorder %s270, %s286
      %p288 = scmp.eq.s32.totalorder %s26, 0
      %p289 = por %p287, %p288
      %p290 = scmp.le.s32.totalorder 1, %s20
      %p291 = scmp.lt.s32.totalorder %s20, 3
      %p292 = pnand %p290, %p291
      %p293 = pneg %p292
      // Predicated region
      $region9: #{lenet_timit_forward.1} parent=5 // pred_check
        _
      $region10: #{lenet_timit_forward.1} parent=5 // pred_check_branch
        %295 = sbr.rel (%p292) target = $region12
      $region11: #{lenet_timit_forward.1} parent=5 // pred_region
        %s296 = ssub.s32 %s20, 1
        // Predicated region
        $region13: #{lenet_timit_forward.1} parent=11 // pred_check
          %p297 = pneg %p67
        $region14: #{lenet_timit_forward.1} parent=11 // pred_check_branch
          %299 = sbr.rel (%p297) target = $region16
        $region15: #{lenet_timit_forward.1} parent=11 // pred_region
          _
        $region16: #{lenet_timit_forward.1} parent=11 // pred_fallthru
          _
        // Predicated region
        $region17: #{lenet_timit_forward.1} parent=11 // pred_check
          %p300 = pneg %p88
        $region18: #{lenet_timit_forward.1} parent=11 // pred_check_branch
          %302 = sbr.rel (%p300) target = $region20
        $region19: #{lenet_timit_forward.1} parent=11 // pred_region
          _
        $region20: #{lenet_timit_forward.1} parent=11 // pred_fallthru
          _
        // Predicated region
        $region21: #{lenet_timit_forward.1} parent=11 // pred_check
          %p303 = pneg %p109
        $region22: #{lenet_timit_forward.1} parent=11 // pred_check_branch
          %305 = sbr.rel (%p303) target = $region24
        $region23: #{lenet_timit_forward.1} parent=11 // pred_region
          _
        $region24: #{lenet_timit_forward.1} parent=11 // pred_fallthru
          _
        // Predicated region
        $region25: #{lenet_timit_forward.1} parent=11 // pred_check
          %p306 = pneg %p130
        $region26: #{lenet_timit_forward.1} parent=11 // pred_check_branch
          %308 = sbr.rel (%p306) target = $region28
        $region27: #{lenet_timit_forward.1} parent=11 // pred_region
          _
        $region28: #{lenet_timit_forward.1} parent=11 // pred_fallthru
          _
        // Predicated region
        $region29: #{lenet_timit_forward.1} parent=11 // pred_check
          %p309 = pneg %p151
        $region30: #{lenet_timit_forward.1} parent=11 // pred_check_branch
          %311 = sbr.rel (%p309) target = $region32
        $region31: #{lenet_timit_forward.1} parent=11 // pred_region
          _
        $region32: #{lenet_timit_forward.1} parent=11 // pred_fallthru
          _
        // Predicated region
        $region33: #{lenet_timit_forward.1} parent=11 // pred_check
          %p312 = pneg %p172
        $region34: #{lenet_timit_forward.1} parent=11 // pred_check_branch
          %314 = sbr.rel (%p312) target = $region36
        $region35: #{lenet_timit_forward.1} parent=11 // pred_region
          _
        $region36: #{lenet_timit_forward.1} parent=11 // pred_fallthru
          _
        // Predicated region
        $region37: #{lenet_timit_forward.1} parent=11 // pred_check
          %p315 = pneg %p193
        $region38: #{lenet_timit_forward.1} parent=11 // pred_check_branch
          %317 = sbr.rel (%p315) target = $region40
        $region39: #{lenet_timit_forward.1} parent=11 // pred_region
          _
        $region40: #{lenet_timit_forward.1} parent=11 // pred_fallthru
          _
        // Predicated region
        $region41: #{lenet_timit_forward.1} parent=11 // pred_check
          %p318 = pneg %p214
        $region42: #{lenet_timit_forward.1} parent=11 // pred_check_branch
          %320 = sbr.rel (%p318) target = $region44
        $region43: #{lenet_timit_forward.1} parent=11 // pred_region
          _
        $region44: #{lenet_timit_forward.1} parent=11 // pred_fallthru
          _
        // Predicated region
        $region45: #{lenet_timit_forward.1} parent=11 // pred_check
          %p321 = pneg %p235
        $region46: #{lenet_timit_forward.1} parent=11 // pred_check_branch
          %323 = sbr.rel (%p321) target = $region48
        $region47: #{lenet_timit_forward.1} parent=11 // pred_region
          _
        $region48: #{lenet_timit_forward.1} parent=11 // pred_fallthru
          _
        // Predicated region
        $region49: #{lenet_timit_forward.1} parent=11 // pred_check
          %p324 = pneg %p256
        $region50: #{lenet_timit_forward.1} parent=11 // pred_check_branch
          %326 = sbr.rel (%p324) target = $region52
        $region51: #{lenet_timit_forward.1} parent=11 // pred_region
          _
        $region52: #{lenet_timit_forward.1} parent=11 // pred_fallthru
          _
      $region12: #{lenet_timit_forward.1} parent=5 // pred_fallthru
        _
      %p327 = scmp.lt.s32.totalorder %s20, 2
      // Predicated region
      $region53: #{lenet_timit_forward.1} parent=5 // pred_check
        %p328 = pneg %p327
      $region54: #{lenet_timit_forward.1} parent=5 // pred_check_branch
        %330 = sbr.rel (%p328) target = $region56
      $region55: #{lenet_timit_forward.1} parent=5 // pred_region
        // Predicated region
        $region57: #{lenet_timit_forward.1} parent=55 // pred_check
          %p331 = pneg %p40
        $region58: #{lenet_timit_forward.1} parent=55 // pred_check_branch
          %333 = sbr.rel (%p331) target = $region60
        $region59: #{lenet_timit_forward.1} parent=55 // pred_region
          %p334 = scmp.lt.s32.totalorder %s20, 1
          %s335 = scalar_select %p334, %s20, 1
          %s336 = smul.addr %s335, 5
          %s337 = smul.addr %s336, 8
          %s338 = scalar_lea.vmem %s0, %s337
        $region60: #{lenet_timit_forward.1} parent=55 // pred_fallthru
          _
      $region56: #{lenet_timit_forward.1} parent=5 // pred_fallthru
        _
      %p339 = scmp.le.s32.totalorder 1, %s20
      %p340 = scmp.lt.s32.totalorder %s20, 3
      %p341 = pnand %p339, %p340
      %p342 = pneg %p341
      // Predicated region
      $region61: #{lenet_timit_forward.1} parent=5 // pred_check
        _
      $region62: #{lenet_timit_forward.1} parent=5 // pred_check_branch
        %344 = sbr.rel (%p341) target = $region64
      $region63: #{lenet_timit_forward.1} parent=5 // pred_region
        %s345 = ssub.s32 %s20, 1
        %p346 = scmp.lt.s32.totalorder %s25, 1
        %s347 = scalar_select %p346, %s25, 1
        %s348 = smul.addr %s347, 5
        %s349 = smul.addr %s348, 8
        %s350 = scalar_lea.vmem %s0, %s349
        %p351 = pneg %p46
        %p352 = pneg %p43
        %p353 = pneg %p67
        %p354 = pneg %p64
        %p355 = pneg %p88
        %p356 = pneg %p85
        %p357 = pneg %p109
        %p358 = pneg %p106
        %p359 = pneg %p130
        %p360 = pneg %p127
        %p361 = pneg %p151
        %p362 = pneg %p148
        %p363 = pneg %p172
        %p364 = pneg %p169
        %p365 = pneg %p193
        %p366 = pneg %p190
        %p367 = pneg %p214
        %p368 = pneg %p211
        %p369 = pneg %p235
        %p370 = pneg %p232
        %p371 = pneg %p256
        %p372 = pneg %p253
        %p373 = pneg %p282
        %p374 = pneg %p279
        %s375 = sand.u32 %s269, 1
        %s376 = scalar_lea.sflag [#allocation6], %s375
        %s377 = sand.u32 %s269, 1
        %s378 = scalar_lea.vmem [#allocation5], %s377
        %p379 = scmp.lt.s32.totalorder %s25, 1
        %s380 = scalar_select %p379, %s25, 1
        %s381 = smul.addr %s380, 5
        %s382 = smul.addr %s381, 8
        %s383 = scalar_lea.vmem %s0, %s382
        %v385 = vld [vmem:[%s383] sm:$0xff]
        %v386 = vld [vmem:[%s383 + $0x8] sm:$0xff]
        %v387 = vld [vmem:[%s383 + $0x10] sm:$0xff]
        %v388 = vld [vmem:[%s383 + $0x18] sm:$0xff]
        %v389 = vld [vmem:[%s383 + $0x20] sm:$0xf]
        %v390 = vpack.c.bf16 %v386, %v385
        %v391 = vpack.c.bf16 %v388, %v387
        %v392 = vpack.c.bf16 %v389, %v389
        %v393 = vld [vmem:[%s1] sm:$0xff]
        %v394 = vld [vmem:[%s1 + $0x8] sm:$0xf]
        %v395 = vld [vmem:[%s1 + $0xc] sm:$0xff]
        %v396 = vld [vmem:[%s1 + $0x14] sm:$0xf]
        %v397 = vld [vmem:[%s1 + $0x18] sm:$0xff]
        %v398 = vld [vmem:[%s1 + $0x20] sm:$0xf]
        %v399 = vld [vmem:[%s1 + $0x24] sm:$0xff]
        %v400 = vld [vmem:[%s1 + $0x2c] sm:$0xf]
        %v401 = vld [vmem:[%s1 + $0x30] sm:$0xff]
        %v402 = vld [vmem:[%s1 + $0x38] sm:$0xf]
        %v403 = vld [vmem:[%s1 + $0x3c] sm:$0xff]
        %v404 = vld [vmem:[%s1 + $0x44] sm:$0xf]
        %v405 = vld [vmem:[%s1 + $0x48] sm:$0x11]
        %v406 = vld [vmem:[%s1 + $0x50] sm:$0x1]
        %v407 = vld [vmem:[%s383 + $0x1] sm:$0xff]
        %v408 = vld [vmem:[%s383 + $0x9] sm:$0xff]
        %v409 = vld [vmem:[%s383 + $0x11] sm:$0xff]
        %v410 = vld [vmem:[%s383 + $0x19] sm:$0xff]
        %v411 = vld [vmem:[%s383 + $0x21] sm:$0xf]
        %v412 = vpack.c.bf16 %v408, %v407
        %v413 = vpack.c.bf16 %v410, %v409
        %v414 = vpack.c.bf16 %v411, %v411
        %s415 = scalar_lea.vmem %s1, 84
        %v416 = vld [vmem:[%s415] sm:$0xff]
        %v417 = vld [vmem:[%s415 + $0x8] sm:$0xf]
        %v418 = vld [vmem:[%s415 + $0xc] sm:$0xff]
        %v419 = vld [vmem:[%s415 + $0x14] sm:$0xf]
        %v420 = vld [vmem:[%s415 + $0x18] sm:$0xff]
        %v421 = vld [vmem:[%s415 + $0x20] sm:$0xf]
        %v422 = vld [vmem:[%s415 + $0x24] sm:$0xff]
        %v423 = vld [vmem:[%s415 + $0x2c] sm:$0xf]
        %v424 = vld [vmem:[%s415 + $0x30] sm:$0xff]
        %v425 = vld [vmem:[%s415 + $0x38] sm:$0xf]
        %v426 = vld [vmem:[%s415 + $0x3c] sm:$0xff]
        %v427 = vld [vmem:[%s415 + $0x44] sm:$0xf]
        %v428 = vld [vmem:[%s415 + $0x48] sm:$0x11]
        %v429 = vld [vmem:[%s415 + $0x50] sm:$0x1]
        %v444 = vunpack.c.l.b16 %v416
        %v445 = vunpack.c.h.b16 %v416
        %v446 = vunpack.c.l.b16 %v417
        %v447 = vunpack.c.l.b16 %v418
        %v448 = vunpack.c.h.b16 %v418
        %v449 = vunpack.c.l.b16 %v419
        %v450 = vunpack.c.l.b16 %v420
        %v451 = vunpack.c.h.b16 %v420
        %v452 = vunpack.c.l.b16 %v421
        %v453 = vunpack.c.l.b16 %v422
        %v454 = vunpack.c.h.b16 %v422
        %v455 = vunpack.c.l.b16 %v423
        %v456 = vunpack.c.l.b16 %v424
        %v457 = vunpack.c.h.b16 %v424
        %v458 = vunpack.c.l.b16 %v425
        %v459 = vunpack.c.l.b16 %v426
        %v460 = vunpack.c.h.b16 %v426
        %v461 = vunpack.c.l.b16 %v427
        %v462 = vunpack.c.l.b16 %v428
        %v463 = vunpack.c.h.b16 %v428
        %v464 = vunpack.c.l.b16 %v429
        %v465 = vpack.c.b16 %v447, %v444
        %v466 = vpack.c.b16 %v448, %v445
        %v467 = vpack.c.b16 %v449, %v446
        %v468 = vpack.c.b16 %v453, %v450
        %v469 = vpack.c.b16 %v454, %v451
        %v470 = vpack.c.b16 %v455, %v452
        %v471 = vpack.c.b16 %v459, %v456
        %v472 = vpack.c.b16 %v460, %v457
        %v473 = vpack.c.b16 %v461, %v458
        %v474 = vpack.c.b16 %v462, %v462
        %v475 = vpack.c.b16 %v463, %v463
        %v476 = vpack.c.b16 %v464, %v464
        %vm486 = vcmask 408576
        %v488 = vsel %vm486, %v412, 0
        %v491 = vsel %vm486, %v413, 0
        %v494 = vsel %vm486, %v414, 0
        %vm496 = vcmask 1040384
        %v498 = vsel %vm496, %v474, 0
        %v501 = vsel %vm496, %v475, 0
        %v504 = vsel %vm496, %v476, 0
        %506 = vmatpush.bf16.msra.mxu0 0
        %507 = vmatpush.bf16.msra.mxu0 0
        %508 = vmatpush.bf16.msra.mxu0 0
        %509 = vmatpush.bf16.msra.mxu0 0
        %510 = vmatpush.bf16.msra.mxu0 %v498
        %511 = vmatpush.bf16.msra.mxu0 %v471
        %512 = vmatpush.bf16.msra.mxu0 %v468
        %513 = vmatpush.bf16.msra.mxu0 %v465
        %514 = vmatmul.bf16.gmra.mxu0 %v488
        %v515 = vpop.f32.mrf.mxu0
        %v516 = vadd.f32 0.0, %v515
        %v517 = vpop.f32.mrf.mxu0
        %v518 = vadd.f32 0.0, %v517
        %519 = vmatmul.bf16.gmra.mxu0 %v491
        %v520 = vpop.f32.mrf.mxu0
        %v521 = vadd.f32 0.0, %v520
        %v522 = vpop.f32.mrf.mxu0
        %v523 = vadd.f32 0.0, %v522
        %524 = vmatmul.bf16.gmra.mxu0 %v494
        %v525 = vpop.f32.mrf.mxu0
        %v526 = vadd.f32 0.0, %v525
        %v527 = vpop.f32.mrf.mxu0
        %528 = vdwg.mxu0
        %529 = vmatpush.bf16.msra.mxu0 0
        %530 = vmatpush.bf16.msra.mxu0 0
        %531 = vmatpush.bf16.msra.mxu0 0
        %532 = vmatpush.bf16.msra.mxu0 0
        %533 = vmatpush.bf16.msra.mxu0 %v501
        %534 = vmatpush.bf16.msra.mxu0 %v472
        %535 = vmatpush.bf16.msra.mxu0 %v469
        %536 = vmatpush.bf16.msra.mxu0 %v466
        %537 = vmatmul.bf16.gmra.mxu0 %v488
        %v538 = vpop.f32.mrf.mxu0
        %v539 = vadd.f32 0.0, %v538
        %v540 = vpop.f32.mrf.mxu0
        %v541 = vadd.f32 0.0, %v540
        %542 = vmatmul.bf16.gmra.mxu0 %v491
        %v543 = vpop.f32.mrf.mxu0
        %v544 = vadd.f32 0.0, %v543
        %v545 = vpop.f32.mrf.mxu0
        %v546 = vadd.f32 0.0, %v545
        %547 = vmatmul.bf16.gmra.mxu0 %v494
        %v548 = vpop.f32.mrf.mxu0
        %v549 = vadd.f32 0.0, %v548
        %v550 = vpop.f32.mrf.mxu0
        %551 = vdwg.mxu0
        %552 = vmatpush.bf16.msra.mxu0 0
        %553 = vmatpush.bf16.msra.mxu0 0
        %554 = vmatpush.bf16.msra.mxu0 0
        %555 = vmatpush.bf16.msra.mxu0 0
        %556 = vmatpush.bf16.msra.mxu0 %v504
        %557 = vmatpush.bf16.msra.mxu0 %v473
        %558 = vmatpush.bf16.msra.mxu0 %v470
        %559 = vmatpush.bf16.msra.mxu0 %v467
        %560 = vmatmul.bf16.gmra.mxu0 %v488
        %v561 = vpop.f32.mrf.mxu0
        %v562 = vadd.f32 0.0, %v561
        %v563 = vpop.f32.mrf.mxu0
        %v564 = vadd.f32 0.0, %v563
        %565 = vmatmul.bf16.gmra.mxu0 %v491
        %v566 = vpop.f32.mrf.mxu0
        %v567 = vadd.f32 0.0, %v566
        %v568 = vpop.f32.mrf.mxu0
        %v569 = vadd.f32 0.0, %v568
        %570 = vmatmul.bf16.gmra.mxu0 %v494
        %v571 = vpop.f32.mrf.mxu0
        %v572 = vadd.f32 0.0, %v571
        %v573 = vpop.f32.mrf.mxu0
        %574 = vdwg.mxu0
        %v589 = vunpack.c.l.b16 %v393
        %v590 = vunpack.c.h.b16 %v393
        %v591 = vunpack.c.l.b16 %v394
        %v592 = vunpack.c.l.b16 %v395
        %v593 = vunpack.c.h.b16 %v395
        %v594 = vunpack.c.l.b16 %v396
        %v595 = vunpack.c.l.b16 %v397
        %v596 = vunpack.c.h.b16 %v397
        %v597 = vunpack.c.l.b16 %v398
        %v598 = vunpack.c.l.b16 %v399
        %v599 = vunpack.c.h.b16 %v399
        %v600 = vunpack.c.l.b16 %v400
        %v601 = vunpack.c.l.b16 %v401
        %v602 = vunpack.c.h.b16 %v401
        %v603 = vunpack.c.l.b16 %v402
        %v604 = vunpack.c.l.b16 %v403
        %v605 = vunpack.c.h.b16 %v403
        %v606 = vunpack.c.l.b16 %v404
        %v607 = vunpack.c.l.b16 %v405
        %v608 = vunpack.c.h.b16 %v405
        %v609 = vunpack.c.l.b16 %v406
        %v610 = vpack.c.b16 %v592, %v589
        %v611 = vpack.c.b16 %v593, %v590
        %v612 = vpack.c.b16 %v594, %v591
        %v613 = vpack.c.b16 %v598, %v595
        %v614 = vpack.c.b16 %v599, %v596
        %v615 = vpack.c.b16 %v600, %v597
        %v616 = vpack.c.b16 %v604, %v601
        %v617 = vpack.c.b16 %v605, %v602
        %v618 = vpack.c.b16 %v606, %v603
        %v619 = vpack.c.b16 %v607, %v607
        %v620 = vpack.c.b16 %v608, %v608
        %v621 = vpack.c.b16 %v609, %v609
        %v632 = vsel %vm486, %v390, 0
        %v635 = vsel %vm486, %v391, 0
        %v638 = vsel %vm486, %v392, 0
        %v641 = vsel %vm496, %v619, 0
        %v644 = vsel %vm496, %v620, 0
        %v647 = vsel %vm496, %v621, 0
        %649 = vmatpush.bf16.msra.mxu0 0
        %650 = vmatpush.bf16.msra.mxu0 0
        %651 = vmatpush.bf16.msra.mxu0 0
        %652 = vmatpush.bf16.msra.mxu0 0
        %653 = vmatpush.bf16.msra.mxu0 %v641
        %654 = vmatpush.bf16.msra.mxu0 %v616
        %655 = vmatpush.bf16.msra.mxu0 %v613
        %656 = vmatpush.bf16.msra.mxu0 %v610
        %657 = vmatmul.bf16.gmra.mxu0 %v632
        %v658 = vpop.f32.mrf.mxu0
        %v659 = vadd.f32 %v516, %v658
        %v660 = vpop.f32.mrf.mxu0
        %v661 = vadd.f32 %v518, %v660
        %662 = vmatmul.bf16.gmra.mxu0 %v635
        %v663 = vpop.f32.mrf.mxu0
        %v664 = vadd.f32 %v521, %v663
        %v665 = vpop.f32.mrf.mxu0
        %v666 = vadd.f32 %v523, %v665
        %667 = vmatmul.bf16.gmra.mxu0 %v638
        %v668 = vpop.f32.mrf.mxu0
        %v669 = vadd.f32 %v526, %v668
        %v670 = vpop.f32.mrf.mxu0
        %671 = vdwg.mxu0
        %672 = vmatpush.bf16.msra.mxu0 0
        %673 = vmatpush.bf16.msra.mxu0 0
        %674 = vmatpush.bf16.msra.mxu0 0
        %675 = vmatpush.bf16.msra.mxu0 0
        %676 = vmatpush.bf16.msra.mxu0 %v644
        %677 = vmatpush.bf16.msra.mxu0 %v617
        %678 = vmatpush.bf16.msra.mxu0 %v614
        %679 = vmatpush.bf16.msra.mxu0 %v611
        %680 = vmatmul.bf16.gmra.mxu0 %v632
        %v681 = vpop.f32.mrf.mxu0
        %v682 = vadd.f32 %v539, %v681
        %v683 = vpop.f32.mrf.mxu0
        %v684 = vadd.f32 %v541, %v683
        %685 = vmatmul.bf16.gmra.mxu0 %v635
        %v686 = vpop.f32.mrf.mxu0
        %v687 = vadd.f32 %v544, %v686
        %v688 = vpop.f32.mrf.mxu0
        %v689 = vadd.f32 %v546, %v688
        %690 = vmatmul.bf16.gmra.mxu0 %v638
        %v691 = vpop.f32.mrf.mxu0
        %v692 = vadd.f32 %v549, %v691
        %v693 = vpop.f32.mrf.mxu0
        %694 = vdwg.mxu0
        %695 = vmatpush.bf16.msra.mxu0 0
        %696 = vmatpush.bf16.msra.mxu0 0
        %697 = vmatpush.bf16.msra.mxu0 0
        %698 = vmatpush.bf16.msra.mxu0 0
        %699 = vmatpush.bf16.msra.mxu0 %v647
        %700 = vmatpush.bf16.msra.mxu0 %v618
        %701 = vmatpush.bf16.msra.mxu0 %v615
        %702 = vmatpush.bf16.msra.mxu0 %v612
        %703 = vmatmul.bf16.gmra.mxu0 %v632
        %v704 = vpop.f32.mrf.mxu0
        %v705 = vadd.f32 %v562, %v704
        %v706 = vpop.f32.mrf.mxu0
        %v707 = vadd.f32 %v564, %v706
        %708 = vmatmul.bf16.gmra.mxu0 %v635
        %v709 = vpop.f32.mrf.mxu0
        %v710 = vadd.f32 %v567, %v709
        %v711 = vpop.f32.mrf.mxu0
        %v712 = vadd.f32 %v569, %v711
        %713 = vmatmul.bf16.gmra.mxu0 %v638
        %v714 = vpop.f32.mrf.mxu0
        %v715 = vadd.f32 %v572, %v714
        %v716 = vpop.f32.mrf.mxu0
        %717 = vdwg.mxu0
        %v718 = vld [vmem:[%s383 + $0x2] sm:$0xff]
        %v719 = vld [vmem:[%s383 + $0xa] sm:$0xff]
        %v720 = vld [vmem:[%s383 + $0x12] sm:$0xff]
        %v721 = vld [vmem:[%s383 + $0x1a] sm:$0xff]
        %v722 = vld [vmem:[%s383 + $0x22] sm:$0xf]
        %v723 = vpack.c.bf16 %v719, %v718
        %v724 = vpack.c.bf16 %v721, %v720
        %v725 = vpack.c.bf16 %v722, %v722
        %s726 = scalar_lea.vmem %s1, 168
        %v727 = vld [vmem:[%s726] sm:$0xff]
        %v728 = vld [vmem:[%s726 + $0x8] sm:$0xf]
        %v729 = vld [vmem:[%s726 + $0xc] sm:$0xff]
        %v730 = vld [vmem:[%s726 + $0x14] sm:$0xf]
        %v731 = vld [vmem:[%s726 + $0x18] sm:$0xff]
        %v732 = vld [vmem:[%s726 + $0x20] sm:$0xf]
        %v733 = vld [vmem:[%s726 + $0x24] sm:$0xff]
        %v734 = vld [vmem:[%s726 + $0x2c] sm:$0xf]
        %v735 = vld [vmem:[%s726 + $0x30] sm:$0xff]
        %v736 = vld [vmem:[%s726 + $0x38] sm:$0xf]
        %v737 = vld [vmem:[%s726 + $0x3c] sm:$0xff]
        %v738 = vld [vmem:[%s726 + $0x44] sm:$0xf]
        %v739 = vld [vmem:[%s726 + $0x48] sm:$0x11]
        %v740 = vld [vmem:[%s726 + $0x50] sm:$0x1]
        %v755 = vunpack.c.l.b16 %v727
        %v756 = vunpack.c.h.b16 %v727
        %v757 = vunpack.c.l.b16 %v728
        %v758 = vunpack.c.l.b16 %v729
        %v759 = vunpack.c.h.b16 %v729
        %v760 = vunpack.c.l.b16 %v730
        %v761 = vunpack.c.l.b16 %v731
        %v762 = vunpack.c.h.b16 %v731
        %v763 = vunpack.c.l.b16 %v732
        %v764 = vunpack.c.l.b16 %v733
        %v765 = vunpack.c.h.b16 %v733
        %v766 = vunpack.c.l.b16 %v734
        %v767 = vunpack.c.l.b16 %v735
        %v768 = vunpack.c.h.b16 %v735
        %v769 = vunpack.c.l.b16 %v736
        %v770 = vunpack.c.l.b16 %v737
        %v771 = vunpack.c.h.b16 %v737
        %v772 = vunpack.c.l.b16 %v738
        %v773 = vunpack.c.l.b16 %v739
        %v774 = vunpack.c.h.b16 %v739
        %v775 = vunpack.c.l.b16 %v740
        %v776 = vpack.c.b16 %v758, %v755
        %v777 = vpack.c.b16 %v759, %v756
        %v778 = vpack.c.b16 %v760, %v757
        %v779 = vpack.c.b16 %v764, %v761
        %v780 = vpack.c.b16 %v765, %v762
        %v781 = vpack.c.b16 %v766, %v763
        %v782 = vpack.c.b16 %v770, %v767
        %v783 = vpack.c.b16 %v771, %v768
        %v784 = vpack.c.b16 %v772, %v769
        %v785 = vpack.c.b16 %v773, %v773
        %v786 = vpack.c.b16 %v774, %v774
        %v787 = vpack.c.b16 %v775, %v775
        %v798 = vsel %vm486, %v723, 0
        %v801 = vsel %vm486, %v724, 0
        %v804 = vsel %vm486, %v725, 0
        %v807 = vsel %vm496, %v785, 0
        %v810 = vsel %vm496, %v786, 0
        %v813 = vsel %vm496, %v787, 0
        %815 = vmatpush.bf16.msra.mxu0 0
        %816 = vmatpush.bf16.msra.mxu0 0
        %817 = vmatpush.bf16.msra.mxu0 0
        %818 = vmatpush.bf16.msra.mxu0 0
        %819 = vmatpush.bf16.msra.mxu0 %v807
        %820 = vmatpush.bf16.msra.mxu0 %v782
        %821 = vmatpush.bf16.msra.mxu0 %v779
        %822 = vmatpush.bf16.msra.mxu0 %v776
        %823 = vmatmul.bf16.gmra.mxu0 %v798
        %v824 = vpop.f32.mrf.mxu0
        %v825 = vadd.f32 0.0, %v824
        %v826 = vpop.f32.mrf.mxu0
        %v827 = vadd.f32 0.0, %v826
        %828 = vmatmul.bf16.gmra.mxu0 %v801
        %v829 = vpop.f32.mrf.mxu0
        %v830 = vadd.f32 0.0, %v829
        %v831 = vpop.f32.mrf.mxu0
        %v832 = vadd.f32 0.0, %v831
        %833 = vmatmul.bf16.gmra.mxu0 %v804
        %v834 = vpop.f32.mrf.mxu0
        %v835 = vadd.f32 0.0, %v834
        %v836 = vpop.f32.mrf.mxu0
        %837 = vdwg.mxu0
        %838 = vmatpush.bf16.msra.mxu0 0
        %839 = vmatpush.bf16.msra.mxu0 0
        %840 = vmatpush.bf16.msra.mxu0 0
        %841 = vmatpush.bf16.msra.mxu0 0
        %842 = vmatpush.bf16.msra.mxu0 %v810
        %843 = vmatpush.bf16.msra.mxu0 %v783
        %844 = vmatpush.bf16.msra.mxu0 %v780
        %845 = vmatpush.bf16.msra.mxu0 %v777
        %846 = vmatmul.bf16.gmra.mxu0 %v798
        %v847 = vpop.f32.mrf.mxu0
        %v848 = vadd.f32 0.0, %v847
        %v849 = vpop.f32.mrf.mxu0
        %v850 = vadd.f32 0.0, %v849
        %851 = vmatmul.bf16.gmra.mxu0 %v801
        %v852 = vpop.f32.mrf.mxu0
        %v853 = vadd.f32 0.0, %v852
        %v854 = vpop.f32.mrf.mxu0
        %v855 = vadd.f32 0.0, %v854
        %856 = vmatmul.bf16.gmra.mxu0 %v804
        %v857 = vpop.f32.mrf.mxu0
        %v858 = vadd.f32 0.0, %v857
        %v859 = vpop.f32.mrf.mxu0
        %860 = vdwg.mxu0
        %861 = vmatpush.bf16.msra.mxu0 0
        %862 = vmatpush.bf16.msra.mxu0 0
        %863 = vmatpush.bf16.msra.mxu0 0
        %864 = vmatpush.bf16.msra.mxu0 0
        %865 = vmatpush.bf16.msra.mxu0 %v813
        %866 = vmatpush.bf16.msra.mxu0 %v784
        %867 = vmatpush.bf16.msra.mxu0 %v781
        %868 = vmatpush.bf16.msra.mxu0 %v778
        %869 = vmatmul.bf16.gmra.mxu0 %v798
        %v870 = vpop.f32.mrf.mxu0
        %v871 = vadd.f32 0.0, %v870
        %v872 = vpop.f32.mrf.mxu0
        %v873 = vadd.f32 0.0, %v872
        %874 = vmatmul.bf16.gmra.mxu0 %v801
        %v875 = vpop.f32.mrf.mxu0
        %v876 = vadd.f32 0.0, %v875
        %v877 = vpop.f32.mrf.mxu0
        %v878 = vadd.f32 0.0, %v877
        %879 = vmatmul.bf16.gmra.mxu0 %v804
        %v880 = vpop.f32.mrf.mxu0
        %v881 = vadd.f32 0.0, %v880
        %v882 = vpop.f32.mrf.mxu0
        %883 = vdwg.mxu0
        %v884 = vadd.f32 %v659, %v825
        %v885 = vadd.f32 %v682, %v848
        %v886 = vadd.f32 %v705, %v871
        %v887 = vadd.f32 %v661, %v827
        %v888 = vadd.f32 %v684, %v850
        %v889 = vadd.f32 %v707, %v873
        %v890 = vadd.f32 %v664, %v830
        %v891 = vadd.f32 %v687, %v853
        %v892 = vadd.f32 %v710, %v876
        %v893 = vadd.f32 %v666, %v832
        %v894 = vadd.f32 %v689, %v855
        %v895 = vadd.f32 %v712, %v878
        %v896 = vadd.f32 %v669, %v835
        %v897 = vadd.f32 %v692, %v858
        %v898 = vadd.f32 %v715, %v881
        %v899 = vld [vmem:[%s2] sm:$0x7]
        %v901 = vperm.slane %v899, 0
        %v902 = vperm.slane %v899, 1
        %v903 = vperm.slane %v899, 2
        %v907 = vadd.f32 %v884, %v901
        %v908 = vadd.f32 %v885, %v902
        %v909 = vadd.f32 %v886, %v903
        %v910 = vadd.f32 %v887, %v901
        %v911 = vadd.f32 %v888, %v902
        %v912 = vadd.f32 %v889, %v903
        %v913 = vadd.f32 %v890, %v901
        %v914 = vadd.f32 %v891, %v902
        %v915 = vadd.f32 %v892, %v903
        %v916 = vadd.f32 %v893, %v901
        %v917 = vadd.f32 %v894, %v902
        %v918 = vadd.f32 %v895, %v903
        %v919 = vadd.f32 %v896, %v901
        %v920 = vadd.f32 %v897, %v902
        %v921 = vadd.f32 %v898, %v903
        %v922 = vmax.f32 %v907, 0.0
        %v923 = vmax.f32 %v908, 0.0
        %v924 = vmax.f32 %v909, 0.0
        %v925 = vmax.f32 %v910, 0.0
        %v926 = vmax.f32 %v911, 0.0
        %v927 = vmax.f32 %v912, 0.0
        %v928 = vmax.f32 %v913, 0.0
        %v929 = vmax.f32 %v914, 0.0
        %v930 = vmax.f32 %v915, 0.0
        %v931 = vmax.f32 %v916, 0.0
        %v932 = vmax.f32 %v917, 0.0
        %v933 = vmax.f32 %v918, 0.0
        %v934 = vmax.f32 %v919, 0.0
        %v935 = vmax.f32 %v920, 0.0
        %v936 = vmax.f32 %v921, 0.0
        %937 = vst [vmem:[#allocation2] sm:$0xff] %v922
        %938 = vst [vmem:[#allocation2 + $0x8] sm:$0xff] %v923
        %vm939 = vcmask 261120
        %940 = vst.msk [vmem:[#allocation2 + $0x10] sm:$0xff] %vm939, %v924
        %941 = vst [vmem:[#allocation2 + $0x18] sm:$0xff] %v925
        %942 = vst [vmem:[#allocation2 + $0x20] sm:$0xff] %v926
        %943 = vst.msk [vmem:[#allocation2 + $0x28] sm:$0xff] %vm939, %v927
        %944 = vst [vmem:[#allocation2 + $0x30] sm:$0xff] %v928
        %945 = vst [vmem:[#allocation2 + $0x38] sm:$0xff] %v929
        %946 = vst.msk [vmem:[#allocation2 + $0x40] sm:$0xff] %vm939, %v930
        %947 = vst [vmem:[#allocation2 + $0x48] sm:$0xff] %v931
        %948 = vst [vmem:[#allocation2 + $0x50] sm:$0xff] %v932
        %949 = vst.msk [vmem:[#allocation2 + $0x58] sm:$0xff] %vm939, %v933
        %950 = vst [vmem:[#allocation2 + $0x60] sm:$0xf] %v934
        %951 = vst [vmem:[#allocation2 + $0x68] sm:$0xf] %v935
        %vm952 = vcmask 257024
        %953 = vst.msk [vmem:[#allocation2 + $0x70] sm:$0xf] %vm952, %v936
        %v954 = vld [vmem:[#allocation2] ss:$8 sm:$0x7]
        %s955 = scalar_lea.vmem [#allocation2], 1
        %v956 = vld [vmem:[%s955] ss:$8 sm:$0x7]
        %v957 = vmax.f32 %v954, %v956
        %959 = vrot.lane.b32.xlu0 %v957, 127
        %v960 = vpop.permute.xlu0 %959
        %v961 = vrot.slane %v960, 1
        %vm962 = vcmask 1039360
        %v963 = vsel %vm962, %v960, %v961
        %v965 = vmax.f32 %v957, %v963
        %v966 = vlaneseq
        %vm967 = vcmp.ge.s32.totalorder %v966, 0
        %vm968 = vcmp.lt.s32.totalorder %v966, 287
        %vm969 = vmand %vm967, %vm968
        %970 = vst.msk [vmem:[#allocation3] ss:$8 sm:$0x7] %vm969, %v965
        %971 = vst.msk [vmem:[#allocation3] ss:$8 sm:$0x0] %vm969, %v965
        %s972 = scalar_lea.vmem [#allocation2], 2
        %v973 = vld [vmem:[%s972] ss:$8 sm:$0x7]
        %s974 = scalar_lea.vmem [#allocation2], 3
        %v975 = vld [vmem:[%s974] ss:$8 sm:$0x7]
        %v976 = vmax.f32 %v973, %v975
        %978 = vrot.lane.b32.xlu0 %v976, 127
        %v979 = vpop.permute.xlu0 %978
        %v980 = vrot.slane %v979, 1
        %v981 = vsel %vm962, %v979, %v980
        %v983 = vmax.f32 %v976, %v981
        %s984 = scalar_lea.vmem [#allocation3], 1
        %985 = vst.msk [vmem:[%s984] ss:$8 sm:$0x7] %vm969, %v983
        %986 = vst.msk [vmem:[%s984] ss:$8 sm:$0x0] %vm969, %v983
        %s987 = scalar_lea.vmem [#allocation2], 4
        %v988 = vld [vmem:[%s987] ss:$8 sm:$0x7]
        %s989 = scalar_lea.vmem [#allocation2], 5
        %v990 = vld [vmem:[%s989] ss:$8 sm:$0x7]
        %v991 = vmax.f32 %v988, %v990
        %993 = vrot.lane.b32.xlu0 %v991, 127
        %v994 = vpop.permute.xlu0 %993
        %v995 = vrot.slane %v994, 1
        %v996 = vsel %vm962, %v994, %v995
        %v998 = vmax.f32 %v991, %v996
        %s999 = scalar_lea.vmem [#allocation3], 2
        %1000 = vst.msk [vmem:[%s999] ss:$8 sm:$0x7] %vm969, %v998
        %1001 = vst.msk [vmem:[%s999] ss:$8 sm:$0x0] %vm969, %v998
        %s1002 = scalar_lea.vmem [#allocation2], 6
        %v1003 = vld [vmem:[%s1002] ss:$8 sm:$0x7]
        %s1004 = scalar_lea.vmem [#allocation2], 7
        %v1005 = vld [vmem:[%s1004] ss:$8 sm:$0x7]
        %v1006 = vmax.f32 %v1003, %v1005
        %1008 = vrot.lane.b32.xlu0 %v1006, 127
        %v1009 = vpop.permute.xlu0 %1008
        %v1010 = vrot.slane %v1009, 1
        %v1011 = vsel %vm962, %v1009, %v1010
        %v1013 = vmax.f32 %v1006, %v1011
        %s1014 = scalar_lea.vmem [#allocation3], 3
        %1015 = vst.msk [vmem:[%s1014] ss:$8 sm:$0x7] %vm969, %v1013
        %1016 = vst.msk [vmem:[%s1014] ss:$8 sm:$0x0] %vm969, %v1013
        %s1017 = scalar_lea.vmem [#allocation2], 24
        %v1018 = vld [vmem:[%s1017] ss:$8 sm:$0x7]
        %s1019 = scalar_lea.vmem [#allocation2], 25
        %v1020 = vld [vmem:[%s1019] ss:$8 sm:$0x7]
        %v1021 = vmax.f32 %v1018, %v1020
        %1023 = vrot.lane.b32.xlu0 %v1021, 127
        %v1024 = vpop.permute.xlu0 %1023
        %v1025 = vrot.slane %v1024, 1
        %v1026 = vsel %vm962, %v1024, %v1025
        %v1028 = vmax.f32 %v1021, %v1026
        %s1029 = scalar_lea.vmem [#allocation3], 4
        %1030 = vst.msk [vmem:[%s1029] ss:$8 sm:$0x7] %vm969, %v1028
        %1031 = vst.msk [vmem:[%s1029] ss:$8 sm:$0x0] %vm969, %v1028
        %s1032 = scalar_lea.vmem [#allocation2], 26
        %v1033 = vld [vmem:[%s1032] ss:$8 sm:$0x7]
        %s1034 = scalar_lea.vmem [#allocation2], 27
        %v1035 = vld [vmem:[%s1034] ss:$8 sm:$0x7]
        %v1036 = vmax.f32 %v1033, %v1035
        %1038 = vrot.lane.b32.xlu0 %v1036, 127
        %v1039 = vpop.permute.xlu0 %1038
        %v1040 = vrot.slane %v1039, 1
        %v1041 = vsel %vm962, %v1039, %v1040
        %v1043 = vmax.f32 %v1036, %v1041
        %s1044 = scalar_lea.vmem [#allocation3], 5
        %1045 = vst.msk [vmem:[%s1044] ss:$8 sm:$0x7] %vm969, %v1043
        %1046 = vst.msk [vmem:[%s1044] ss:$8 sm:$0x0] %vm969, %v1043
        %s1047 = scalar_lea.vmem [#allocation2], 28
        %v1048 = vld [vmem:[%s1047] ss:$8 sm:$0x7]
        %s1049 = scalar_lea.vmem [#allocation2], 29
        %v1050 = vld [vmem:[%s1049] ss:$8 sm:$0x7]
        %v1051 = vmax.f32 %v1048, %v1050
        %1053 = vrot.lane.b32.xlu0 %v1051, 127
        %v1054 = vpop.permute.xlu0 %1053
        %v1055 = vrot.slane %v1054, 1
        %v1056 = vsel %vm962, %v1054, %v1055
        %v1058 = vmax.f32 %v1051, %v1056
        %s1059 = scalar_lea.vmem [#allocation3], 6
        %1060 = vst.msk [vmem:[%s1059] ss:$8 sm:$0x7] %vm969, %v1058
        %1061 = vst.msk [vmem:[%s1059] ss:$8 sm:$0x0] %vm969, %v1058
        %s1062 = scalar_lea.vmem [#allocation2], 30
        %v1063 = vld [vmem:[%s1062] ss:$8 sm:$0x7]
        %s1064 = scalar_lea.vmem [#allocation2], 31
        %v1065 = vld [vmem:[%s1064] ss:$8 sm:$0x7]
        %v1066 = vmax.f32 %v1063, %v1065
        %1068 = vrot.lane.b32.xlu0 %v1066, 127
        %v1069 = vpop.permute.xlu0 %1068
        %v1070 = vrot.slane %v1069, 1
        %v1071 = vsel %vm962, %v1069, %v1070
        %v1073 = vmax.f32 %v1066, %v1071
        %s1074 = scalar_lea.vmem [#allocation3], 7
        %1075 = vst.msk [vmem:[%s1074] ss:$8 sm:$0x7] %vm969, %v1073
        %1076 = vst.msk [vmem:[%s1074] ss:$8 sm:$0x0] %vm969, %v1073
        %s1077 = scalar_lea.vmem [#allocation2], 48
        %v1078 = vld [vmem:[%s1077] ss:$8 sm:$0x7]
        %s1079 = scalar_lea.vmem [#allocation2], 49
        %v1080 = vld [vmem:[%s1079] ss:$8 sm:$0x7]
        %v1081 = vmax.f32 %v1078, %v1080
        %1083 = vrot.lane.b32.xlu0 %v1081, 127
        %v1084 = vpop.permute.xlu0 %1083
        %v1085 = vrot.slane %v1084, 1
        %v1086 = vsel %vm962, %v1084, %v1085
        %v1088 = vmax.f32 %v1081, %v1086
        %s1089 = scalar_lea.vmem [#allocation3], 24
        %1090 = vst.msk [vmem:[%s1089] ss:$8 sm:$0x7] %vm969, %v1088
        %1091 = vst.msk [vmem:[%s1089] ss:$8 sm:$0x0] %vm969, %v1088
        %s1092 = scalar_lea.vmem [#allocation2], 50
        %v1093 = vld [vmem:[%s1092] ss:$8 sm:$0x7]
        %s1094 = scalar_lea.vmem [#allocation2], 51
        %v1095 = vld [vmem:[%s1094] ss:$8 sm:$0x7]
        %v1096 = vmax.f32 %v1093, %v1095
        %1098 = vrot.lane.b32.xlu0 %v1096, 127
        %v1099 = vpop.permute.xlu0 %1098
        %v1100 = vrot.slane %v1099, 1
        %v1101 = vsel %vm962, %v1099, %v1100
        %v1103 = vmax.f32 %v1096, %v1101
        %s1104 = scalar_lea.vmem [#allocation3], 25
        %1105 = vst.msk [vmem:[%s1104] ss:$8 sm:$0x7] %vm969, %v1103
        %1106 = vst.msk [vmem:[%s1104] ss:$8 sm:$0x0] %vm969, %v1103
        %s1107 = scalar_lea.vmem [#allocation2], 52
        %v1108 = vld [vmem:[%s1107] ss:$8 sm:$0x7]
        %s1109 = scalar_lea.vmem [#allocation2], 53
        %v1110 = vld [vmem:[%s1109] ss:$8 sm:$0x7]
        %v1111 = vmax.f32 %v1108, %v1110
        %1113 = vrot.lane.b32.xlu0 %v1111, 127
        %v1114 = vpop.permute.xlu0 %1113
        %v1115 = vrot.slane %v1114, 1
        %v1116 = vsel %vm962, %v1114, %v1115
        %v1118 = vmax.f32 %v1111, %v1116
        %s1119 = scalar_lea.vmem [#allocation3], 26
        %1120 = vst.msk [vmem:[%s1119] ss:$8 sm:$0x7] %vm969, %v1118
        %1121 = vst.msk [vmem:[%s1119] ss:$8 sm:$0x0] %vm969, %v1118
        %s1122 = scalar_lea.vmem [#allocation2], 54
        %v1123 = vld [vmem:[%s1122] ss:$8 sm:$0x7]
        %s1124 = scalar_lea.vmem [#allocation2], 55
        %v1125 = vld [vmem:[%s1124] ss:$8 sm:$0x7]
        %v1126 = vmax.f32 %v1123, %v1125
        %1128 = vrot.lane.b32.xlu0 %v1126, 127
        %v1129 = vpop.permute.xlu0 %1128
        %v1130 = vrot.slane %v1129, 1
        %v1131 = vsel %vm962, %v1129, %v1130
        %v1133 = vmax.f32 %v1126, %v1131
        %s1134 = scalar_lea.vmem [#allocation3], 27
        %1135 = vst.msk [vmem:[%s1134] ss:$8 sm:$0x7] %vm969, %v1133
        %1136 = vst.msk [vmem:[%s1134] ss:$8 sm:$0x0] %vm969, %v1133
        %s1137 = scalar_lea.vmem [#allocation2], 72
        %v1138 = vld [vmem:[%s1137] ss:$8 sm:$0x7]
        %s1139 = scalar_lea.vmem [#allocation2], 73
        %v1140 = vld [vmem:[%s1139] ss:$8 sm:$0x7]
        %v1141 = vmax.f32 %v1138, %v1140
        %1143 = vrot.lane.b32.xlu0 %v1141, 127
        %v1144 = vpop.permute.xlu0 %1143
        %v1145 = vrot.slane %v1144, 1
        %v1146 = vsel %vm962, %v1144, %v1145
        %v1148 = vmax.f32 %v1141, %v1146
        %s1149 = scalar_lea.vmem [#allocation3], 28
        %1150 = vst.msk [vmem:[%s1149] ss:$8 sm:$0x7] %vm969, %v1148
        %1151 = vst.msk [vmem:[%s1149] ss:$8 sm:$0x0] %vm969, %v1148
        %s1152 = scalar_lea.vmem [#allocation2], 74
        %v1153 = vld [vmem:[%s1152] ss:$8 sm:$0x7]
        %s1154 = scalar_lea.vmem [#allocation2], 75
        %v1155 = vld [vmem:[%s1154] ss:$8 sm:$0x7]
        %v1156 = vmax.f32 %v1153, %v1155
        %1158 = vrot.lane.b32.xlu0 %v1156, 127
        %v1159 = vpop.permute.xlu0 %1158
        %v1160 = vrot.slane %v1159, 1
        %v1161 = vsel %vm962, %v1159, %v1160
        %v1163 = vmax.f32 %v1156, %v1161
        %s1164 = scalar_lea.vmem [#allocation3], 29
        %1165 = vst.msk [vmem:[%s1164] ss:$8 sm:$0x7] %vm969, %v1163
        %1166 = vst.msk [vmem:[%s1164] ss:$8 sm:$0x0] %vm969, %v1163
        %s1167 = scalar_lea.vmem [#allocation2], 76
        %v1168 = vld [vmem:[%s1167] ss:$8 sm:$0x7]
        %s1169 = scalar_lea.vmem [#allocation2], 77
        %v1170 = vld [vmem:[%s1169] ss:$8 sm:$0x7]
        %v1171 = vmax.f32 %v1168, %v1170
        %1173 = vrot.lane.b32.xlu0 %v1171, 127
        %v1174 = vpop.permute.xlu0 %1173
        %v1175 = vrot.slane %v1174, 1
        %v1176 = vsel %vm962, %v1174, %v1175
        %v1178 = vmax.f32 %v1171, %v1176
        %s1179 = scalar_lea.vmem [#allocation3], 30
        %1180 = vst.msk [vmem:[%s1179] ss:$8 sm:$0x7] %vm969, %v1178
        %1181 = vst.msk [vmem:[%s1179] ss:$8 sm:$0x0] %vm969, %v1178
        %s1182 = scalar_lea.vmem [#allocation2], 78
        %v1183 = vld [vmem:[%s1182] ss:$8 sm:$0x7]
        %s1184 = scalar_lea.vmem [#allocation2], 79
        %v1185 = vld [vmem:[%s1184] ss:$8 sm:$0x7]
        %v1186 = vmax.f32 %v1183, %v1185
        %1188 = vrot.lane.b32.xlu0 %v1186, 127
        %v1189 = vpop.permute.xlu0 %1188
        %v1190 = vrot.slane %v1189, 1
        %v1191 = vsel %vm962, %v1189, %v1190
        %v1193 = vmax.f32 %v1186, %v1191
        %s1194 = scalar_lea.vmem [#allocation3], 31
        %1195 = vst.msk [vmem:[%s1194] ss:$8 sm:$0x7] %vm969, %v1193
        %1196 = vst.msk [vmem:[%s1194] ss:$8 sm:$0x0] %vm969, %v1193
        %s1197 = scalar_lea.vmem [#allocation2], 96
        %v1198 = vld [vmem:[%s1197] ss:$8 sm:$0x7]
        %s1199 = scalar_lea.vmem [#allocation2], 97
        %v1200 = vld [vmem:[%s1199] ss:$8 sm:$0x7]
        %v1201 = vmax.f32 %v1198, %v1200
        %1203 = vrot.lane.b32.xlu0 %v1201, 127
        %v1204 = vpop.permute.xlu0 %1203
        %v1205 = vrot.slane %v1204, 1
        %v1206 = vsel %vm962, %v1204, %v1205
        %v1208 = vmax.f32 %v1201, %v1206
        %s1209 = scalar_lea.vmem [#allocation3], 48
        %1210 = vst.msk [vmem:[%s1209] ss:$8 sm:$0x7] %vm969, %v1208
        %1211 = vst.msk [vmem:[%s1209] ss:$8 sm:$0x0] %vm969, %v1208
        %s1212 = scalar_lea.vmem [#allocation2], 98
        %v1213 = vld [vmem:[%s1212] ss:$8 sm:$0x7]
        %s1214 = scalar_lea.vmem [#allocation2], 99
        %v1215 = vld [vmem:[%s1214] ss:$8 sm:$0x7]
        %v1216 = vmax.f32 %v1213, %v1215
        %1218 = vrot.lane.b32.xlu0 %v1216, 127
        %v1219 = vpop.permute.xlu0 %1218
        %v1220 = vrot.slane %v1219, 1
        %v1221 = vsel %vm962, %v1219, %v1220
        %v1223 = vmax.f32 %v1216, %v1221
        %s1224 = scalar_lea.vmem [#allocation3], 49
        %1225 = vst.msk [vmem:[%s1224] ss:$8 sm:$0x7] %vm969, %v1223
        %1226 = vst.msk [vmem:[%s1224] ss:$8 sm:$0x0] %vm969, %v1223
        %v1227 = vld [vmem:[#allocation3] sm:$0xff]
        %v1228 = vld [vmem:[#allocation3 + $0x8] sm:$0xff]
        %v1229 = vld [vmem:[#allocation3 + $0x10] sm:$0xff]
        %v1230 = vld [vmem:[#allocation3 + $0x18] sm:$0xff]
        %v1231 = vld [vmem:[#allocation3 + $0x20] sm:$0xff]
        %v1232 = vld [vmem:[#allocation3 + $0x28] sm:$0xff]
        %v1233 = vpack.c.bf16 %v1230, %v1227
        %v1234 = vpack.c.bf16 %v1231, %v1228
        %v1235 = vpack.c.bf16 %v1232, %v1229
        %v1236 = vld [vmem:[%s3] sm:$0xff]
        %v1237 = vld [vmem:[%s3 + $0x8] sm:$0xf]
        %v1238 = vld [vmem:[%s3 + $0xc] sm:$0xff]
        %v1239 = vld [vmem:[%s3 + $0x14] sm:$0xf]
        %v1240 = vld [vmem:[%s3 + $0x18] sm:$0xff]
        %v1241 = vld [vmem:[%s3 + $0x20] sm:$0xf]
        %v1242 = vld [vmem:[%s3 + $0x24] sm:$0xff]
        %v1243 = vld [vmem:[%s3 + $0x2c] sm:$0xf]
        %v1244 = vld [vmem:[%s3 + $0x30] sm:$0xff]
        %v1245 = vld [vmem:[%s3 + $0x38] sm:$0xf]
        %v1246 = vld [vmem:[%s3 + $0x3c] sm:$0xff]
        %v1247 = vld [vmem:[%s3 + $0x44] sm:$0xf]
        %v1248 = vld [vmem:[%s3 + $0x48] sm:$0xff]
        %v1249 = vld [vmem:[%s3 + $0x50] sm:$0xf]
        %v1250 = vld [vmem:[%s3 + $0x54] sm:$0xff]
        %v1251 = vld [vmem:[%s3 + $0x5c] sm:$0xf]
        %v1252 = vld [vmem:[%s3 + $0x60] sm:$0xff]
        %v1253 = vld [vmem:[%s3 + $0x68] sm:$0xf]
        %v1254 = vld [vmem:[%s3 + $0x6c] sm:$0xff]
        %v1255 = vld [vmem:[%s3 + $0x74] sm:$0xf]
        %v1256 = vld [vmem:[%s3 + $0x78] sm:$0xff]
        %v1257 = vld [vmem:[%s3 + $0x80] sm:$0xf]
        %v1258 = vld [vmem:[%s3 + $0x84] sm:$0xff]
        %v1259 = vld [vmem:[%s3 + $0x8c] sm:$0xf]
        %v1260 = vld [vmem:[%s3 + $0x90] sm:$0xff]
        %v1261 = vld [vmem:[%s3 + $0x98] sm:$0xf]
        %v1262 = vld [vmem:[%s3 + $0x9c] sm:$0xff]
        %v1263 = vld [vmem:[%s3 + $0xa4] sm:$0xf]
        %v1264 = vld [vmem:[%s3 + $0xa8] sm:$0xff]
        %v1265 = vld [vmem:[%s3 + $0xb0] sm:$0xf]
        %v1266 = vld [vmem:[%s3 + $0xb4] sm:$0xff]
        %v1267 = vld [vmem:[%s3 + $0xbc] sm:$0xf]
        %v1268 = vld [vmem:[%s3 + $0xc0] sm:$0xff]
        %v1269 = vld [vmem:[%s3 + $0xc8] sm:$0xf]
        %v1270 = vld [vmem:[%s3 + $0xcc] sm:$0xff]
        %v1271 = vld [vmem:[%s3 + $0xd4] sm:$0xf]
        %v1272 = vld [vmem:[%s3 + $0xd8] sm:$0xff]
        %v1273 = vld [vmem:[%s3 + $0xe0] sm:$0xf]
        %v1274 = vld [vmem:[%s3 + $0xe4] sm:$0xff]
        %v1275 = vld [vmem:[%s3 + $0xec] sm:$0xf]
        %v1276 = vld [vmem:[%s3 + $0xf0] sm:$0xff]
        %v1277 = vld [vmem:[%s3 + $0xf8] sm:$0xf]
        %v1278 = vld [vmem:[%s3 + $0xfc] sm:$0xff]
        %v1279 = vld [vmem:[%s3 + $0x104] sm:$0xf]
        %v1280 = vld [vmem:[%s3 + $0x108] sm:$0xff]
        %v1281 = vld [vmem:[%s3 + $0x110] sm:$0xf]
        %v1282 = vld [vmem:[%s3 + $0x114] sm:$0xff]
        %v1283 = vld [vmem:[%s3 + $0x11c] sm:$0xf]
        %v1284 = vld [vmem:[%s3 + $0x120] sm:$0xff]
        %v1285 = vld [vmem:[%s3 + $0x128] sm:$0xf]
        %v1286 = vld [vmem:[%s3 + $0x12c] sm:$0xff]
        %v1287 = vld [vmem:[%s3 + $0x134] sm:$0xf]
        %v1288 = vld [vmem:[%s3 + $0x138] sm:$0xff]
        %v1289 = vld [vmem:[%s3 + $0x140] sm:$0xf]
        %v1290 = vld [vmem:[%s3 + $0x144] sm:$0xff]
        %v1291 = vld [vmem:[%s3 + $0x14c] sm:$0xf]
        %v1292 = vld [vmem:[%s3 + $0x150] sm:$0xff]
        %v1293 = vld [vmem:[%s3 + $0x158] sm:$0xf]
        %v1294 = vld [vmem:[%s3 + $0x15c] sm:$0xff]
        %v1295 = vld [vmem:[%s3 + $0x164] sm:$0xf]
        %v1296 = vld [vmem:[%s3 + $0x168] sm:$0xff]
        %v1297 = vld [vmem:[%s3 + $0x170] sm:$0xf]
        %v1298 = vld [vmem:[%s3 + $0x174] sm:$0xff]
        %v1299 = vld [vmem:[%s3 + $0x17c] sm:$0xf]
        %v1300 = vld [vmem:[%s3 + $0x180] sm:$0xff]
        %v1301 = vld [vmem:[%s3 + $0x188] sm:$0xf]
        %v1302 = vld [vmem:[%s3 + $0x18c] sm:$0xff]
        %v1303 = vld [vmem:[%s3 + $0x194] sm:$0xf]
        %v1304 = vld [vmem:[%s3 + $0x198] sm:$0xff]
        %v1305 = vld [vmem:[%s3 + $0x1a0] sm:$0xf]
        %v1306 = vld [vmem:[%s3 + $0x1a4] sm:$0xff]
        %v1307 = vld [vmem:[%s3 + $0x1ac] sm:$0xf]
        %v1308 = vld [vmem:[#allocation3] sm:$0xfe]
        %v1309 = vld [vmem:[#allocation3 + $0x8] sm:$0xfe]
        %v1310 = vld [vmem:[#allocation3 + $0x10] sm:$0xfe]
        %v1311 = vld [vmem:[#allocation3 + $0x30] sm:$0x1]
        %v1312 = vld [vmem:[#allocation3 + $0x38] sm:$0x1]
        %v1313 = vld [vmem:[#allocation3 + $0x40] sm:$0x1]
        %v1314 = vpack.c.bf16 %v1230, %v1308
        %v1315 = vpack.c.bf16 %v1231, %v1309
        %v1316 = vpack.c.bf16 %v1232, %v1310
        %v1317 = vpack.c.bf16 %v1311, %v1311
        %v1318 = vpack.c.bf16 %v1312, %v1312
        %v1319 = vpack.c.bf16 %v1313, %v1313
        %s1320 = scalar_lea.vmem %s3, 432
        %v1321 = vld [vmem:[%s1320] sm:$0xff]
        %v1322 = vld [vmem:[%s1320 + $0x8] sm:$0xf]
        %v1323 = vld [vmem:[%s1320 + $0xc] sm:$0xff]
        %v1324 = vld [vmem:[%s1320 + $0x14] sm:$0xf]
        %v1325 = vld [vmem:[%s1320 + $0x18] sm:$0xff]
        %v1326 = vld [vmem:[%s1320 + $0x20] sm:$0xf]
        %v1327 = vld [vmem:[%s1320 + $0x24] sm:$0xff]
        %v1328 = vld [vmem:[%s1320 + $0x2c] sm:$0xf]
        %v1329 = vld [vmem:[%s1320 + $0x30] sm:$0xff]
        %v1330 = vld [vmem:[%s1320 + $0x38] sm:$0xf]
        %v1331 = vld [vmem:[%s1320 + $0x3c] sm:$0xff]
        %v1332 = vld [vmem:[%s1320 + $0x44] sm:$0xf]
        %v1333 = vld [vmem:[%s1320 + $0x48] sm:$0xff]
        %v1334 = vld [vmem:[%s1320 + $0x50] sm:$0xf]
        %v1335 = vld [vmem:[%s1320 + $0x54] sm:$0xff]
        %v1336 = vld [vmem:[%s1320 + $0x5c] sm:$0xf]
        %v1337 = vld [vmem:[%s1320 + $0x60] sm:$0xff]
        %v1338 = vld [vmem:[%s1320 + $0x68] sm:$0xf]
        %v1339 = vld [vmem:[%s1320 + $0x6c] sm:$0xff]
        %v1340 = vld [vmem:[%s1320 + $0x74] sm:$0xf]
        %v1341 = vld [vmem:[%s1320 + $0x78] sm:$0xff]
        %v1342 = vld [vmem:[%s1320 + $0x80] sm:$0xf]
        %v1343 = vld [vmem:[%s1320 + $0x84] sm:$0xff]
        %v1344 = vld [vmem:[%s1320 + $0x8c] sm:$0xf]
        %v1345 = vld [vmem:[%s1320 + $0x90] sm:$0xff]
        %v1346 = vld [vmem:[%s1320 + $0x98] sm:$0xf]
        %v1347 = vld [vmem:[%s1320 + $0x9c] sm:$0xff]
        %v1348 = vld [vmem:[%s1320 + $0xa4] sm:$0xf]
        %v1349 = vld [vmem:[%s1320 + $0xa8] sm:$0xff]
        %v1350 = vld [vmem:[%s1320 + $0xb0] sm:$0xf]
        %v1351 = vld [vmem:[%s1320 + $0xb4] sm:$0xff]
        %v1352 = vld [vmem:[%s1320 + $0xbc] sm:$0xf]
        %v1353 = vld [vmem:[%s1320 + $0xc0] sm:$0xff]
        %v1354 = vld [vmem:[%s1320 + $0xc8] sm:$0xf]
        %v1355 = vld [vmem:[%s1320 + $0xcc] sm:$0xff]
        %v1356 = vld [vmem:[%s1320 + $0xd4] sm:$0xf]
        %v1357 = vld [vmem:[%s1320 + $0xd8] sm:$0xff]
        %v1358 = vld [vmem:[%s1320 + $0xe0] sm:$0xf]
        %v1359 = vld [vmem:[%s1320 + $0xe4] sm:$0xff]
        %v1360 = vld [vmem:[%s1320 + $0xec] sm:$0xf]
        %v1361 = vld [vmem:[%s1320 + $0xf0] sm:$0xff]
        %v1362 = vld [vmem:[%s1320 + $0xf8] sm:$0xf]
        %v1363 = vld [vmem:[%s1320 + $0xfc] sm:$0xff]
        %v1364 = vld [vmem:[%s1320 + $0x104] sm:$0xf]
        %v1365 = vld [vmem:[%s1320 + $0x108] sm:$0xff]
        %v1366 = vld [vmem:[%s1320 + $0x110] sm:$0xf]
        %v1367 = vld [vmem:[%s1320 + $0x114] sm:$0xff]
        %v1368 = vld [vmem:[%s1320 + $0x11c] sm:$0xf]
        %v1369 = vld [vmem:[%s1320 + $0x120] sm:$0xff]
        %v1370 = vld [vmem:[%s1320 + $0x128] sm:$0xf]
        %v1371 = vld [vmem:[%s1320 + $0x12c] sm:$0xff]
        %v1372 = vld [vmem:[%s1320 + $0x134] sm:$0xf]
        %v1373 = vld [vmem:[%s1320 + $0x138] sm:$0xff]
        %v1374 = vld [vmem:[%s1320 + $0x140] sm:$0xf]
        %v1375 = vld [vmem:[%s1320 + $0x144] sm:$0xff]
        %v1376 = vld [vmem:[%s1320 + $0x14c] sm:$0xf]
        %v1377 = vld [vmem:[%s1320 + $0x150] sm:$0xff]
        %v1378 = vld [vmem:[%s1320 + $0x158] sm:$0xf]
        %v1379 = vld [vmem:[%s1320 + $0x15c] sm:$0xff]
        %v1380 = vld [vmem:[%s1320 + $0x164] sm:$0xf]
        %v1381 = vld [vmem:[%s1320 + $0x168] sm:$0xff]
        %v1382 = vld [vmem:[%s1320 + $0x170] sm:$0xf]
        %v1383 = vld [vmem:[%s1320 + $0x174] sm:$0xff]
        %v1384 = vld [vmem:[%s1320 + $0x17c] sm:$0xf]
        %v1385 = vld [vmem:[%s1320 + $0x180] sm:$0xff]
        %v1386 = vld [vmem:[%s1320 + $0x188] sm:$0xf]
        %v1387 = vld [vmem:[%s1320 + $0x18c] sm:$0xff]
        %v1388 = vld [vmem:[%s1320 + $0x194] sm:$0xf]
        %v1389 = vld [vmem:[%s1320 + $0x198] sm:$0xff]
        %v1390 = vld [vmem:[%s1320 + $0x1a0] sm:$0xf]
        %v1391 = vld [vmem:[%s1320 + $0x1a4] sm:$0xff]
        %v1392 = vld [vmem:[%s1320 + $0x1ac] sm:$0xf]
        %vm1393 = vsmask.f32 7424
        %v1395 = vshrl.u32 %v1314, 16
        %v1397 = vshll.u32 %v1314, 16
        %v1399 = vrot.slane %v1397, 1
        %v1400 = vor.u32 %v1395, %v1399
        %v1402 = vshll.u32 %v1317, 16
        %v1404 = vrot.slane %v1402, 1
        %v1405 = vsel %vm1393, %v1400, %v1404
        %v1407 = vshrl.u32 %v1315, 16
        %v1409 = vshll.u32 %v1315, 16
        %v1411 = vrot.slane %v1409, 1
        %v1412 = vor.u32 %v1407, %v1411
        %v1414 = vshll.u32 %v1318, 16
        %v1416 = vrot.slane %v1414, 1
        %v1417 = vsel %vm1393, %v1412, %v1416
        %v1419 = vshrl.u32 %v1316, 16
        %v1421 = vshll.u32 %v1316, 16
        %v1423 = vrot.slane %v1421, 1
        %v1424 = vor.u32 %v1419, %v1423
        %v1426 = vshll.u32 %v1319, 16
        %v1428 = vrot.slane %v1426, 1
        %v1429 = vsel %vm1393, %v1424, %v1428
        %v1504 = vunpack.c.l.b16 %v1321
        %v1505 = vunpack.c.h.b16 %v1321
        %v1506 = vunpack.c.l.b16 %v1322
        %v1507 = vunpack.c.l.b16 %v1323
        %v1508 = vunpack.c.h.b16 %v1323
        %v1509 = vunpack.c.l.b16 %v1324
        %v1510 = vunpack.c.l.b16 %v1325
        %v1511 = vunpack.c.h.b16 %v1325
        %v1512 = vunpack.c.l.b16 %v1326
        %v1513 = vunpack.c.l.b16 %v1327
        %v1514 = vunpack.c.h.b16 %v1327
        %v1515 = vunpack.c.l.b16 %v1328
        %v1516 = vunpack.c.l.b16 %v1329
        %v1517 = vunpack.c.h.b16 %v1329
        %v1518 = vunpack.c.l.b16 %v1330
        %v1519 = vunpack.c.l.b16 %v1331
        %v1520 = vunpack.c.h.b16 %v1331
        %v1521 = vunpack.c.l.b16 %v1332
        %v1522 = vunpack.c.l.b16 %v1333
        %v1523 = vunpack.c.h.b16 %v1333
        %v1524 = vunpack.c.l.b16 %v1334
        %v1525 = vunpack.c.l.b16 %v1335
        %v1526 = vunpack.c.h.b16 %v1335
        %v1527 = vunpack.c.l.b16 %v1336
        %v1528 = vunpack.c.l.b16 %v1337
        %v1529 = vunpack.c.h.b16 %v1337
        %v1530 = vunpack.c.l.b16 %v1338
        %v1531 = vunpack.c.l.b16 %v1339
        %v1532 = vunpack.c.h.b16 %v1339
        %v1533 = vunpack.c.l.b16 %v1340
        %v1534 = vunpack.c.l.b16 %v1341
        %v1535 = vunpack.c.h.b16 %v1341
        %v1536 = vunpack.c.l.b16 %v1342
        %v1537 = vunpack.c.l.b16 %v1343
        %v1538 = vunpack.c.h.b16 %v1343
        %v1539 = vunpack.c.l.b16 %v1344
        %v1540 = vunpack.c.l.b16 %v1345
        %v1541 = vunpack.c.h.b16 %v1345
        %v1542 = vunpack.c.l.b16 %v1346
        %v1543 = vunpack.c.l.b16 %v1347
        %v1544 = vunpack.c.h.b16 %v1347
        %v1545 = vunpack.c.l.b16 %v1348
        %v1546 = vunpack.c.l.b16 %v1349
        %v1547 = vunpack.c.h.b16 %v1349
        %v1548 = vunpack.c.l.b16 %v1350
        %v1549 = vunpack.c.l.b16 %v1351
        %v1550 = vunpack.c.h.b16 %v1351
        %v1551 = vunpack.c.l.b16 %v1352
        %v1552 = vunpack.c.l.b16 %v1353
        %v1553 = vunpack.c.h.b16 %v1353
        %v1554 = vunpack.c.l.b16 %v1354
        %v1555 = vunpack.c.l.b16 %v1355
        %v1556 = vunpack.c.h.b16 %v1355
        %v1557 = vunpack.c.l.b16 %v1356
        %v1558 = vunpack.c.l.b16 %v1357
        %v1559 = vunpack.c.h.b16 %v1357
        %v1560 = vunpack.c.l.b16 %v1358
        %v1561 = vunpack.c.l.b16 %v1359
        %v1562 = vunpack.c.h.b16 %v1359
        %v1563 = vunpack.c.l.b16 %v1360
        %v1564 = vunpack.c.l.b16 %v1361
        %v1565 = vunpack.c.h.b16 %v1361
        %v1566 = vunpack.c.l.b16 %v1362
        %v1567 = vunpack.c.l.b16 %v1363
        %v1568 = vunpack.c.h.b16 %v1363
        %v1569 = vunpack.c.l.b16 %v1364
        %v1570 = vunpack.c.l.b16 %v1365
        %v1571 = vunpack.c.h.b16 %v1365
        %v1572 = vunpack.c.l.b16 %v1366
        %v1573 = vunpack.c.l.b16 %v1367
        %v1574 = vunpack.c.h.b16 %v1367
        %v1575 = vunpack.c.l.b16 %v1368
        %v1576 = vunpack.c.l.b16 %v1369
        %v1577 = vunpack.c.h.b16 %v1369
        %v1578 = vunpack.c.l.b16 %v1370
        %v1579 = vunpack.c.l.b16 %v1371
        %v1580 = vunpack.c.h.b16 %v1371
        %v1581 = vunpack.c.l.b16 %v1372
        %v1582 = vunpack.c.l.b16 %v1373
        %v1583 = vunpack.c.h.b16 %v1373
        %v1584 = vunpack.c.l.b16 %v1374
        %v1585 = vunpack.c.l.b16 %v1375
        %v1586 = vunpack.c.h.b16 %v1375
        %v1587 = vunpack.c.l.b16 %v1376
        %v1588 = vunpack.c.l.b16 %v1377
        %v1589 = vunpack.c.h.b16 %v1377
        %v1590 = vunpack.c.l.b16 %v1378
        %v1591 = vunpack.c.l.b16 %v1379
        %v1592 = vunpack.c.h.b16 %v1379
        %v1593 = vunpack.c.l.b16 %v1380
        %v1594 = vunpack.c.l.b16 %v1381
        %v1595 = vunpack.c.h.b16 %v1381
        %v1596 = vunpack.c.l.b16 %v1382
        %v1597 = vunpack.c.l.b16 %v1383
        %v1598 = vunpack.c.h.b16 %v1383
        %v1599 = vunpack.c.l.b16 %v1384
        %v1600 = vunpack.c.l.b16 %v1385
        %v1601 = vunpack.c.h.b16 %v1385
        %v1602 = vunpack.c.l.b16 %v1386
        %v1603 = vunpack.c.l.b16 %v1387
        %v1604 = vunpack.c.h.b16 %v1387
        %v1605 = vunpack.c.l.b16 %v1388
        %v1606 = vunpack.c.l.b16 %v1389
        %v1607 = vunpack.c.h.b16 %v1389
        %v1608 = vunpack.c.l.b16 %v1390
        %v1609 = vunpack.c.l.b16 %v1391
        %v1610 = vunpack.c.h.b16 %v1391
        %v1611 = vunpack.c.l.b16 %v1392
        %v1612 = vpack.c.b16 %v1507, %v1504
        %v1613 = vpack.c.b16 %v1508, %v1505
        %v1614 = vpack.c.b16 %v1509, %v1506
        %v1615 = vpack.c.b16 %v1513, %v1510
        %v1616 = vpack.c.b16 %v1514, %v1511
        %v1617 = vpack.c.b16 %v1515, %v1512
        %v1618 = vpack.c.b16 %v1519, %v1516
        %v1619 = vpack.c.b16 %v1520, %v1517
        %v1620 = vpack.c.b16 %v1521, %v1518
        %v1621 = vpack.c.b16 %v1525, %v1522
        %v1622 = vpack.c.b16 %v1526, %v1523
        %v1623 = vpack.c.b16 %v1527, %v1524
        %v1624 = vpack.c.b16 %v1531, %v1528
        %v1625 = vpack.c.b16 %v1532, %v1529
        %v1626 = vpack.c.b16 %v1533, %v1530
        %v1627 = vpack.c.b16 %v1537, %v1534
        %v1628 = vpack.c.b16 %v1538, %v1535
        %v1629 = vpack.c.b16 %v1539, %v1536
        %v1630 = vpack.c.b16 %v1543, %v1540
        %v1631 = vpack.c.b16 %v1544, %v1541
        %v1632 = vpack.c.b16 %v1545, %v1542
        %v1633 = vpack.c.b16 %v1549, %v1546
        %v1634 = vpack.c.b16 %v1550, %v1547
        %v1635 = vpack.c.b16 %v1551, %v1548
        %v1636 = vpack.c.b16 %v1555, %v1552
        %v1637 = vpack.c.b16 %v1556, %v1553
        %v1638 = vpack.c.b16 %v1557, %v1554
        %v1639 = vpack.c.b16 %v1561, %v1558
        %v1640 = vpack.c.b16 %v1562, %v1559
        %v1641 = vpack.c.b16 %v1563, %v1560
        %v1642 = vpack.c.b16 %v1567, %v1564
        %v1643 = vpack.c.b16 %v1568, %v1565
        %v1644 = vpack.c.b16 %v1569, %v1566
        %v1645 = vpack.c.b16 %v1573, %v1570
        %v1646 = vpack.c.b16 %v1574, %v1571
        %v1647 = vpack.c.b16 %v1575, %v1572
        %v1648 = vpack.c.b16 %v1579, %v1576
        %v1649 = vpack.c.b16 %v1580, %v1577
        %v1650 = vpack.c.b16 %v1581, %v1578
        %v1651 = vpack.c.b16 %v1585, %v1582
        %v1652 = vpack.c.b16 %v1586, %v1583
        %v1653 = vpack.c.b16 %v1587, %v1584
        %v1654 = vpack.c.b16 %v1591, %v1588
        %v1655 = vpack.c.b16 %v1592, %v1589
        %v1656 = vpack.c.b16 %v1593, %v1590
        %v1657 = vpack.c.b16 %v1597, %v1594
        %v1658 = vpack.c.b16 %v1598, %v1595
        %v1659 = vpack.c.b16 %v1599, %v1596
        %v1660 = vpack.c.b16 %v1603, %v1600
        %v1661 = vpack.c.b16 %v1604, %v1601
        %v1662 = vpack.c.b16 %v1605, %v1602
        %v1663 = vpack.c.b16 %v1609, %v1606
        %v1664 = vpack.c.b16 %v1610, %v1607
        %v1665 = vpack.c.b16 %v1611, %v1608
        %vm1717 = vcmask 252928
        %v1719 = vsel %vm1717, %v1429, 0
        %vm1721 = vcmask 1046528
        %vm1722 = vcmask 1047552
        %v1723 = vsel %vm1721, 4294967295, 65535
        %v1724 = vsel %vm1722, %v1723, 0
        %v1726 = vand.u32 %v1663, %v1724
        %v1729 = vand.u32 %v1664, %v1724
        %v1732 = vand.u32 %v1665, %v1724
        %1734 = vmatpush.bf16.msra.mxu0 %v1633
        %1735 = vmatpush.bf16.msra.mxu0 %v1630
        %1736 = vmatpush.bf16.msra.mxu0 %v1627
        %1737 = vmatpush.bf16.msra.mxu0 %v1624
        %1738 = vmatpush.bf16.msra.mxu0 %v1621
        %1739 = vmatpush.bf16.msra.mxu0 %v1618
        %1740 = vmatpush.bf16.msra.mxu0 %v1615
        %1741 = vmatpush.bf16.msra.mxu0 %v1612
        %1742 = vmatmul.bf16.gmra.mxu0 %v1405
        %v1743 = vpop.f32.mrf.mxu0
        %v1744 = vadd.f32 0.0, %v1743
        %v1745 = vpop.f32.mrf.mxu0
        %v1746 = vadd.f32 0.0, %v1745
        %1747 = vdwg.mxu0
        %1748 = vmatpush.bf16.msra.mxu0 %v1657
        %1749 = vmatpush.bf16.msra.mxu0 %v1654
        %1750 = vmatpush.bf16.msra.mxu0 %v1651
        %1751 = vmatpush.bf16.msra.mxu0 %v1648
        %1752 = vmatpush.bf16.msra.mxu0 %v1645
        %1753 = vmatpush.bf16.msra.mxu0 %v1642
        %1754 = vmatpush.bf16.msra.mxu0 %v1639
        %1755 = vmatpush.bf16.msra.mxu0 %v1636
        %1756 = vmatmul.bf16.gmra.mxu0 %v1417
        %v1757 = vpop.f32.mrf.mxu0
        %v1758 = vadd.f32 %v1744, %v1757
        %v1759 = vpop.f32.mrf.mxu0
        %v1760 = vadd.f32 %v1746, %v1759
        %1761 = vdwg.mxu0
        %1762 = vmatpush.bf16.msra.mxu0 0
        %1763 = vmatpush.bf16.msra.mxu0 0
        %1764 = vmatpush.bf16.msra.mxu0 0
        %1765 = vmatpush.bf16.msra.mxu0 0
        %1766 = vmatpush.bf16.msra.mxu0 0
        %1767 = vmatpush.bf16.msra.mxu0 0
        %1768 = vmatpush.bf16.msra.mxu0 %v1726
        %1769 = vmatpush.bf16.msra.mxu0 %v1660
        %1770 = vmatmul.bf16.gmra.mxu0 %v1719
        %v1771 = vpop.f32.mrf.mxu0
        %v1772 = vadd.f32 %v1758, %v1771
        %v1773 = vpop.f32.mrf.mxu0
        %v1774 = vadd.f32 %v1760, %v1773
        %1775 = vdwg.mxu0
        %1776 = vmatpush.bf16.msra.mxu0 %v1634
        %1777 = vmatpush.bf16.msra.mxu0 %v1631
        %1778 = vmatpush.bf16.msra.mxu0 %v1628
        %1779 = vmatpush.bf16.msra.mxu0 %v1625
        %1780 = vmatpush.bf16.msra.mxu0 %v1622
        %1781 = vmatpush.bf16.msra.mxu0 %v1619
        %1782 = vmatpush.bf16.msra.mxu0 %v1616
        %1783 = vmatpush.bf16.msra.mxu0 %v1613
        %1784 = vmatmul.bf16.gmra.mxu0 %v1405
        %v1785 = vpop.f32.mrf.mxu0
        %v1786 = vadd.f32 0.0, %v1785
        %v1787 = vpop.f32.mrf.mxu0
        %v1788 = vadd.f32 0.0, %v1787
        %1789 = vdwg.mxu0
        %1790 = vmatpush.bf16.msra.mxu0 %v1658
        %1791 = vmatpush.bf16.msra.mxu0 %v1655
        %1792 = vmatpush.bf16.msra.mxu0 %v1652
        %1793 = vmatpush.bf16.msra.mxu0 %v1649
        %1794 = vmatpush.bf16.msra.mxu0 %v1646
        %1795 = vmatpush.bf16.msra.mxu0 %v1643
        %1796 = vmatpush.bf16.msra.mxu0 %v1640
        %1797 = vmatpush.bf16.msra.mxu0 %v1637
        %1798 = vmatmul.bf16.gmra.mxu0 %v1417
        %v1799 = vpop.f32.mrf.mxu0
        %v1800 = vadd.f32 %v1786, %v1799
        %v1801 = vpop.f32.mrf.mxu0
        %v1802 = vadd.f32 %v1788, %v1801
        %1803 = vdwg.mxu0
        %1804 = vmatpush.bf16.msra.mxu0 0
        %1805 = vmatpush.bf16.msra.mxu0 0
        %1806 = vmatpush.bf16.msra.mxu0 0
        %1807 = vmatpush.bf16.msra.mxu0 0
        %1808 = vmatpush.bf16.msra.mxu0 0
        %1809 = vmatpush.bf16.msra.mxu0 0
        %1810 = vmatpush.bf16.msra.mxu0 %v1729
        %1811 = vmatpush.bf16.msra.mxu0 %v1661
        %1812 = vmatmul.bf16.gmra.mxu0 %v1719
        %v1813 = vpop.f32.mrf.mxu0
        %v1814 = vadd.f32 %v1800, %v1813
        %v1815 = vpop.f32.mrf.mxu0
        %v1816 = vadd.f32 %v1802, %v1815
        %1817 = vdwg.mxu0
        %1818 = vmatpush.bf16.msra.mxu0 %v1635
        %1819 = vmatpush.bf16.msra.mxu0 %v1632
        %1820 = vmatpush.bf16.msra.mxu0 %v1629
        %1821 = vmatpush.bf16.msra.mxu0 %v1626
        %1822 = vmatpush.bf16.msra.mxu0 %v1623
        %1823 = vmatpush.bf16.msra.mxu0 %v1620
        %1824 = vmatpush.bf16.msra.mxu0 %v1617
        %1825 = vmatpush.bf16.msra.mxu0 %v1614
        %1826 = vmatmul.bf16.gmra.mxu0 %v1405
        %v1827 = vpop.f32.mrf.mxu0
        %v1828 = vadd.f32 0.0, %v1827
        %v1829 = vpop.f32.mrf.mxu0
        %v1830 = vadd.f32 0.0, %v1829
        %1831 = vdwg.mxu0
        %1832 = vmatpush.bf16.msra.mxu0 %v1659
        %1833 = vmatpush.bf16.msra.mxu0 %v1656
        %1834 = vmatpush.bf16.msra.mxu0 %v1653
        %1835 = vmatpush.bf16.msra.mxu0 %v1650
        %1836 = vmatpush.bf16.msra.mxu0 %v1647
        %1837 = vmatpush.bf16.msra.mxu0 %v1644
        %1838 = vmatpush.bf16.msra.mxu0 %v1641
        %1839 = vmatpush.bf16.msra.mxu0 %v1638
        %1840 = vmatmul.bf16.gmra.mxu0 %v1417
        %v1841 = vpop.f32.mrf.mxu0
        %v1842 = vadd.f32 %v1828, %v1841
        %v1843 = vpop.f32.mrf.mxu0
        %v1844 = vadd.f32 %v1830, %v1843
        %1845 = vdwg.mxu0
        %1846 = vmatpush.bf16.msra.mxu0 0
        %1847 = vmatpush.bf16.msra.mxu0 0
        %1848 = vmatpush.bf16.msra.mxu0 0
        %1849 = vmatpush.bf16.msra.mxu0 0
        %1850 = vmatpush.bf16.msra.mxu0 0
        %1851 = vmatpush.bf16.msra.mxu0 0
        %1852 = vmatpush.bf16.msra.mxu0 %v1732
        %1853 = vmatpush.bf16.msra.mxu0 %v1662
        %1854 = vmatmul.bf16.gmra.mxu0 %v1719
        %v1855 = vpop.f32.mrf.mxu0
        %v1856 = vadd.f32 %v1842, %v1855
        %v1857 = vpop.f32.mrf.mxu0
        %v1858 = vadd.f32 %v1844, %v1857
        %1859 = vdwg.mxu0
        %v1932 = vunpack.c.l.b16 %v1236
        %v1933 = vunpack.c.h.b16 %v1236
        %v1934 = vunpack.c.l.b16 %v1237
        %v1935 = vunpack.c.l.b16 %v1238
        %v1936 = vunpack.c.h.b16 %v1238
        %v1937 = vunpack.c.l.b16 %v1239
        %v1938 = vunpack.c.l.b16 %v1240
        %v1939 = vunpack.c.h.b16 %v1240
        %v1940 = vunpack.c.l.b16 %v1241
        %v1941 = vunpack.c.l.b16 %v1242
        %v1942 = vunpack.c.h.b16 %v1242
        %v1943 = vunpack.c.l.b16 %v1243
        %v1944 = vunpack.c.l.b16 %v1244
        %v1945 = vunpack.c.h.b16 %v1244
        %v1946 = vunpack.c.l.b16 %v1245
        %v1947 = vunpack.c.l.b16 %v1246
        %v1948 = vunpack.c.h.b16 %v1246
        %v1949 = vunpack.c.l.b16 %v1247
        %v1950 = vunpack.c.l.b16 %v1248
        %v1951 = vunpack.c.h.b16 %v1248
        %v1952 = vunpack.c.l.b16 %v1249
        %v1953 = vunpack.c.l.b16 %v1250
        %v1954 = vunpack.c.h.b16 %v1250
        %v1955 = vunpack.c.l.b16 %v1251
        %v1956 = vunpack.c.l.b16 %v1252
        %v1957 = vunpack.c.h.b16 %v1252
        %v1958 = vunpack.c.l.b16 %v1253
        %v1959 = vunpack.c.l.b16 %v1254
        %v1960 = vunpack.c.h.b16 %v1254
        %v1961 = vunpack.c.l.b16 %v1255
        %v1962 = vunpack.c.l.b16 %v1256
        %v1963 = vunpack.c.h.b16 %v1256
        %v1964 = vunpack.c.l.b16 %v1257
        %v1965 = vunpack.c.l.b16 %v1258
        %v1966 = vunpack.c.h.b16 %v1258
        %v1967 = vunpack.c.l.b16 %v1259
        %v1968 = vunpack.c.l.b16 %v1260
        %v1969 = vunpack.c.h.b16 %v1260
        %v1970 = vunpack.c.l.b16 %v1261
        %v1971 = vunpack.c.l.b16 %v1262
        %v1972 = vunpack.c.h.b16 %v1262
        %v1973 = vunpack.c.l.b16 %v1263
        %v1974 = vunpack.c.l.b16 %v1264
        %v1975 = vunpack.c.h.b16 %v1264
        %v1976 = vunpack.c.l.b16 %v1265
        %v1977 = vunpack.c.l.b16 %v1266
        %v1978 = vunpack.c.h.b16 %v1266
        %v1979 = vunpack.c.l.b16 %v1267
        %v1980 = vunpack.c.l.b16 %v1268
        %v1981 = vunpack.c.h.b16 %v1268
        %v1982 = vunpack.c.l.b16 %v1269
        %v1983 = vunpack.c.l.b16 %v1270
        %v1984 = vunpack.c.h.b16 %v1270
        %v1985 = vunpack.c.l.b16 %v1271
        %v1986 = vunpack.c.l.b16 %v1272
        %v1987 = vunpack.c.h.b16 %v1272
        %v1988 = vunpack.c.l.b16 %v1273
        %v1989 = vunpack.c.l.b16 %v1274
        %v1990 = vunpack.c.h.b16 %v1274
        %v1991 = vunpack.c.l.b16 %v1275
        %v1992 = vunpack.c.l.b16 %v1276
        %v1993 = vunpack.c.h.b16 %v1276
        %v1994 = vunpack.c.l.b16 %v1277
        %v1995 = vunpack.c.l.b16 %v1278
        %v1996 = vunpack.c.h.b16 %v1278
        %v1997 = vunpack.c.l.b16 %v1279
        %v1998 = vunpack.c.l.b16 %v1280
        %v1999 = vunpack.c.h.b16 %v1280
        %v2000 = vunpack.c.l.b16 %v1281
        %v2001 = vunpack.c.l.b16 %v1282
        %v2002 = vunpack.c.h.b16 %v1282
        %v2003 = vunpack.c.l.b16 %v1283
        %v2004 = vunpack.c.l.b16 %v1284
        %v2005 = vunpack.c.h.b16 %v1284
        %v2006 = vunpack.c.l.b16 %v1285
        %v2007 = vunpack.c.l.b16 %v1286
        %v2008 = vunpack.c.h.b16 %v1286
        %v2009 = vunpack.c.l.b16 %v1287
        %v2010 = vunpack.c.l.b16 %v1288
        %v2011 = vunpack.c.h.b16 %v1288
        %v2012 = vunpack.c.l.b16 %v1289
        %v2013 = vunpack.c.l.b16 %v1290
        %v2014 = vunpack.c.h.b16 %v1290
        %v2015 = vunpack.c.l.b16 %v1291
        %v2016 = vunpack.c.l.b16 %v1292
        %v2017 = vunpack.c.h.b16 %v1292
        %v2018 = vunpack.c.l.b16 %v1293
        %v2019 = vunpack.c.l.b16 %v1294
        %v2020 = vunpack.c.h.b16 %v1294
        %v2021 = vunpack.c.l.b16 %v1295
        %v2022 = vunpack.c.l.b16 %v1296
        %v2023 = vunpack.c.h.b16 %v1296
        %v2024 = vunpack.c.l.b16 %v1297
        %v2025 = vunpack.c.l.b16 %v1298
        %v2026 = vunpack.c.h.b16 %v1298
        %v2027 = vunpack.c.l.b16 %v1299
        %v2028 = vunpack.c.l.b16 %v1300
        %v2029 = vunpack.c.h.b16 %v1300
        %v2030 = vunpack.c.l.b16 %v1301
        %v2031 = vunpack.c.l.b16 %v1302
        %v2032 = vunpack.c.h.b16 %v1302
        %v2033 = vunpack.c.l.b16 %v1303
        %v2034 = vunpack.c.l.b16 %v1304
        %v2035 = vunpack.c.h.b16 %v1304
        %v2036 = vunpack.c.l.b16 %v1305
        %v2037 = vunpack.c.l.b16 %v1306
        %v2038 = vunpack.c.h.b16 %v1306
        %v2039 = vunpack.c.l.b16 %v1307
        %v2040 = vpack.c.b16 %v1935, %v1932
        %v2041 = vpack.c.b16 %v1936, %v1933
        %v2042 = vpack.c.b16 %v1937, %v1934
        %v2043 = vpack.c.b16 %v1941, %v1938
        %v2044 = vpack.c.b16 %v1942, %v1939
        %v2045 = vpack.c.b16 %v1943, %v1940
        %v2046 = vpack.c.b16 %v1947, %v1944
        %v2047 = vpack.c.b16 %v1948, %v1945
        %v2048 = vpack.c.b16 %v1949, %v1946
        %v2049 = vpack.c.b16 %v1953, %v1950
        %v2050 = vpack.c.b16 %v1954, %v1951
        %v2051 = vpack.c.b16 %v1955, %v1952
        %v2052 = vpack.c.b16 %v1959, %v1956
        %v2053 = vpack.c.b16 %v1960, %v1957
        %v2054 = vpack.c.b16 %v1961, %v1958
        %v2055 = vpack.c.b16 %v1965, %v1962
        %v2056 = vpack.c.b16 %v1966, %v1963
        %v2057 = vpack.c.b16 %v1967, %v1964
        %v2058 = vpack.c.b16 %v1971, %v1968
        %v2059 = vpack.c.b16 %v1972, %v1969
        %v2060 = vpack.c.b16 %v1973, %v1970
        %v2061 = vpack.c.b16 %v1977, %v1974
        %v2062 = vpack.c.b16 %v1978, %v1975
        %v2063 = vpack.c.b16 %v1979, %v1976
        %v2064 = vpack.c.b16 %v1983, %v1980
        %v2065 = vpack.c.b16 %v1984, %v1981
        %v2066 = vpack.c.b16 %v1985, %v1982
        %v2067 = vpack.c.b16 %v1989, %v1986
        %v2068 = vpack.c.b16 %v1990, %v1987
        %v2069 = vpack.c.b16 %v1991, %v1988
        %v2070 = vpack.c.b16 %v1995, %v1992
        %v2071 = vpack.c.b16 %v1996, %v1993
        %v2072 = vpack.c.b16 %v1997, %v1994
        %v2073 = vpack.c.b16 %v2001, %v1998
        %v2074 = vpack.c.b16 %v2002, %v1999
        %v2075 = vpack.c.b16 %v2003, %v2000
        %v2076 = vpack.c.b16 %v2007, %v2004
        %v2077 = vpack.c.b16 %v2008, %v2005
        %v2078 = vpack.c.b16 %v2009, %v2006
        %v2079 = vpack.c.b16 %v2013, %v2010
        %v2080 = vpack.c.b16 %v2014, %v2011
        %v2081 = vpack.c.b16 %v2015, %v2012
        %v2082 = vpack.c.b16 %v2019, %v2016
        %v2083 = vpack.c.b16 %v2020, %v2017
        %v2084 = vpack.c.b16 %v2021, %v2018
        %v2085 = vpack.c.b16 %v2025, %v2022
        %v2086 = vpack.c.b16 %v2026, %v2023
        %v2087 = vpack.c.b16 %v2027, %v2024
        %v2088 = vpack.c.b16 %v2031, %v2028
        %v2089 = vpack.c.b16 %v2032, %v2029
        %v2090 = vpack.c.b16 %v2033, %v2030
        %v2091 = vpack.c.b16 %v2037, %v2034
        %v2092 = vpack.c.b16 %v2038, %v2035
        %v2093 = vpack.c.b16 %v2039, %v2036
        %v2146 = vsel %vm1717, %v1235, 0
        %v2149 = vand.u32 %v2091, %v1724
        %v2152 = vand.u32 %v2092, %v1724
        %v2155 = vand.u32 %v2093, %v1724
        %2157 = vmatpush.bf16.msra.mxu0 %v2061
        %2158 = vmatpush.bf16.msra.mxu0 %v2058
        %2159 = vmatpush.bf16.msra.mxu0 %v2055
        %2160 = vmatpush.bf16.msra.mxu0 %v2052
        %2161 = vmatpush.bf16.msra.mxu0 %v2049
        %2162 = vmatpush.bf16.msra.mxu0 %v2046
        %2163 = vmatpush.bf16.msra.mxu0 %v2043
        %2164 = vmatpush.bf16.msra.mxu0 %v2040
        %2165 = vmatmul.bf16.gmra.mxu0 %v1233
        %v2166 = vpop.f32.mrf.mxu0
        %v2167 = vadd.f32 %v1772, %v2166
        %v2168 = vpop.f32.mrf.mxu0
        %v2169 = vadd.f32 %v1774, %v2168
        %2170 = vdwg.mxu0
        %2171 = vmatpush.bf16.msra.mxu0 %v2085
        %2172 = vmatpush.bf16.msra.mxu0 %v2082
        %2173 = vmatpush.bf16.msra.mxu0 %v2079
        %2174 = vmatpush.bf16.msra.mxu0 %v2076
        %2175 = vmatpush.bf16.msra.mxu0 %v2073
        %2176 = vmatpush.bf16.msra.mxu0 %v2070
        %2177 = vmatpush.bf16.msra.mxu0 %v2067
        %2178 = vmatpush.bf16.msra.mxu0 %v2064
        %2179 = vmatmul.bf16.gmra.mxu0 %v1234
        %v2180 = vpop.f32.mrf.mxu0
        %v2181 = vadd.f32 %v2167, %v2180
        %v2182 = vpop.f32.mrf.mxu0
        %v2183 = vadd.f32 %v2169, %v2182
        %2184 = vdwg.mxu0
        %2185 = vmatpush.bf16.msra.mxu0 0
        %2186 = vmatpush.bf16.msra.mxu0 0
        %2187 = vmatpush.bf16.msra.mxu0 0
        %2188 = vmatpush.bf16.msra.mxu0 0
        %2189 = vmatpush.bf16.msra.mxu0 0
        %2190 = vmatpush.bf16.msra.mxu0 0
        %2191 = vmatpush.bf16.msra.mxu0 %v2149
        %2192 = vmatpush.bf16.msra.mxu0 %v2088
        %2193 = vmatmul.bf16.gmra.mxu0 %v2146
        %v2194 = vpop.f32.mrf.mxu0
        %v2195 = vadd.f32 %v2181, %v2194
        %v2196 = vpop.f32.mrf.mxu0
        %v2197 = vadd.f32 %v2183, %v2196
        %2198 = vdwg.mxu0
        %2199 = vmatpush.bf16.msra.mxu0 %v2062
        %2200 = vmatpush.bf16.msra.mxu0 %v2059
        %2201 = vmatpush.bf16.msra.mxu0 %v2056
        %2202 = vmatpush.bf16.msra.mxu0 %v2053
        %2203 = vmatpush.bf16.msra.mxu0 %v2050
        %2204 = vmatpush.bf16.msra.mxu0 %v2047
        %2205 = vmatpush.bf16.msra.mxu0 %v2044
        %2206 = vmatpush.bf16.msra.mxu0 %v2041
        %2207 = vmatmul.bf16.gmra.mxu0 %v1233
        %v2208 = vpop.f32.mrf.mxu0
        %v2209 = vadd.f32 %v1814, %v2208
        %v2210 = vpop.f32.mrf.mxu0
        %v2211 = vadd.f32 %v1816, %v2210
        %2212 = vdwg.mxu0
        %2213 = vmatpush.bf16.msra.mxu0 %v2086
        %2214 = vmatpush.bf16.msra.mxu0 %v2083
        %2215 = vmatpush.bf16.msra.mxu0 %v2080
        %2216 = vmatpush.bf16.msra.mxu0 %v2077
        %2217 = vmatpush.bf16.msra.mxu0 %v2074
        %2218 = vmatpush.bf16.msra.mxu0 %v2071
        %2219 = vmatpush.bf16.msra.mxu0 %v2068
        %2220 = vmatpush.bf16.msra.mxu0 %v2065
        %2221 = vmatmul.bf16.gmra.mxu0 %v1234
        %v2222 = vpop.f32.mrf.mxu0
        %v2223 = vadd.f32 %v2209, %v2222
        %v2224 = vpop.f32.mrf.mxu0
        %v2225 = vadd.f32 %v2211, %v2224
        %2226 = vdwg.mxu0
        %2227 = vmatpush.bf16.msra.mxu0 0
        %2228 = vmatpush.bf16.msra.mxu0 0
        %2229 = vmatpush.bf16.msra.mxu0 0
        %2230 = vmatpush.bf16.msra.mxu0 0
        %2231 = vmatpush.bf16.msra.mxu0 0
        %2232 = vmatpush.bf16.msra.mxu0 0
        %2233 = vmatpush.bf16.msra.mxu0 %v2152
        %2234 = vmatpush.bf16.msra.mxu0 %v2089
        %2235 = vmatmul.bf16.gmra.mxu0 %v2146
        %v2236 = vpop.f32.mrf.mxu0
        %v2237 = vadd.f32 %v2223, %v2236
        %v2238 = vpop.f32.mrf.mxu0
        %v2239 = vadd.f32 %v2225, %v2238
        %2240 = vdwg.mxu0
        %2241 = vmatpush.bf16.msra.mxu0 %v2063
        %2242 = vmatpush.bf16.msra.mxu0 %v2060
        %2243 = vmatpush.bf16.msra.mxu0 %v2057
        %2244 = vmatpush.bf16.msra.mxu0 %v2054
        %2245 = vmatpush.bf16.msra.mxu0 %v2051
        %2246 = vmatpush.bf16.msra.mxu0 %v2048
        %2247 = vmatpush.bf16.msra.mxu0 %v2045
        %2248 = vmatpush.bf16.msra.mxu0 %v2042
        %2249 = vmatmul.bf16.gmra.mxu0 %v1233
        %v2250 = vpop.f32.mrf.mxu0
        %v2251 = vadd.f32 %v1856, %v2250
        %v2252 = vpop.f32.mrf.mxu0
        %v2253 = vadd.f32 %v1858, %v2252
        %2254 = vdwg.mxu0
        %2255 = vmatpush.bf16.msra.mxu0 %v2087
        %2256 = vmatpush.bf16.msra.mxu0 %v2084
        %2257 = vmatpush.bf16.msra.mxu0 %v2081
        %2258 = vmatpush.bf16.msra.mxu0 %v2078
        %2259 = vmatpush.bf16.msra.mxu0 %v2075
        %2260 = vmatpush.bf16.msra.mxu0 %v2072
        %2261 = vmatpush.bf16.msra.mxu0 %v2069
        %2262 = vmatpush.bf16.msra.mxu0 %v2066
        %2263 = vmatmul.bf16.gmra.mxu0 %v1234
        %v2264 = vpop.f32.mrf.mxu0
        %v2265 = vadd.f32 %v2251, %v2264
        %v2266 = vpop.f32.mrf.mxu0
        %v2267 = vadd.f32 %v2253, %v2266
        %2268 = vdwg.mxu0
        %2269 = vmatpush.bf16.msra.mxu0 0
        %2270 = vmatpush.bf16.msra.mxu0 0
        %2271 = vmatpush.bf16.msra.mxu0 0
        %2272 = vmatpush.bf16.msra.mxu0 0
        %2273 = vmatpush.bf16.msra.mxu0 0
        %2274 = vmatpush.bf16.msra.mxu0 0
        %2275 = vmatpush.bf16.msra.mxu0 %v2155
        %2276 = vmatpush.bf16.msra.mxu0 %v2090
        %2277 = vmatmul.bf16.gmra.mxu0 %v2146
        %v2278 = vpop.f32.mrf.mxu0
        %v2279 = vadd.f32 %v2265, %v2278
        %v2280 = vpop.f32.mrf.mxu0
        %v2281 = vadd.f32 %v2267, %v2280
        %2282 = vdwg.mxu0
        %v2283 = vld [vmem:[#allocation3] sm:$0xfc]
        %v2284 = vld [vmem:[#allocation3 + $0x8] sm:$0xfc]
        %v2285 = vld [vmem:[#allocation3 + $0x10] sm:$0xfc]
        %v2286 = vld [vmem:[#allocation3 + $0x30] sm:$0x3]
        %v2287 = vld [vmem:[#allocation3 + $0x38] sm:$0x3]
        %v2288 = vld [vmem:[#allocation3 + $0x40] sm:$0x3]
        %v2289 = vpack.c.bf16 %v1230, %v2283
        %v2290 = vpack.c.bf16 %v1231, %v2284
        %v2291 = vpack.c.bf16 %v1232, %v2285
        %v2292 = vpack.c.bf16 %v2286, %v2286
        %v2293 = vpack.c.bf16 %v2287, %v2287
        %v2294 = vpack.c.bf16 %v2288, %v2288
        %s2295 = scalar_lea.vmem %s3, 864
        %v2296 = vld [vmem:[%s2295] sm:$0xff]
        %v2297 = vld [vmem:[%s2295 + $0x8] sm:$0xf]
        %v2298 = vld [vmem:[%s2295 + $0xc] sm:$0xff]
        %v2299 = vld [vmem:[%s2295 + $0x14] sm:$0xf]
        %v2300 = vld [vmem:[%s2295 + $0x18] sm:$0xff]
        %v2301 = vld [vmem:[%s2295 + $0x20] sm:$0xf]
        %v2302 = vld [vmem:[%s2295 + $0x24] sm:$0xff]
        %v2303 = vld [vmem:[%s2295 + $0x2c] sm:$0xf]
        %v2304 = vld [vmem:[%s2295 + $0x30] sm:$0xff]
        %v2305 = vld [vmem:[%s2295 + $0x38] sm:$0xf]
        %v2306 = vld [vmem:[%s2295 + $0x3c] sm:$0xff]
        %v2307 = vld [vmem:[%s2295 + $0x44] sm:$0xf]
        %v2308 = vld [vmem:[%s2295 + $0x48] sm:$0xff]
        %v2309 = vld [vmem:[%s2295 + $0x50] sm:$0xf]
        %v2310 = vld [vmem:[%s2295 + $0x54] sm:$0xff]
        %v2311 = vld [vmem:[%s2295 + $0x5c] sm:$0xf]
        %v2312 = vld [vmem:[%s2295 + $0x60] sm:$0xff]
        %v2313 = vld [vmem:[%s2295 + $0x68] sm:$0xf]
        %v2314 = vld [vmem:[%s2295 + $0x6c] sm:$0xff]
        %v2315 = vld [vmem:[%s2295 + $0x74] sm:$0xf]
        %v2316 = vld [vmem:[%s2295 + $0x78] sm:$0xff]
        %v2317 = vld [vmem:[%s2295 + $0x80] sm:$0xf]
        %v2318 = vld [vmem:[%s2295 + $0x84] sm:$0xff]
        %v2319 = vld [vmem:[%s2295 + $0x8c] sm:$0xf]
        %v2320 = vld [vmem:[%s2295 + $0x90] sm:$0xff]
        %v2321 = vld [vmem:[%s2295 + $0x98] sm:$0xf]
        %v2322 = vld [vmem:[%s2295 + $0x9c] sm:$0xff]
        %v2323 = vld [vmem:[%s2295 + $0xa4] sm:$0xf]
        %v2324 = vld [vmem:[%s2295 + $0xa8] sm:$0xff]
        %v2325 = vld [vmem:[%s2295 + $0xb0] sm:$0xf]
        %v2326 = vld [vmem:[%s2295 + $0xb4] sm:$0xff]
        %v2327 = vld [vmem:[%s2295 + $0xbc] sm:$0xf]
        %v2328 = vld [vmem:[%s2295 + $0xc0] sm:$0xff]
        %v2329 = vld [vmem:[%s2295 + $0xc8] sm:$0xf]
        %v2330 = vld [vmem:[%s2295 + $0xcc] sm:$0xff]
        %v2331 = vld [vmem:[%s2295 + $0xd4] sm:$0xf]
        %v2332 = vld [vmem:[%s2295 + $0xd8] sm:$0xff]
        %v2333 = vld [vmem:[%s2295 + $0xe0] sm:$0xf]
        %v2334 = vld [vmem:[%s2295 + $0xe4] sm:$0xff]
        %v2335 = vld [vmem:[%s2295 + $0xec] sm:$0xf]
        %v2336 = vld [vmem:[%s2295 + $0xf0] sm:$0xff]
        %v2337 = vld [vmem:[%s2295 + $0xf8] sm:$0xf]
        %v2338 = vld [vmem:[%s2295 + $0xfc] sm:$0xff]
        %v2339 = vld [vmem:[%s2295 + $0x104] sm:$0xf]
        %v2340 = vld [vmem:[%s2295 + $0x108] sm:$0xff]
        %v2341 = vld [vmem:[%s2295 + $0x110] sm:$0xf]
        %v2342 = vld [vmem:[%s2295 + $0x114] sm:$0xff]
        %v2343 = vld [vmem:[%s2295 + $0x11c] sm:$0xf]
        %v2344 = vld [vmem:[%s2295 + $0x120] sm:$0xff]
        %v2345 = vld [vmem:[%s2295 + $0x128] sm:$0xf]
        %v2346 = vld [vmem:[%s2295 + $0x12c] sm:$0xff]
        %v2347 = vld [vmem:[%s2295 + $0x134] sm:$0xf]
        %v2348 = vld [vmem:[%s2295 + $0x138] sm:$0xff]
        %v2349 = vld [vmem:[%s2295 + $0x140] sm:$0xf]
        %v2350 = vld [vmem:[%s2295 + $0x144] sm:$0xff]
        %v2351 = vld [vmem:[%s2295 + $0x14c] sm:$0xf]
        %v2352 = vld [vmem:[%s2295 + $0x150] sm:$0xff]
        %v2353 = vld [vmem:[%s2295 + $0x158] sm:$0xf]
        %v2354 = vld [vmem:[%s2295 + $0x15c] sm:$0xff]
        %v2355 = vld [vmem:[%s2295 + $0x164] sm:$0xf]
        %v2356 = vld [vmem:[%s2295 + $0x168] sm:$0xff]
        %v2357 = vld [vmem:[%s2295 + $0x170] sm:$0xf]
        %v2358 = vld [vmem:[%s2295 + $0x174] sm:$0xff]
        %v2359 = vld [vmem:[%s2295 + $0x17c] sm:$0xf]
        %v2360 = vld [vmem:[%s2295 + $0x180] sm:$0xff]
        %v2361 = vld [vmem:[%s2295 + $0x188] sm:$0xf]
        %v2362 = vld [vmem:[%s2295 + $0x18c] sm:$0xff]
        %v2363 = vld [vmem:[%s2295 + $0x194] sm:$0xf]
        %v2364 = vld [vmem:[%s2295 + $0x198] sm:$0xff]
        %v2365 = vld [vmem:[%s2295 + $0x1a0] sm:$0xf]
        %v2366 = vld [vmem:[%s2295 + $0x1a4] sm:$0xff]
        %v2367 = vld [vmem:[%s2295 + $0x1ac] sm:$0xf]
        %vm2374 = vcmask 1046528
        %v2375 = vrot.slane %v2289, 1
        %v2376 = vrot.slane %v2292, 1
        %v2377 = vsel %vm2374, %v2375, %v2376
        %v2378 = vrot.slane %v2290, 1
        %v2379 = vrot.slane %v2293, 1
        %v2380 = vsel %vm2374, %v2378, %v2379
        %v2381 = vrot.slane %v2291, 1
        %v2382 = vrot.slane %v2294, 1
        %v2383 = vsel %vm2374, %v2381, %v2382
        %v2458 = vunpack.c.l.b16 %v2296
        %v2459 = vunpack.c.h.b16 %v2296
        %v2460 = vunpack.c.l.b16 %v2297
        %v2461 = vunpack.c.l.b16 %v2298
        %v2462 = vunpack.c.h.b16 %v2298
        %v2463 = vunpack.c.l.b16 %v2299
        %v2464 = vunpack.c.l.b16 %v2300
        %v2465 = vunpack.c.h.b16 %v2300
        %v2466 = vunpack.c.l.b16 %v2301
        %v2467 = vunpack.c.l.b16 %v2302
        %v2468 = vunpack.c.h.b16 %v2302
        %v2469 = vunpack.c.l.b16 %v2303
        %v2470 = vunpack.c.l.b16 %v2304
        %v2471 = vunpack.c.h.b16 %v2304
        %v2472 = vunpack.c.l.b16 %v2305
        %v2473 = vunpack.c.l.b16 %v2306
        %v2474 = vunpack.c.h.b16 %v2306
        %v2475 = vunpack.c.l.b16 %v2307
        %v2476 = vunpack.c.l.b16 %v2308
        %v2477 = vunpack.c.h.b16 %v2308
        %v2478 = vunpack.c.l.b16 %v2309
        %v2479 = vunpack.c.l.b16 %v2310
        %v2480 = vunpack.c.h.b16 %v2310
        %v2481 = vunpack.c.l.b16 %v2311
        %v2482 = vunpack.c.l.b16 %v2312
        %v2483 = vunpack.c.h.b16 %v2312
        %v2484 = vunpack.c.l.b16 %v2313
        %v2485 = vunpack.c.l.b16 %v2314
        %v2486 = vunpack.c.h.b16 %v2314
        %v2487 = vunpack.c.l.b16 %v2315
        %v2488 = vunpack.c.l.b16 %v2316
        %v2489 = vunpack.c.h.b16 %v2316
        %v2490 = vunpack.c.l.b16 %v2317
        %v2491 = vunpack.c.l.b16 %v2318
        %v2492 = vunpack.c.h.b16 %v2318
        %v2493 = vunpack.c.l.b16 %v2319
        %v2494 = vunpack.c.l.b16 %v2320
        %v2495 = vunpack.c.h.b16 %v2320
        %v2496 = vunpack.c.l.b16 %v2321
        %v2497 = vunpack.c.l.b16 %v2322
        %v2498 = vunpack.c.h.b16 %v2322
        %v2499 = vunpack.c.l.b16 %v2323
        %v2500 = vunpack.c.l.b16 %v2324
        %v2501 = vunpack.c.h.b16 %v2324
        %v2502 = vunpack.c.l.b16 %v2325
        %v2503 = vunpack.c.l.b16 %v2326
        %v2504 = vunpack.c.h.b16 %v2326
        %v2505 = vunpack.c.l.b16 %v2327
        %v2506 = vunpack.c.l.b16 %v2328
        %v2507 = vunpack.c.h.b16 %v2328
        %v2508 = vunpack.c.l.b16 %v2329
        %v2509 = vunpack.c.l.b16 %v2330
        %v2510 = vunpack.c.h.b16 %v2330
        %v2511 = vunpack.c.l.b16 %v2331
        %v2512 = vunpack.c.l.b16 %v2332
        %v2513 = vunpack.c.h.b16 %v2332
        %v2514 = vunpack.c.l.b16 %v2333
        %v2515 = vunpack.c.l.b16 %v2334
        %v2516 = vunpack.c.h.b16 %v2334
        %v2517 = vunpack.c.l.b16 %v2335
        %v2518 = vunpack.c.l.b16 %v2336
        %v2519 = vunpack.c.h.b16 %v2336
        %v2520 = vunpack.c.l.b16 %v2337
        %v2521 = vunpack.c.l.b16 %v2338
        %v2522 = vunpack.c.h.b16 %v2338
        %v2523 = vunpack.c.l.b16 %v2339
        %v2524 = vunpack.c.l.b16 %v2340
        %v2525 = vunpack.c.h.b16 %v2340
        %v2526 = vunpack.c.l.b16 %v2341
        %v2527 = vunpack.c.l.b16 %v2342
        %v2528 = vunpack.c.h.b16 %v2342
        %v2529 = vunpack.c.l.b16 %v2343
        %v2530 = vunpack.c.l.b16 %v2344
        %v2531 = vunpack.c.h.b16 %v2344
        %v2532 = vunpack.c.l.b16 %v2345
        %v2533 = vunpack.c.l.b16 %v2346
        %v2534 = vunpack.c.h.b16 %v2346
        %v2535 = vunpack.c.l.b16 %v2347
        %v2536 = vunpack.c.l.b16 %v2348
        %v2537 = vunpack.c.h.b16 %v2348
        %v2538 = vunpack.c.l.b16 %v2349
        %v2539 = vunpack.c.l.b16 %v2350
        %v2540 = vunpack.c.h.b16 %v2350
        %v2541 = vunpack.c.l.b16 %v2351
        %v2542 = vunpack.c.l.b16 %v2352
        %v2543 = vunpack.c.h.b16 %v2352
        %v2544 = vunpack.c.l.b16 %v2353
        %v2545 = vunpack.c.l.b16 %v2354
        %v2546 = vunpack.c.h.b16 %v2354
        %v2547 = vunpack.c.l.b16 %v2355
        %v2548 = vunpack.c.l.b16 %v2356
        %v2549 = vunpack.c.h.b16 %v2356
        %v2550 = vunpack.c.l.b16 %v2357
        %v2551 = vunpack.c.l.b16 %v2358
        %v2552 = vunpack.c.h.b16 %v2358
        %v2553 = vunpack.c.l.b16 %v2359
        %v2554 = vunpack.c.l.b16 %v2360
        %v2555 = vunpack.c.h.b16 %v2360
        %v2556 = vunpack.c.l.b16 %v2361
        %v2557 = vunpack.c.l.b16 %v2362
        %v2558 = vunpack.c.h.b16 %v2362
        %v2559 = vunpack.c.l.b16 %v2363
        %v2560 = vunpack.c.l.b16 %v2364
        %v2561 = vunpack.c.h.b16 %v2364
        %v2562 = vunpack.c.l.b16 %v2365
        %v2563 = vunpack.c.l.b16 %v2366
        %v2564 = vunpack.c.h.b16 %v2366
        %v2565 = vunpack.c.l.b16 %v2367
        %v2566 = vpack.c.b16 %v2461, %v2458
        %v2567 = vpack.c.b16 %v2462, %v2459
        %v2568 = vpack.c.b16 %v2463, %v2460
        %v2569 = vpack.c.b16 %v2467, %v2464
        %v2570 = vpack.c.b16 %v2468, %v2465
        %v2571 = vpack.c.b16 %v2469, %v2466
        %v2572 = vpack.c.b16 %v2473, %v2470
        %v2573 = vpack.c.b16 %v2474, %v2471
        %v2574 = vpack.c.b16 %v2475, %v2472
        %v2575 = vpack.c.b16 %v2479, %v2476
        %v2576 = vpack.c.b16 %v2480, %v2477
        %v2577 = vpack.c.b16 %v2481, %v2478
        %v2578 = vpack.c.b16 %v2485, %v2482
        %v2579 = vpack.c.b16 %v2486, %v2483
        %v2580 = vpack.c.b16 %v2487, %v2484
        %v2581 = vpack.c.b16 %v2491, %v2488
        %v2582 = vpack.c.b16 %v2492, %v2489
        %v2583 = vpack.c.b16 %v2493, %v2490
        %v2584 = vpack.c.b16 %v2497, %v2494
        %v2585 = vpack.c.b16 %v2498, %v2495
        %v2586 = vpack.c.b16 %v2499, %v2496
        %v2587 = vpack.c.b16 %v2503, %v2500
        %v2588 = vpack.c.b16 %v2504, %v2501
        %v2589 = vpack.c.b16 %v2505, %v2502
        %v2590 = vpack.c.b16 %v2509, %v2506
        %v2591 = vpack.c.b16 %v2510, %v2507
        %v2592 = vpack.c.b16 %v2511, %v2508
        %v2593 = vpack.c.b16 %v2515, %v2512
        %v2594 = vpack.c.b16 %v2516, %v2513
        %v2595 = vpack.c.b16 %v2517, %v2514
        %v2596 = vpack.c.b16 %v2521, %v2518
        %v2597 = vpack.c.b16 %v2522, %v2519
        %v2598 = vpack.c.b16 %v2523, %v2520
        %v2599 = vpack.c.b16 %v2527, %v2524
        %v2600 = vpack.c.b16 %v2528, %v2525
        %v2601 = vpack.c.b16 %v2529, %v2526
        %v2602 = vpack.c.b16 %v2533, %v2530
        %v2603 = vpack.c.b16 %v2534, %v2531
        %v2604 = vpack.c.b16 %v2535, %v2532
        %v2605 = vpack.c.b16 %v2539, %v2536
        %v2606 = vpack.c.b16 %v2540, %v2537
        %v2607 = vpack.c.b16 %v2541, %v2538
        %v2608 = vpack.c.b16 %v2545, %v2542
        %v2609 = vpack.c.b16 %v2546, %v2543
        %v2610 = vpack.c.b16 %v2547, %v2544
        %v2611 = vpack.c.b16 %v2551, %v2548
        %v2612 = vpack.c.b16 %v2552, %v2549
        %v2613 = vpack.c.b16 %v2553, %v2550
        %v2614 = vpack.c.b16 %v2557, %v2554
        %v2615 = vpack.c.b16 %v2558, %v2555
        %v2616 = vpack.c.b16 %v2559, %v2556
        %v2617 = vpack.c.b16 %v2563, %v2560
        %v2618 = vpack.c.b16 %v2564, %v2561
        %v2619 = vpack.c.b16 %v2565, %v2562
        %v2672 = vsel %vm1717, %v2383, 0
        %v2675 = vand.u32 %v2617, %v1724
        %v2678 = vand.u32 %v2618, %v1724
        %v2681 = vand.u32 %v2619, %v1724
        %2683 = vmatpush.bf16.msra.mxu0 %v2587
        %2684 = vmatpush.bf16.msra.mxu0 %v2584
        %2685 = vmatpush.bf16.msra.mxu0 %v2581
        %2686 = vmatpush.bf16.msra.mxu0 %v2578
        %2687 = vmatpush.bf16.msra.mxu0 %v2575
        %2688 = vmatpush.bf16.msra.mxu0 %v2572
        %2689 = vmatpush.bf16.msra.mxu0 %v2569
        %2690 = vmatpush.bf16.msra.mxu0 %v2566
        %2691 = vmatmul.bf16.gmra.mxu0 %v2377
        %v2692 = vpop.f32.mrf.mxu0
        %v2693 = vadd.f32 0.0, %v2692
        %v2694 = vpop.f32.mrf.mxu0
        %v2695 = vadd.f32 0.0, %v2694
        %2696 = vdwg.mxu0
        %2697 = vmatpush.bf16.msra.mxu0 %v2611
        %2698 = vmatpush.bf16.msra.mxu0 %v2608
        %2699 = vmatpush.bf16.msra.mxu0 %v2605
        %2700 = vmatpush.bf16.msra.mxu0 %v2602
        %2701 = vmatpush.bf16.msra.mxu0 %v2599
        %2702 = vmatpush.bf16.msra.mxu0 %v2596
        %2703 = vmatpush.bf16.msra.mxu0 %v2593
        %2704 = vmatpush.bf16.msra.mxu0 %v2590
        %2705 = vmatmul.bf16.gmra.mxu0 %v2380
        %v2706 = vpop.f32.mrf.mxu0
        %v2707 = vadd.f32 %v2693, %v2706
        %v2708 = vpop.f32.mrf.mxu0
        %v2709 = vadd.f32 %v2695, %v2708
        %2710 = vdwg.mxu0
        %2711 = vmatpush.bf16.msra.mxu0 0
        %2712 = vmatpush.bf16.msra.mxu0 0
        %2713 = vmatpush.bf16.msra.mxu0 0
        %2714 = vmatpush.bf16.msra.mxu0 0
        %2715 = vmatpush.bf16.msra.mxu0 0
        %2716 = vmatpush.bf16.msra.mxu0 0
        %2717 = vmatpush.bf16.msra.mxu0 %v2675
        %2718 = vmatpush.bf16.msra.mxu0 %v2614
        %2719 = vmatmul.bf16.gmra.mxu0 %v2672
        %v2720 = vpop.f32.mrf.mxu0
        %v2721 = vadd.f32 %v2707, %v2720
        %v2722 = vpop.f32.mrf.mxu0
        %v2723 = vadd.f32 %v2709, %v2722
        %2724 = vdwg.mxu0
        %2725 = vmatpush.bf16.msra.mxu0 %v2588
        %2726 = vmatpush.bf16.msra.mxu0 %v2585
        %2727 = vmatpush.bf16.msra.mxu0 %v2582
        %2728 = vmatpush.bf16.msra.mxu0 %v2579
        %2729 = vmatpush.bf16.msra.mxu0 %v2576
        %2730 = vmatpush.bf16.msra.mxu0 %v2573
        %2731 = vmatpush.bf16.msra.mxu0 %v2570
        %2732 = vmatpush.bf16.msra.mxu0 %v2567
        %2733 = vmatmul.bf16.gmra.mxu0 %v2377
        %v2734 = vpop.f32.mrf.mxu0
        %v2735 = vadd.f32 0.0, %v2734
        %v2736 = vpop.f32.mrf.mxu0
        %v2737 = vadd.f32 0.0, %v2736
        %2738 = vdwg.mxu0
        %2739 = vmatpush.bf16.msra.mxu0 %v2612
        %2740 = vmatpush.bf16.msra.mxu0 %v2609
        %2741 = vmatpush.bf16.msra.mxu0 %v2606
        %2742 = vmatpush.bf16.msra.mxu0 %v2603
        %2743 = vmatpush.bf16.msra.mxu0 %v2600
        %2744 = vmatpush.bf16.msra.mxu0 %v2597
        %2745 = vmatpush.bf16.msra.mxu0 %v2594
        %2746 = vmatpush.bf16.msra.mxu0 %v2591
        %2747 = vmatmul.bf16.gmra.mxu0 %v2380
        %v2748 = vpop.f32.mrf.mxu0
        %v2749 = vadd.f32 %v2735, %v2748
        %v2750 = vpop.f32.mrf.mxu0
        %v2751 = vadd.f32 %v2737, %v2750
        %2752 = vdwg.mxu0
        %2753 = vmatpush.bf16.msra.mxu0 0
        %2754 = vmatpush.bf16.msra.mxu0 0
        %2755 = vmatpush.bf16.msra.mxu0 0
        %2756 = vmatpush.bf16.msra.mxu0 0
        %2757 = vmatpush.bf16.msra.mxu0 0
        %2758 = vmatpush.bf16.msra.mxu0 0
        %2759 = vmatpush.bf16.msra.mxu0 %v2678
        %2760 = vmatpush.bf16.msra.mxu0 %v2615
        %2761 = vmatmul.bf16.gmra.mxu0 %v2672
        %v2762 = vpop.f32.mrf.mxu0
        %v2763 = vadd.f32 %v2749, %v2762
        %v2764 = vpop.f32.mrf.mxu0
        %v2765 = vadd.f32 %v2751, %v2764
        %2766 = vdwg.mxu0
        %2767 = vmatpush.bf16.msra.mxu0 %v2589
        %2768 = vmatpush.bf16.msra.mxu0 %v2586
        %2769 = vmatpush.bf16.msra.mxu0 %v2583
        %2770 = vmatpush.bf16.msra.mxu0 %v2580
        %2771 = vmatpush.bf16.msra.mxu0 %v2577
        %2772 = vmatpush.bf16.msra.mxu0 %v2574
        %2773 = vmatpush.bf16.msra.mxu0 %v2571
        %2774 = vmatpush.bf16.msra.mxu0 %v2568
        %2775 = vmatmul.bf16.gmra.mxu0 %v2377
        %v2776 = vpop.f32.mrf.mxu0
        %v2777 = vadd.f32 0.0, %v2776
        %v2778 = vpop.f32.mrf.mxu0
        %v2779 = vadd.f32 0.0, %v2778
        %2780 = vdwg.mxu0
        %2781 = vmatpush.bf16.msra.mxu0 %v2613
        %2782 = vmatpush.bf16.msra.mxu0 %v2610
        %2783 = vmatpush.bf16.msra.mxu0 %v2607
        %2784 = vmatpush.bf16.msra.mxu0 %v2604
        %2785 = vmatpush.bf16.msra.mxu0 %v2601
        %2786 = vmatpush.bf16.msra.mxu0 %v2598
        %2787 = vmatpush.bf16.msra.mxu0 %v2595
        %2788 = vmatpush.bf16.msra.mxu0 %v2592
        %2789 = vmatmul.bf16.gmra.mxu0 %v2380
        %v2790 = vpop.f32.mrf.mxu0
        %v2791 = vadd.f32 %v2777, %v2790
        %v2792 = vpop.f32.mrf.mxu0
        %v2793 = vadd.f32 %v2779, %v2792
        %2794 = vdwg.mxu0
        %2795 = vmatpush.bf16.msra.mxu0 0
        %2796 = vmatpush.bf16.msra.mxu0 0
        %2797 = vmatpush.bf16.msra.mxu0 0
        %2798 = vmatpush.bf16.msra.mxu0 0
        %2799 = vmatpush.bf16.msra.mxu0 0
        %2800 = vmatpush.bf16.msra.mxu0 0
        %2801 = vmatpush.bf16.msra.mxu0 %v2681
        %2802 = vmatpush.bf16.msra.mxu0 %v2616
        %2803 = vmatmul.bf16.gmra.mxu0 %v2672
        %v2804 = vpop.f32.mrf.mxu0
        %v2805 = vadd.f32 %v2791, %v2804
        %v2806 = vpop.f32.mrf.mxu0
        %v2807 = vadd.f32 %v2793, %v2806
        %2808 = vdwg.mxu0
        %v2809 = vadd.f32 %v2195, %v2721
        %v2810 = vadd.f32 %v2237, %v2763
        %v2811 = vadd.f32 %v2279, %v2805
        %v2812 = vadd.f32 %v2197, %v2723
        %v2813 = vadd.f32 %v2239, %v2765
        %v2814 = vadd.f32 %v2281, %v2807
        %v2815 = vld [vmem:[%s4] sm:$0x7]
        %v2817 = vperm.slane %v2815, 0
        %v2818 = vperm.slane %v2815, 1
        %v2819 = vperm.slane %v2815, 2
        %v2823 = vadd.f32 %v2809, %v2817
        %v2824 = vadd.f32 %v2810, %v2818
        %v2825 = vadd.f32 %v2811, %v2819
        %v2826 = vadd.f32 %v2812, %v2817
        %v2827 = vadd.f32 %v2813, %v2818
        %v2828 = vadd.f32 %v2814, %v2819
        %v2829 = vmax.f32 %v2823, 0.0
        %v2830 = vmax.f32 %v2824, 0.0
        %v2831 = vmax.f32 %v2825, 0.0
        %v2832 = vmax.f32 %v2826, 0.0
        %v2833 = vmax.f32 %v2827, 0.0
        %v2834 = vmax.f32 %v2828, 0.0
        %2835 = vst [vmem:[#allocation4] sm:$0xff] %v2829
        %2836 = vst [vmem:[#allocation4 + $0x8] sm:$0xff] %v2830
        %vm2837 = vcmask 785408
        %2838 = vst.msk [vmem:[#allocation4 + $0x10] sm:$0xff] %vm2837, %v2831
        %2839 = vst [vmem:[#allocation4 + $0x18] sm:$0xff] %v2832
        %2840 = vst [vmem:[#allocation4 + $0x20] sm:$0xff] %v2833
        %2841 = vst.msk [vmem:[#allocation4 + $0x28] sm:$0xff] %vm2837, %v2834
        %v2842 = vld [vmem:[%s6] sm:$0x1]
        %v2843 = vld [vmem:[#allocation4] ss:$8 sm:$0x7]
        %s2844 = scalar_lea.vmem [#allocation4], 1
        %v2845 = vld [vmem:[%s2844] ss:$8 sm:$0x7]
        %v2846 = vmax.f32 %v2843, %v2845
        %2848 = vrot.lane.b32.xlu0 %v2846, 127
        %v2849 = vpop.permute.xlu0 %2848
        %v2850 = vrot.slane %v2849, 1
        %v2851 = vsel %vm962, %v2849, %v2850
        %v2853 = vmax.f32 %v2846, %v2851
        %v2855 = vperm.slane %v2853, 0
        %v2856 = vperm.slane %v2853, 1
        %v2857 = vperm.slane %v2853, 2
        %v2861 = vpack.c.bf16 %v2855, %v2855
        %v2862 = vpack.c.bf16 %v2856, %v2856
        %v2863 = vpack.c.bf16 %v2857, %v2857
        %v2864 = vld [vmem:[%s5] sm:$0xf]
        %v2865 = vld [vmem:[%s5 + $0x4] sm:$0xf]
        %v2866 = vld [vmem:[%s5 + $0x8] sm:$0xf]
        %v2867 = vld [vmem:[%s5 + $0xc] sm:$0xf]
        %v2868 = vld [vmem:[%s5 + $0x10] sm:$0xf]
        %v2869 = vld [vmem:[%s5 + $0x14] sm:$0xf]
        %v2870 = vld [vmem:[%s5 + $0x18] sm:$0xf]
        %v2871 = vld [vmem:[%s5 + $0x1c] sm:$0xf]
        %v2872 = vld [vmem:[%s5 + $0x20] sm:$0xf]
        %v2873 = vld [vmem:[%s5 + $0x24] sm:$0xf]
        %v2874 = vld [vmem:[%s5 + $0x28] sm:$0xf]
        %v2875 = vld [vmem:[%s5 + $0x2c] sm:$0xf]
        %v2876 = vld [vmem:[%s5 + $0x30] sm:$0xf]
        %v2877 = vld [vmem:[%s5 + $0x34] sm:$0xf]
        %v2878 = vld [vmem:[%s5 + $0x38] sm:$0xf]
        %v2879 = vld [vmem:[%s5 + $0x3c] sm:$0xf]
        %v2880 = vld [vmem:[%s5 + $0x40] sm:$0xf]
        %v2881 = vld [vmem:[%s5 + $0x44] sm:$0xf]
        %v2882 = vld [vmem:[%s5 + $0x48] sm:$0xf]
        %v2883 = vld [vmem:[%s5 + $0x4c] sm:$0xf]
        %v2884 = vld [vmem:[%s5 + $0x50] sm:$0xf]
        %v2885 = vld [vmem:[%s5 + $0x54] sm:$0xf]
        %v2886 = vld [vmem:[%s5 + $0x58] sm:$0xf]
        %v2887 = vld [vmem:[%s5 + $0x5c] sm:$0xf]
        %v2888 = vld [vmem:[%s5 + $0x60] sm:$0xf]
        %v2889 = vld [vmem:[%s5 + $0x64] sm:$0xf]
        %v2890 = vld [vmem:[%s5 + $0x68] sm:$0xf]
        %v2891 = vld [vmem:[%s5 + $0x6c] sm:$0xf]
        %v2892 = vld [vmem:[%s5 + $0x70] sm:$0xf]
        %v2893 = vld [vmem:[%s5 + $0x74] sm:$0xf]
        %v2894 = vld [vmem:[%s5 + $0x78] sm:$0xf]
        %v2895 = vld [vmem:[%s5 + $0x7c] sm:$0xf]
        %v2896 = vld [vmem:[%s5 + $0x80] sm:$0xf]
        %v2897 = vld [vmem:[%s5 + $0x84] sm:$0xf]
        %v2898 = vld [vmem:[%s5 + $0x88] sm:$0xf]
        %v2899 = vld [vmem:[%s5 + $0x8c] sm:$0xf]
        %v2900 = vld [vmem:[%s5 + $0x90] sm:$0xf]
        %v2901 = vld [vmem:[%s5 + $0x94] sm:$0xf]
        %v2902 = vld [vmem:[%s5 + $0x98] sm:$0xf]
        %v2903 = vld [vmem:[%s5 + $0x9c] sm:$0xf]
        %v2904 = vld [vmem:[%s5 + $0xa0] sm:$0xf]
        %v2905 = vld [vmem:[%s5 + $0xa4] sm:$0xf]
        %v2906 = vld [vmem:[%s5 + $0xa8] sm:$0xf]
        %v2907 = vld [vmem:[%s5 + $0xac] sm:$0xf]
        %v2952 = vunpack.c.l.b16 %v2864
        %v2953 = vunpack.c.l.b16 %v2865
        %v2954 = vunpack.c.l.b16 %v2866
        %v2955 = vunpack.c.l.b16 %v2867
        %v2956 = vunpack.c.l.b16 %v2868
        %v2957 = vunpack.c.l.b16 %v2869
        %v2958 = vunpack.c.l.b16 %v2870
        %v2959 = vunpack.c.l.b16 %v2871
        %v2960 = vunpack.c.l.b16 %v2872
        %v2961 = vunpack.c.l.b16 %v2873
        %v2962 = vunpack.c.l.b16 %v2874
        %v2963 = vunpack.c.l.b16 %v2875
        %v2964 = vunpack.c.l.b16 %v2876
        %v2965 = vunpack.c.l.b16 %v2877
        %v2966 = vunpack.c.l.b16 %v2878
        %v2967 = vunpack.c.l.b16 %v2879
        %v2968 = vunpack.c.l.b16 %v2880
        %v2969 = vunpack.c.l.b16 %v2881
        %v2970 = vunpack.c.l.b16 %v2882
        %v2971 = vunpack.c.l.b16 %v2883
        %v2972 = vunpack.c.l.b16 %v2884
        %v2973 = vunpack.c.l.b16 %v2885
        %v2974 = vunpack.c.l.b16 %v2886
        %v2975 = vunpack.c.l.b16 %v2887
        %v2976 = vunpack.c.l.b16 %v2888
        %v2977 = vunpack.c.l.b16 %v2889
        %v2978 = vunpack.c.l.b16 %v2890
        %v2979 = vunpack.c.l.b16 %v2891
        %v2980 = vunpack.c.l.b16 %v2892
        %v2981 = vunpack.c.l.b16 %v2893
        %v2982 = vunpack.c.l.b16 %v2894
        %v2983 = vunpack.c.l.b16 %v2895
        %v2984 = vunpack.c.l.b16 %v2896
        %v2985 = vunpack.c.l.b16 %v2897
        %v2986 = vunpack.c.l.b16 %v2898
        %v2987 = vunpack.c.l.b16 %v2899
        %v2988 = vunpack.c.l.b16 %v2900
        %v2989 = vunpack.c.l.b16 %v2901
        %v2990 = vunpack.c.l.b16 %v2902
        %v2991 = vunpack.c.l.b16 %v2903
        %v2992 = vunpack.c.l.b16 %v2904
        %v2993 = vunpack.c.l.b16 %v2905
        %v2994 = vunpack.c.l.b16 %v2906
        %v2995 = vunpack.c.l.b16 %v2907
        %v2996 = vpack.c.b16 %v2953, %v2952
        %v2997 = vpack.c.b16 %v2955, %v2954
        %v2998 = vpack.c.b16 %v2957, %v2956
        %v2999 = vpack.c.b16 %v2959, %v2958
        %v3000 = vpack.c.b16 %v2961, %v2960
        %v3001 = vpack.c.b16 %v2963, %v2962
        %v3002 = vpack.c.b16 %v2965, %v2964
        %v3003 = vpack.c.b16 %v2967, %v2966
        %v3004 = vpack.c.b16 %v2969, %v2968
        %v3005 = vpack.c.b16 %v2971, %v2970
        %v3006 = vpack.c.b16 %v2973, %v2972
        %v3007 = vpack.c.b16 %v2975, %v2974
        %v3008 = vpack.c.b16 %v2977, %v2976
        %v3009 = vpack.c.b16 %v2979, %v2978
        %v3010 = vpack.c.b16 %v2981, %v2980
        %v3011 = vpack.c.b16 %v2983, %v2982
        %v3012 = vpack.c.b16 %v2985, %v2984
        %v3013 = vpack.c.b16 %v2987, %v2986
        %v3014 = vpack.c.b16 %v2989, %v2988
        %v3015 = vpack.c.b16 %v2991, %v2990
        %v3016 = vpack.c.b16 %v2993, %v2992
        %v3017 = vpack.c.b16 %v2995, %v2994
        %vm3039 = vcmask 777216
        %v3041 = vsel %vm3039, %v2863, 0
        %v3044 = vand.u32 %v3017, %v1724
        %3046 = vmatpush.bf16.msra.mxu0 %v3003
        %3047 = vmatpush.bf16.msra.mxu0 %v3002
        %3048 = vmatpush.bf16.msra.mxu0 %v3001
        %3049 = vmatpush.bf16.msra.mxu0 %v3000
        %3050 = vmatpush.bf16.msra.mxu0 %v2999
        %3051 = vmatpush.bf16.msra.mxu0 %v2998
        %3052 = vmatpush.bf16.msra.mxu0 %v2997
        %3053 = vmatpush.bf16.msra.mxu0 %v2996
        %3054 = vmatmul.bf16.gmra.mxu0 %v2861
        %v3055 = vpop.f32.mrf.mxu0
        %v3056 = vadd.f32 0.0, %v3055
        %v3057 = vpop.f32.mrf.mxu0
        %3058 = vdwg.mxu0
        %3059 = vmatpush.bf16.msra.mxu0 %v3011
        %3060 = vmatpush.bf16.msra.mxu0 %v3010
        %3061 = vmatpush.bf16.msra.mxu0 %v3009
        %3062 = vmatpush.bf16.msra.mxu0 %v3008
        %3063 = vmatpush.bf16.msra.mxu0 %v3007
        %3064 = vmatpush.bf16.msra.mxu0 %v3006
        %3065 = vmatpush.bf16.msra.mxu0 %v3005
        %3066 = vmatpush.bf16.msra.mxu0 %v3004
        %3067 = vmatmul.bf16.gmra.mxu0 %v2862
        %v3068 = vpop.f32.mrf.mxu0
        %v3069 = vadd.f32 %v3056, %v3068
        %v3070 = vpop.f32.mrf.mxu0
        %3071 = vdwg.mxu0
        %3072 = vmatpush.bf16.msra.mxu0 0
        %3073 = vmatpush.bf16.msra.mxu0 0
        %3074 = vmatpush.bf16.msra.mxu0 %v3044
        %3075 = vmatpush.bf16.msra.mxu0 %v3016
        %3076 = vmatpush.bf16.msra.mxu0 %v3015
        %3077 = vmatpush.bf16.msra.mxu0 %v3014
        %3078 = vmatpush.bf16.msra.mxu0 %v3013
        %3079 = vmatpush.bf16.msra.mxu0 %v3012
        %3080 = vmatmul.bf16.gmra.mxu0 %v3041
        %v3081 = vpop.f32.mrf.mxu0
        %v3082 = vadd.f32 %v3069, %v3081
        %v3083 = vpop.f32.mrf.mxu0
        %3084 = vdwg.mxu0
        %v3085 = vadd.f32 %v2842, %v3082
        %s3086 = scalar_lea.vmem [#allocation4], 2
        %v3087 = vld [vmem:[%s3086] ss:$8 sm:$0x7]
        %s3088 = scalar_lea.vmem [#allocation4], 3
        %v3089 = vld [vmem:[%s3088] ss:$8 sm:$0x7]
        %v3090 = vmax.f32 %v3087, %v3089
        %3092 = vrot.lane.b32.xlu0 %v3090, 127
        %v3093 = vpop.permute.xlu0 %3092
        %v3094 = vrot.slane %v3093, 1
        %v3095 = vsel %vm962, %v3093, %v3094
        %v3097 = vmax.f32 %v3090, %v3095
        %v3099 = vperm.slane %v3097, 0
        %v3100 = vperm.slane %v3097, 1
        %v3101 = vperm.slane %v3097, 2
        %v3105 = vpack.c.bf16 %v3099, %v3099
        %v3106 = vpack.c.bf16 %v3100, %v3100
        %v3107 = vpack.c.bf16 %v3101, %v3101
        %s3108 = scalar_lea.vmem %s5, 176
        %v3109 = vld [vmem:[%s3108] sm:$0xf]
        %v3110 = vld [vmem:[%s3108 + $0x4] sm:$0xf]
        %v3111 = vld [vmem:[%s3108 + $0x8] sm:$0xf]
        %v3112 = vld [vmem:[%s3108 + $0xc] sm:$0xf]
        %v3113 = vld [vmem:[%s3108 + $0x10] sm:$0xf]
        %v3114 = vld [vmem:[%s3108 + $0x14] sm:$0xf]
        %v3115 = vld [vmem:[%s3108 + $0x18] sm:$0xf]
        %v3116 = vld [vmem:[%s3108 + $0x1c] sm:$0xf]
        %v3117 = vld [vmem:[%s3108 + $0x20] sm:$0xf]
        %v3118 = vld [vmem:[%s3108 + $0x24] sm:$0xf]
        %v3119 = vld [vmem:[%s3108 + $0x28] sm:$0xf]
        %v3120 = vld [vmem:[%s3108 + $0x2c] sm:$0xf]
        %v3121 = vld [vmem:[%s3108 + $0x30] sm:$0xf]
        %v3122 = vld [vmem:[%s3108 + $0x34] sm:$0xf]
        %v3123 = vld [vmem:[%s3108 + $0x38] sm:$0xf]
        %v3124 = vld [vmem:[%s3108 + $0x3c] sm:$0xf]
        %v3125 = vld [vmem:[%s3108 + $0x40] sm:$0xf]
        %v3126 = vld [vmem:[%s3108 + $0x44] sm:$0xf]
        %v3127 = vld [vmem:[%s3108 + $0x48] sm:$0xf]
        %v3128 = vld [vmem:[%s3108 + $0x4c] sm:$0xf]
        %v3129 = vld [vmem:[%s3108 + $0x50] sm:$0xf]
        %v3130 = vld [vmem:[%s3108 + $0x54] sm:$0xf]
        %v3131 = vld [vmem:[%s3108 + $0x58] sm:$0xf]
        %v3132 = vld [vmem:[%s3108 + $0x5c] sm:$0xf]
        %v3133 = vld [vmem:[%s3108 + $0x60] sm:$0xf]
        %v3134 = vld [vmem:[%s3108 + $0x64] sm:$0xf]
        %v3135 = vld [vmem:[%s3108 + $0x68] sm:$0xf]
        %v3136 = vld [vmem:[%s3108 + $0x6c] sm:$0xf]
        %v3137 = vld [vmem:[%s3108 + $0x70] sm:$0xf]
        %v3138 = vld [vmem:[%s3108 + $0x74] sm:$0xf]
        %v3139 = vld [vmem:[%s3108 + $0x78] sm:$0xf]
        %v3140 = vld [vmem:[%s3108 + $0x7c] sm:$0xf]
        %v3141 = vld [vmem:[%s3108 + $0x80] sm:$0xf]
        %v3142 = vld [vmem:[%s3108 + $0x84] sm:$0xf]
        %v3143 = vld [vmem:[%s3108 + $0x88] sm:$0xf]
        %v3144 = vld [vmem:[%s3108 + $0x8c] sm:$0xf]
        %v3145 = vld [vmem:[%s3108 + $0x90] sm:$0xf]
        %v3146 = vld [vmem:[%s3108 + $0x94] sm:$0xf]
        %v3147 = vld [vmem:[%s3108 + $0x98] sm:$0xf]
        %v3148 = vld [vmem:[%s3108 + $0x9c] sm:$0xf]
        %v3149 = vld [vmem:[%s3108 + $0xa0] sm:$0xf]
        %v3150 = vld [vmem:[%s3108 + $0xa4] sm:$0xf]
        %v3151 = vld [vmem:[%s3108 + $0xa8] sm:$0xf]
        %v3152 = vld [vmem:[%s3108 + $0xac] sm:$0xf]
        %v3197 = vunpack.c.l.b16 %v3109
        %v3198 = vunpack.c.l.b16 %v3110
        %v3199 = vunpack.c.l.b16 %v3111
        %v3200 = vunpack.c.l.b16 %v3112
        %v3201 = vunpack.c.l.b16 %v3113
        %v3202 = vunpack.c.l.b16 %v3114
        %v3203 = vunpack.c.l.b16 %v3115
        %v3204 = vunpack.c.l.b16 %v3116
        %v3205 = vunpack.c.l.b16 %v3117
        %v3206 = vunpack.c.l.b16 %v3118
        %v3207 = vunpack.c.l.b16 %v3119
        %v3208 = vunpack.c.l.b16 %v3120
        %v3209 = vunpack.c.l.b16 %v3121
        %v3210 = vunpack.c.l.b16 %v3122
        %v3211 = vunpack.c.l.b16 %v3123
        %v3212 = vunpack.c.l.b16 %v3124
        %v3213 = vunpack.c.l.b16 %v3125
        %v3214 = vunpack.c.l.b16 %v3126
        %v3215 = vunpack.c.l.b16 %v3127
        %v3216 = vunpack.c.l.b16 %v3128
        %v3217 = vunpack.c.l.b16 %v3129
        %v3218 = vunpack.c.l.b16 %v3130
        %v3219 = vunpack.c.l.b16 %v3131
        %v3220 = vunpack.c.l.b16 %v3132
        %v3221 = vunpack.c.l.b16 %v3133
        %v3222 = vunpack.c.l.b16 %v3134
        %v3223 = vunpack.c.l.b16 %v3135
        %v3224 = vunpack.c.l.b16 %v3136
        %v3225 = vunpack.c.l.b16 %v3137
        %v3226 = vunpack.c.l.b16 %v3138
        %v3227 = vunpack.c.l.b16 %v3139
        %v3228 = vunpack.c.l.b16 %v3140
        %v3229 = vunpack.c.l.b16 %v3141
        %v3230 = vunpack.c.l.b16 %v3142
        %v3231 = vunpack.c.l.b16 %v3143
        %v3232 = vunpack.c.l.b16 %v3144
        %v3233 = vunpack.c.l.b16 %v3145
        %v3234 = vunpack.c.l.b16 %v3146
        %v3235 = vunpack.c.l.b16 %v3147
        %v3236 = vunpack.c.l.b16 %v3148
        %v3237 = vunpack.c.l.b16 %v3149
        %v3238 = vunpack.c.l.b16 %v3150
        %v3239 = vunpack.c.l.b16 %v3151
        %v3240 = vunpack.c.l.b16 %v3152
        %v3241 = vpack.c.b16 %v3198, %v3197
        %v3242 = vpack.c.b16 %v3200, %v3199
        %v3243 = vpack.c.b16 %v3202, %v3201
        %v3244 = vpack.c.b16 %v3204, %v3203
        %v3245 = vpack.c.b16 %v3206, %v3205
        %v3246 = vpack.c.b16 %v3208, %v3207
        %v3247 = vpack.c.b16 %v3210, %v3209
        %v3248 = vpack.c.b16 %v3212, %v3211
        %v3249 = vpack.c.b16 %v3214, %v3213
        %v3250 = vpack.c.b16 %v3216, %v3215
        %v3251 = vpack.c.b16 %v3218, %v3217
        %v3252 = vpack.c.b16 %v3220, %v3219
        %v3253 = vpack.c.b16 %v3222, %v3221
        %v3254 = vpack.c.b16 %v3224, %v3223
        %v3255 = vpack.c.b16 %v3226, %v3225
        %v3256 = vpack.c.b16 %v3228, %v3227
        %v3257 = vpack.c.b16 %v3230, %v3229
        %v3258 = vpack.c.b16 %v3232, %v3231
        %v3259 = vpack.c.b16 %v3234, %v3233
        %v3260 = vpack.c.b16 %v3236, %v3235
        %v3261 = vpack.c.b16 %v3238, %v3237
        %v3262 = vpack.c.b16 %v3240, %v3239
        %v3285 = vsel %vm3039, %v3107, 0
        %v3288 = vand.u32 %v3262, %v1724
        %3290 = vmatpush.bf16.msra.mxu0 %v3248
        %3291 = vmatpush.bf16.msra.mxu0 %v3247
        %3292 = vmatpush.bf16.msra.mxu0 %v3246
        %3293 = vmatpush.bf16.msra.mxu0 %v3245
        %3294 = vmatpush.bf16.msra.mxu0 %v3244
        %3295 = vmatpush.bf16.msra.mxu0 %v3243
        %3296 = vmatpush.bf16.msra.mxu0 %v3242
        %3297 = vmatpush.bf16.msra.mxu0 %v3241
        %3298 = vmatmul.bf16.gmra.mxu0 %v3105
        %v3299 = vpop.f32.mrf.mxu0
        %v3300 = vadd.f32 0.0, %v3299
        %v3301 = vpop.f32.mrf.mxu0
        %3302 = vdwg.mxu0
        %3303 = vmatpush.bf16.msra.mxu0 %v3256
        %3304 = vmatpush.bf16.msra.mxu0 %v3255
        %3305 = vmatpush.bf16.msra.mxu0 %v3254
        %3306 = vmatpush.bf16.msra.mxu0 %v3253
        %3307 = vmatpush.bf16.msra.mxu0 %v3252
        %3308 = vmatpush.bf16.msra.mxu0 %v3251
        %3309 = vmatpush.bf16.msra.mxu0 %v3250
        %3310 = vmatpush.bf16.msra.mxu0 %v3249
        %3311 = vmatmul.bf16.gmra.mxu0 %v3106
        %v3312 = vpop.f32.mrf.mxu0
        %v3313 = vadd.f32 %v3300, %v3312
        %v3314 = vpop.f32.mrf.mxu0
        %3315 = vdwg.mxu0
        %3316 = vmatpush.bf16.msra.mxu0 0
        %3317 = vmatpush.bf16.msra.mxu0 0
        %3318 = vmatpush.bf16.msra.mxu0 %v3288
        %3319 = vmatpush.bf16.msra.mxu0 %v3261
        %3320 = vmatpush.bf16.msra.mxu0 %v3260
        %3321 = vmatpush.bf16.msra.mxu0 %v3259
        %3322 = vmatpush.bf16.msra.mxu0 %v3258
        %3323 = vmatpush.bf16.msra.mxu0 %v3257
        %3324 = vmatmul.bf16.gmra.mxu0 %v3285
        %v3325 = vpop.f32.mrf.mxu0
        %v3326 = vadd.f32 %v3313, %v3325
        %v3327 = vpop.f32.mrf.mxu0
        %3328 = vdwg.mxu0
        %v3329 = vadd.f32 %v3085, %v3326
        %s3330 = scalar_lea.vmem [#allocation4], 4
        %v3331 = vld [vmem:[%s3330] ss:$8 sm:$0x7]
        %s3332 = scalar_lea.vmem [#allocation4], 5
        %v3333 = vld [vmem:[%s3332] ss:$8 sm:$0x7]
        %v3334 = vmax.f32 %v3331, %v3333
        %3336 = vrot.lane.b32.xlu0 %v3334, 127
        %v3337 = vpop.permute.xlu0 %3336
        %v3338 = vrot.slane %v3337, 1
        %v3339 = vsel %vm962, %v3337, %v3338
        %v3341 = vmax.f32 %v3334, %v3339
        %v3343 = vperm.slane %v3341, 0
        %v3344 = vperm.slane %v3341, 1
        %v3345 = vperm.slane %v3341, 2
        %v3349 = vpack.c.bf16 %v3343, %v3343
        %v3350 = vpack.c.bf16 %v3344, %v3344
        %v3351 = vpack.c.bf16 %v3345, %v3345
        %s3352 = scalar_lea.vmem %s5, 352
        %v3353 = vld [vmem:[%s3352] sm:$0xf]
        %v3354 = vld [vmem:[%s3352 + $0x4] sm:$0xf]
        %v3355 = vld [vmem:[%s3352 + $0x8] sm:$0xf]
        %v3356 = vld [vmem:[%s3352 + $0xc] sm:$0xf]
        %v3357 = vld [vmem:[%s3352 + $0x10] sm:$0xf]
        %v3358 = vld [vmem:[%s3352 + $0x14] sm:$0xf]
        %v3359 = vld [vmem:[%s3352 + $0x18] sm:$0xf]
        %v3360 = vld [vmem:[%s3352 + $0x1c] sm:$0xf]
        %v3361 = vld [vmem:[%s3352 + $0x20] sm:$0xf]
        %v3362 = vld [vmem:[%s3352 + $0x24] sm:$0xf]
        %v3363 = vld [vmem:[%s3352 + $0x28] sm:$0xf]
        %v3364 = vld [vmem:[%s3352 + $0x2c] sm:$0xf]
        %v3365 = vld [vmem:[%s3352 + $0x30] sm:$0xf]
        %v3366 = vld [vmem:[%s3352 + $0x34] sm:$0xf]
        %v3367 = vld [vmem:[%s3352 + $0x38] sm:$0xf]
        %v3368 = vld [vmem:[%s3352 + $0x3c] sm:$0xf]
        %v3369 = vld [vmem:[%s3352 + $0x40] sm:$0xf]
        %v3370 = vld [vmem:[%s3352 + $0x44] sm:$0xf]
        %v3371 = vld [vmem:[%s3352 + $0x48] sm:$0xf]
        %v3372 = vld [vmem:[%s3352 + $0x4c] sm:$0xf]
        %v3373 = vld [vmem:[%s3352 + $0x50] sm:$0xf]
        %v3374 = vld [vmem:[%s3352 + $0x54] sm:$0xf]
        %v3375 = vld [vmem:[%s3352 + $0x58] sm:$0xf]
        %v3376 = vld [vmem:[%s3352 + $0x5c] sm:$0xf]
        %v3377 = vld [vmem:[%s3352 + $0x60] sm:$0xf]
        %v3378 = vld [vmem:[%s3352 + $0x64] sm:$0xf]
        %v3379 = vld [vmem:[%s3352 + $0x68] sm:$0xf]
        %v3380 = vld [vmem:[%s3352 + $0x6c] sm:$0xf]
        %v3381 = vld [vmem:[%s3352 + $0x70] sm:$0xf]
        %v3382 = vld [vmem:[%s3352 + $0x74] sm:$0xf]
        %v3383 = vld [vmem:[%s3352 + $0x78] sm:$0xf]
        %v3384 = vld [vmem:[%s3352 + $0x7c] sm:$0xf]
        %v3385 = vld [vmem:[%s3352 + $0x80] sm:$0xf]
        %v3386 = vld [vmem:[%s3352 + $0x84] sm:$0xf]
        %v3387 = vld [vmem:[%s3352 + $0x88] sm:$0xf]
        %v3388 = vld [vmem:[%s3352 + $0x8c] sm:$0xf]
        %v3389 = vld [vmem:[%s3352 + $0x90] sm:$0xf]
        %v3390 = vld [vmem:[%s3352 + $0x94] sm:$0xf]
        %v3391 = vld [vmem:[%s3352 + $0x98] sm:$0xf]
        %v3392 = vld [vmem:[%s3352 + $0x9c] sm:$0xf]
        %v3393 = vld [vmem:[%s3352 + $0xa0] sm:$0xf]
        %v3394 = vld [vmem:[%s3352 + $0xa4] sm:$0xf]
        %v3395 = vld [vmem:[%s3352 + $0xa8] sm:$0xf]
        %v3396 = vld [vmem:[%s3352 + $0xac] sm:$0xf]
        %v3441 = vunpack.c.l.b16 %v3353
        %v3442 = vunpack.c.l.b16 %v3354
        %v3443 = vunpack.c.l.b16 %v3355
        %v3444 = vunpack.c.l.b16 %v3356
        %v3445 = vunpack.c.l.b16 %v3357
        %v3446 = vunpack.c.l.b16 %v3358
        %v3447 = vunpack.c.l.b16 %v3359
        %v3448 = vunpack.c.l.b16 %v3360
        %v3449 = vunpack.c.l.b16 %v3361
        %v3450 = vunpack.c.l.b16 %v3362
        %v3451 = vunpack.c.l.b16 %v3363
        %v3452 = vunpack.c.l.b16 %v3364
        %v3453 = vunpack.c.l.b16 %v3365
        %v3454 = vunpack.c.l.b16 %v3366
        %v3455 = vunpack.c.l.b16 %v3367
        %v3456 = vunpack.c.l.b16 %v3368
        %v3457 = vunpack.c.l.b16 %v3369
        %v3458 = vunpack.c.l.b16 %v3370
        %v3459 = vunpack.c.l.b16 %v3371
        %v3460 = vunpack.c.l.b16 %v3372
        %v3461 = vunpack.c.l.b16 %v3373
        %v3462 = vunpack.c.l.b16 %v3374
        %v3463 = vunpack.c.l.b16 %v3375
        %v3464 = vunpack.c.l.b16 %v3376
        %v3465 = vunpack.c.l.b16 %v3377
        %v3466 = vunpack.c.l.b16 %v3378
        %v3467 = vunpack.c.l.b16 %v3379
        %v3468 = vunpack.c.l.b16 %v3380
        %v3469 = vunpack.c.l.b16 %v3381
        %v3470 = vunpack.c.l.b16 %v3382
        %v3471 = vunpack.c.l.b16 %v3383
        %v3472 = vunpack.c.l.b16 %v3384
        %v3473 = vunpack.c.l.b16 %v3385
        %v3474 = vunpack.c.l.b16 %v3386
        %v3475 = vunpack.c.l.b16 %v3387
        %v3476 = vunpack.c.l.b16 %v3388
        %v3477 = vunpack.c.l.b16 %v3389
        %v3478 = vunpack.c.l.b16 %v3390
        %v3479 = vunpack.c.l.b16 %v3391
        %v3480 = vunpack.c.l.b16 %v3392
        %v3481 = vunpack.c.l.b16 %v3393
        %v3482 = vunpack.c.l.b16 %v3394
        %v3483 = vunpack.c.l.b16 %v3395
        %v3484 = vunpack.c.l.b16 %v3396
        %v3485 = vpack.c.b16 %v3442, %v3441
        %v3486 = vpack.c.b16 %v3444, %v3443
        %v3487 = vpack.c.b16 %v3446, %v3445
        %v3488 = vpack.c.b16 %v3448, %v3447
        %v3489 = vpack.c.b16 %v3450, %v3449
        %v3490 = vpack.c.b16 %v3452, %v3451
        %v3491 = vpack.c.b16 %v3454, %v3453
        %v3492 = vpack.c.b16 %v3456, %v3455
        %v3493 = vpack.c.b16 %v3458, %v3457
        %v3494 = vpack.c.b16 %v3460, %v3459
        %v3495 = vpack.c.b16 %v3462, %v3461
        %v3496 = vpack.c.b16 %v3464, %v3463
        %v3497 = vpack.c.b16 %v3466, %v3465
        %v3498 = vpack.c.b16 %v3468, %v3467
        %v3499 = vpack.c.b16 %v3470, %v3469
        %v3500 = vpack.c.b16 %v3472, %v3471
        %v3501 = vpack.c.b16 %v3474, %v3473
        %v3502 = vpack.c.b16 %v3476, %v3475
        %v3503 = vpack.c.b16 %v3478, %v3477
        %v3504 = vpack.c.b16 %v3480, %v3479
        %v3505 = vpack.c.b16 %v3482, %v3481
        %v3506 = vpack.c.b16 %v3484, %v3483
        %v3529 = vsel %vm3039, %v3351, 0
        %v3532 = vand.u32 %v3506, %v1724
        %3534 = vmatpush.bf16.msra.mxu0 %v3492
        %3535 = vmatpush.bf16.msra.mxu0 %v3491
        %3536 = vmatpush.bf16.msra.mxu0 %v3490
        %3537 = vmatpush.bf16.msra.mxu0 %v3489
        %3538 = vmatpush.bf16.msra.mxu0 %v3488
        %3539 = vmatpush.bf16.msra.mxu0 %v3487
        %3540 = vmatpush.bf16.msra.mxu0 %v3486
        %3541 = vmatpush.bf16.msra.mxu0 %v3485
        %3542 = vmatmul.bf16.gmra.mxu0 %v3349
        %v3543 = vpop.f32.mrf.mxu0
        %v3544 = vadd.f32 0.0, %v3543
        %v3545 = vpop.f32.mrf.mxu0
        %3546 = vdwg.mxu0
        %3547 = vmatpush.bf16.msra.mxu0 %v3500
        %3548 = vmatpush.bf16.msra.mxu0 %v3499
        %3549 = vmatpush.bf16.msra.mxu0 %v3498
        %3550 = vmatpush.bf16.msra.mxu0 %v3497
        %3551 = vmatpush.bf16.msra.mxu0 %v3496
        %3552 = vmatpush.bf16.msra.mxu0 %v3495
        %3553 = vmatpush.bf16.msra.mxu0 %v3494
        %3554 = vmatpush.bf16.msra.mxu0 %v3493
        %3555 = vmatmul.bf16.gmra.mxu0 %v3350
        %v3556 = vpop.f32.mrf.mxu0
        %v3557 = vadd.f32 %v3544, %v3556
        %v3558 = vpop.f32.mrf.mxu0
        %3559 = vdwg.mxu0
        %3560 = vmatpush.bf16.msra.mxu0 0
        %3561 = vmatpush.bf16.msra.mxu0 0
        %3562 = vmatpush.bf16.msra.mxu0 %v3532
        %3563 = vmatpush.bf16.msra.mxu0 %v3505
        %3564 = vmatpush.bf16.msra.mxu0 %v3504
        %3565 = vmatpush.bf16.msra.mxu0 %v3503
        %3566 = vmatpush.bf16.msra.mxu0 %v3502
        %3567 = vmatpush.bf16.msra.mxu0 %v3501
        %3568 = vmatmul.bf16.gmra.mxu0 %v3529
        %v3569 = vpop.f32.mrf.mxu0
        %v3570 = vadd.f32 %v3557, %v3569
        %v3571 = vpop.f32.mrf.mxu0
        %3572 = vdwg.mxu0
        %v3573 = vadd.f32 %v3329, %v3570
        %s3574 = scalar_lea.vmem [#allocation4], 6
        %v3575 = vld [vmem:[%s3574] ss:$8 sm:$0x7]
        %s3576 = scalar_lea.vmem [#allocation4], 7
        %v3577 = vld [vmem:[%s3576] ss:$8 sm:$0x7]
        %v3578 = vmax.f32 %v3575, %v3577
        %3580 = vrot.lane.b32.xlu0 %v3578, 127
        %v3581 = vpop.permute.xlu0 %3580
        %v3582 = vrot.slane %v3581, 1
        %v3583 = vsel %vm962, %v3581, %v3582
        %v3585 = vmax.f32 %v3578, %v3583
        %v3587 = vperm.slane %v3585, 0
        %v3588 = vperm.slane %v3585, 1
        %v3589 = vperm.slane %v3585, 2
        %v3593 = vpack.c.bf16 %v3587, %v3587
        %v3594 = vpack.c.bf16 %v3588, %v3588
        %v3595 = vpack.c.bf16 %v3589, %v3589
        %s3596 = scalar_lea.vmem %s5, 528
        %v3597 = vld [vmem:[%s3596] sm:$0xf]
        %v3598 = vld [vmem:[%s3596 + $0x4] sm:$0xf]
        %v3599 = vld [vmem:[%s3596 + $0x8] sm:$0xf]
        %v3600 = vld [vmem:[%s3596 + $0xc] sm:$0xf]
        %v3601 = vld [vmem:[%s3596 + $0x10] sm:$0xf]
        %v3602 = vld [vmem:[%s3596 + $0x14] sm:$0xf]
        %v3603 = vld [vmem:[%s3596 + $0x18] sm:$0xf]
        %v3604 = vld [vmem:[%s3596 + $0x1c] sm:$0xf]
        %v3605 = vld [vmem:[%s3596 + $0x20] sm:$0xf]
        %v3606 = vld [vmem:[%s3596 + $0x24] sm:$0xf]
        %v3607 = vld [vmem:[%s3596 + $0x28] sm:$0xf]
        %v3608 = vld [vmem:[%s3596 + $0x2c] sm:$0xf]
        %v3609 = vld [vmem:[%s3596 + $0x30] sm:$0xf]
        %v3610 = vld [vmem:[%s3596 + $0x34] sm:$0xf]
        %v3611 = vld [vmem:[%s3596 + $0x38] sm:$0xf]
        %v3612 = vld [vmem:[%s3596 + $0x3c] sm:$0xf]
        %v3613 = vld [vmem:[%s3596 + $0x40] sm:$0xf]
        %v3614 = vld [vmem:[%s3596 + $0x44] sm:$0xf]
        %v3615 = vld [vmem:[%s3596 + $0x48] sm:$0xf]
        %v3616 = vld [vmem:[%s3596 + $0x4c] sm:$0xf]
        %v3617 = vld [vmem:[%s3596 + $0x50] sm:$0xf]
        %v3618 = vld [vmem:[%s3596 + $0x54] sm:$0xf]
        %v3619 = vld [vmem:[%s3596 + $0x58] sm:$0xf]
        %v3620 = vld [vmem:[%s3596 + $0x5c] sm:$0xf]
        %v3621 = vld [vmem:[%s3596 + $0x60] sm:$0xf]
        %v3622 = vld [vmem:[%s3596 + $0x64] sm:$0xf]
        %v3623 = vld [vmem:[%s3596 + $0x68] sm:$0xf]
        %v3624 = vld [vmem:[%s3596 + $0x6c] sm:$0xf]
        %v3625 = vld [vmem:[%s3596 + $0x70] sm:$0xf]
        %v3626 = vld [vmem:[%s3596 + $0x74] sm:$0xf]
        %v3627 = vld [vmem:[%s3596 + $0x78] sm:$0xf]
        %v3628 = vld [vmem:[%s3596 + $0x7c] sm:$0xf]
        %v3629 = vld [vmem:[%s3596 + $0x80] sm:$0xf]
        %v3630 = vld [vmem:[%s3596 + $0x84] sm:$0xf]
        %v3631 = vld [vmem:[%s3596 + $0x88] sm:$0xf]
        %v3632 = vld [vmem:[%s3596 + $0x8c] sm:$0xf]
        %v3633 = vld [vmem:[%s3596 + $0x90] sm:$0xf]
        %v3634 = vld [vmem:[%s3596 + $0x94] sm:$0xf]
        %v3635 = vld [vmem:[%s3596 + $0x98] sm:$0xf]
        %v3636 = vld [vmem:[%s3596 + $0x9c] sm:$0xf]
        %v3637 = vld [vmem:[%s3596 + $0xa0] sm:$0xf]
        %v3638 = vld [vmem:[%s3596 + $0xa4] sm:$0xf]
        %v3639 = vld [vmem:[%s3596 + $0xa8] sm:$0xf]
        %v3640 = vld [vmem:[%s3596 + $0xac] sm:$0xf]
        %v3685 = vunpack.c.l.b16 %v3597
        %v3686 = vunpack.c.l.b16 %v3598
        %v3687 = vunpack.c.l.b16 %v3599
        %v3688 = vunpack.c.l.b16 %v3600
        %v3689 = vunpack.c.l.b16 %v3601
        %v3690 = vunpack.c.l.b16 %v3602
        %v3691 = vunpack.c.l.b16 %v3603
        %v3692 = vunpack.c.l.b16 %v3604
        %v3693 = vunpack.c.l.b16 %v3605
        %v3694 = vunpack.c.l.b16 %v3606
        %v3695 = vunpack.c.l.b16 %v3607
        %v3696 = vunpack.c.l.b16 %v3608
        %v3697 = vunpack.c.l.b16 %v3609
        %v3698 = vunpack.c.l.b16 %v3610
        %v3699 = vunpack.c.l.b16 %v3611
        %v3700 = vunpack.c.l.b16 %v3612
        %v3701 = vunpack.c.l.b16 %v3613
        %v3702 = vunpack.c.l.b16 %v3614
        %v3703 = vunpack.c.l.b16 %v3615
        %v3704 = vunpack.c.l.b16 %v3616
        %v3705 = vunpack.c.l.b16 %v3617
        %v3706 = vunpack.c.l.b16 %v3618
        %v3707 = vunpack.c.l.b16 %v3619
        %v3708 = vunpack.c.l.b16 %v3620
        %v3709 = vunpack.c.l.b16 %v3621
        %v3710 = vunpack.c.l.b16 %v3622
        %v3711 = vunpack.c.l.b16 %v3623
        %v3712 = vunpack.c.l.b16 %v3624
        %v3713 = vunpack.c.l.b16 %v3625
        %v3714 = vunpack.c.l.b16 %v3626
        %v3715 = vunpack.c.l.b16 %v3627
        %v3716 = vunpack.c.l.b16 %v3628
        %v3717 = vunpack.c.l.b16 %v3629
        %v3718 = vunpack.c.l.b16 %v3630
        %v3719 = vunpack.c.l.b16 %v3631
        %v3720 = vunpack.c.l.b16 %v3632
        %v3721 = vunpack.c.l.b16 %v3633
        %v3722 = vunpack.c.l.b16 %v3634
        %v3723 = vunpack.c.l.b16 %v3635
        %v3724 = vunpack.c.l.b16 %v3636
        %v3725 = vunpack.c.l.b16 %v3637
        %v3726 = vunpack.c.l.b16 %v3638
        %v3727 = vunpack.c.l.b16 %v3639
        %v3728 = vunpack.c.l.b16 %v3640
        %v3729 = vpack.c.b16 %v3686, %v3685
        %v3730 = vpack.c.b16 %v3688, %v3687
        %v3731 = vpack.c.b16 %v3690, %v3689
        %v3732 = vpack.c.b16 %v3692, %v3691
        %v3733 = vpack.c.b16 %v3694, %v3693
        %v3734 = vpack.c.b16 %v3696, %v3695
        %v3735 = vpack.c.b16 %v3698, %v3697
        %v3736 = vpack.c.b16 %v3700, %v3699
        %v3737 = vpack.c.b16 %v3702, %v3701
        %v3738 = vpack.c.b16 %v3704, %v3703
        %v3739 = vpack.c.b16 %v3706, %v3705
        %v3740 = vpack.c.b16 %v3708, %v3707
        %v3741 = vpack.c.b16 %v3710, %v3709
        %v3742 = vpack.c.b16 %v3712, %v3711
        %v3743 = vpack.c.b16 %v3714, %v3713
        %v3744 = vpack.c.b16 %v3716, %v3715
        %v3745 = vpack.c.b16 %v3718, %v3717
        %v3746 = vpack.c.b16 %v3720, %v3719
        %v3747 = vpack.c.b16 %v3722, %v3721
        %v3748 = vpack.c.b16 %v3724, %v3723
        %v3749 = vpack.c.b16 %v3726, %v3725
        %v3750 = vpack.c.b16 %v3728, %v3727
        %v3773 = vsel %vm3039, %v3595, 0
        %v3776 = vand.u32 %v3750, %v1724
        %3778 = vmatpush.bf16.msra.mxu0 %v3736
        %3779 = vmatpush.bf16.msra.mxu0 %v3735
        %3780 = vmatpush.bf16.msra.mxu0 %v3734
        %3781 = vmatpush.bf16.msra.mxu0 %v3733
        %3782 = vmatpush.bf16.msra.mxu0 %v3732
        %3783 = vmatpush.bf16.msra.mxu0 %v3731
        %3784 = vmatpush.bf16.msra.mxu0 %v3730
        %3785 = vmatpush.bf16.msra.mxu0 %v3729
        %3786 = vmatmul.bf16.gmra.mxu0 %v3593
        %v3787 = vpop.f32.mrf.mxu0
        %v3788 = vadd.f32 0.0, %v3787
        %v3789 = vpop.f32.mrf.mxu0
        %3790 = vdwg.mxu0
        %3791 = vmatpush.bf16.msra.mxu0 %v3744
        %3792 = vmatpush.bf16.msra.mxu0 %v3743
        %3793 = vmatpush.bf16.msra.mxu0 %v3742
        %3794 = vmatpush.bf16.msra.mxu0 %v3741
        %3795 = vmatpush.bf16.msra.mxu0 %v3740
        %3796 = vmatpush.bf16.msra.mxu0 %v3739
        %3797 = vmatpush.bf16.msra.mxu0 %v3738
        %3798 = vmatpush.bf16.msra.mxu0 %v3737
        %3799 = vmatmul.bf16.gmra.mxu0 %v3594
        %v3800 = vpop.f32.mrf.mxu0
        %v3801 = vadd.f32 %v3788, %v3800
        %v3802 = vpop.f32.mrf.mxu0
        %3803 = vdwg.mxu0
        %3804 = vmatpush.bf16.msra.mxu0 0
        %3805 = vmatpush.bf16.msra.mxu0 0
        %3806 = vmatpush.bf16.msra.mxu0 %v3776
        %3807 = vmatpush.bf16.msra.mxu0 %v3749
        %3808 = vmatpush.bf16.msra.mxu0 %v3748
        %3809 = vmatpush.bf16.msra.mxu0 %v3747
        %3810 = vmatpush.bf16.msra.mxu0 %v3746
        %3811 = vmatpush.bf16.msra.mxu0 %v3745
        %3812 = vmatmul.bf16.gmra.mxu0 %v3773
        %v3813 = vpop.f32.mrf.mxu0
        %v3814 = vadd.f32 %v3801, %v3813
        %v3815 = vpop.f32.mrf.mxu0
        %3816 = vdwg.mxu0
        %v3817 = vadd.f32 %v3573, %v3814
        %s3818 = scalar_lea.vmem [#allocation4], 24
        %v3819 = vld [vmem:[%s3818] ss:$8 sm:$0x7]
        %s3820 = scalar_lea.vmem [#allocation4], 25
        %v3821 = vld [vmem:[%s3820] ss:$8 sm:$0x7]
        %v3822 = vmax.f32 %v3819, %v3821
        %3824 = vrot.lane.b32.xlu0 %v3822, 127
        %v3825 = vpop.permute.xlu0 %3824
        %v3826 = vrot.slane %v3825, 1
        %v3827 = vsel %vm962, %v3825, %v3826
        %v3829 = vmax.f32 %v3822, %v3827
        %v3831 = vperm.slane %v3829, 0
        %v3832 = vperm.slane %v3829, 1
        %v3833 = vperm.slane %v3829, 2
        %v3837 = vpack.c.bf16 %v3831, %v3831
        %v3838 = vpack.c.bf16 %v3832, %v3832
        %v3839 = vpack.c.bf16 %v3833, %v3833
        %s3840 = scalar_lea.vmem %s5, 704
        %v3841 = vld [vmem:[%s3840] sm:$0xf]
        %v3842 = vld [vmem:[%s3840 + $0x4] sm:$0xf]
        %v3843 = vld [vmem:[%s3840 + $0x8] sm:$0xf]
        %v3844 = vld [vmem:[%s3840 + $0xc] sm:$0xf]
        %v3845 = vld [vmem:[%s3840 + $0x10] sm:$0xf]
        %v3846 = vld [vmem:[%s3840 + $0x14] sm:$0xf]
        %v3847 = vld [vmem:[%s3840 + $0x18] sm:$0xf]
        %v3848 = vld [vmem:[%s3840 + $0x1c] sm:$0xf]
        %v3849 = vld [vmem:[%s3840 + $0x20] sm:$0xf]
        %v3850 = vld [vmem:[%s3840 + $0x24] sm:$0xf]
        %v3851 = vld [vmem:[%s3840 + $0x28] sm:$0xf]
        %v3852 = vld [vmem:[%s3840 + $0x2c] sm:$0xf]
        %v3853 = vld [vmem:[%s3840 + $0x30] sm:$0xf]
        %v3854 = vld [vmem:[%s3840 + $0x34] sm:$0xf]
        %v3855 = vld [vmem:[%s3840 + $0x38] sm:$0xf]
        %v3856 = vld [vmem:[%s3840 + $0x3c] sm:$0xf]
        %v3857 = vld [vmem:[%s3840 + $0x40] sm:$0xf]
        %v3858 = vld [vmem:[%s3840 + $0x44] sm:$0xf]
        %v3859 = vld [vmem:[%s3840 + $0x48] sm:$0xf]
        %v3860 = vld [vmem:[%s3840 + $0x4c] sm:$0xf]
        %v3861 = vld [vmem:[%s3840 + $0x50] sm:$0xf]
        %v3862 = vld [vmem:[%s3840 + $0x54] sm:$0xf]
        %v3863 = vld [vmem:[%s3840 + $0x58] sm:$0xf]
        %v3864 = vld [vmem:[%s3840 + $0x5c] sm:$0xf]
        %v3865 = vld [vmem:[%s3840 + $0x60] sm:$0xf]
        %v3866 = vld [vmem:[%s3840 + $0x64] sm:$0xf]
        %v3867 = vld [vmem:[%s3840 + $0x68] sm:$0xf]
        %v3868 = vld [vmem:[%s3840 + $0x6c] sm:$0xf]
        %v3869 = vld [vmem:[%s3840 + $0x70] sm:$0xf]
        %v3870 = vld [vmem:[%s3840 + $0x74] sm:$0xf]
        %v3871 = vld [vmem:[%s3840 + $0x78] sm:$0xf]
        %v3872 = vld [vmem:[%s3840 + $0x7c] sm:$0xf]
        %v3873 = vld [vmem:[%s3840 + $0x80] sm:$0xf]
        %v3874 = vld [vmem:[%s3840 + $0x84] sm:$0xf]
        %v3875 = vld [vmem:[%s3840 + $0x88] sm:$0xf]
        %v3876 = vld [vmem:[%s3840 + $0x8c] sm:$0xf]
        %v3877 = vld [vmem:[%s3840 + $0x90] sm:$0xf]
        %v3878 = vld [vmem:[%s3840 + $0x94] sm:$0xf]
        %v3879 = vld [vmem:[%s3840 + $0x98] sm:$0xf]
        %v3880 = vld [vmem:[%s3840 + $0x9c] sm:$0xf]
        %v3881 = vld [vmem:[%s3840 + $0xa0] sm:$0xf]
        %v3882 = vld [vmem:[%s3840 + $0xa4] sm:$0xf]
        %v3883 = vld [vmem:[%s3840 + $0xa8] sm:$0xf]
        %v3884 = vld [vmem:[%s3840 + $0xac] sm:$0xf]
        %v3929 = vunpack.c.l.b16 %v3841
        %v3930 = vunpack.c.l.b16 %v3842
        %v3931 = vunpack.c.l.b16 %v3843
        %v3932 = vunpack.c.l.b16 %v3844
        %v3933 = vunpack.c.l.b16 %v3845
        %v3934 = vunpack.c.l.b16 %v3846
        %v3935 = vunpack.c.l.b16 %v3847
        %v3936 = vunpack.c.l.b16 %v3848
        %v3937 = vunpack.c.l.b16 %v3849
        %v3938 = vunpack.c.l.b16 %v3850
        %v3939 = vunpack.c.l.b16 %v3851
        %v3940 = vunpack.c.l.b16 %v3852
        %v3941 = vunpack.c.l.b16 %v3853
        %v3942 = vunpack.c.l.b16 %v3854
        %v3943 = vunpack.c.l.b16 %v3855
        %v3944 = vunpack.c.l.b16 %v3856
        %v3945 = vunpack.c.l.b16 %v3857
        %v3946 = vunpack.c.l.b16 %v3858
        %v3947 = vunpack.c.l.b16 %v3859
        %v3948 = vunpack.c.l.b16 %v3860
        %v3949 = vunpack.c.l.b16 %v3861
        %v3950 = vunpack.c.l.b16 %v3862
        %v3951 = vunpack.c.l.b16 %v3863
        %v3952 = vunpack.c.l.b16 %v3864
        %v3953 = vunpack.c.l.b16 %v3865
        %v3954 = vunpack.c.l.b16 %v3866
        %v3955 = vunpack.c.l.b16 %v3867
        %v3956 = vunpack.c.l.b16 %v3868
        %v3957 = vunpack.c.l.b16 %v3869
        %v3958 = vunpack.c.l.b16 %v3870
        %v3959 = vunpack.c.l.b16 %v3871
        %v3960 = vunpack.c.l.b16 %v3872
        %v3961 = vunpack.c.l.b16 %v3873
        %v3962 = vunpack.c.l.b16 %v3874
        %v3963 = vunpack.c.l.b16 %v3875
        %v3964 = vunpack.c.l.b16 %v3876
        %v3965 = vunpack.c.l.b16 %v3877
        %v3966 = vunpack.c.l.b16 %v3878
        %v3967 = vunpack.c.l.b16 %v3879
        %v3968 = vunpack.c.l.b16 %v3880
        %v3969 = vunpack.c.l.b16 %v3881
        %v3970 = vunpack.c.l.b16 %v3882
        %v3971 = vunpack.c.l.b16 %v3883
        %v3972 = vunpack.c.l.b16 %v3884
        %v3973 = vpack.c.b16 %v3930, %v3929
        %v3974 = vpack.c.b16 %v3932, %v3931
        %v3975 = vpack.c.b16 %v3934, %v3933
        %v3976 = vpack.c.b16 %v3936, %v3935
        %v3977 = vpack.c.b16 %v3938, %v3937
        %v3978 = vpack.c.b16 %v3940, %v3939
        %v3979 = vpack.c.b16 %v3942, %v3941
        %v3980 = vpack.c.b16 %v3944, %v3943
        %v3981 = vpack.c.b16 %v3946, %v3945
        %v3982 = vpack.c.b16 %v3948, %v3947
        %v3983 = vpack.c.b16 %v3950, %v3949
        %v3984 = vpack.c.b16 %v3952, %v3951
        %v3985 = vpack.c.b16 %v3954, %v3953
        %v3986 = vpack.c.b16 %v3956, %v3955
        %v3987 = vpack.c.b16 %v3958, %v3957
        %v3988 = vpack.c.b16 %v3960, %v3959
        %v3989 = vpack.c.b16 %v3962, %v3961
        %v3990 = vpack.c.b16 %v3964, %v3963
        %v3991 = vpack.c.b16 %v3966, %v3965
        %v3992 = vpack.c.b16 %v3968, %v3967
        %v3993 = vpack.c.b16 %v3970, %v3969
        %v3994 = vpack.c.b16 %v3972, %v3971
        %v4017 = vsel %vm3039, %v3839, 0
        %v4020 = vand.u32 %v3994, %v1724
        %4022 = vmatpush.bf16.msra.mxu0 %v3980
        %4023 = vmatpush.bf16.msra.mxu0 %v3979
        %4024 = vmatpush.bf16.msra.mxu0 %v3978
        %4025 = vmatpush.bf16.msra.mxu0 %v3977
        %4026 = vmatpush.bf16.msra.mxu0 %v3976
        %4027 = vmatpush.bf16.msra.mxu0 %v3975
        %4028 = vmatpush.bf16.msra.mxu0 %v3974
        %4029 = vmatpush.bf16.msra.mxu0 %v3973
        %4030 = vmatmul.bf16.gmra.mxu0 %v3837
        %v4031 = vpop.f32.mrf.mxu0
        %v4032 = vadd.f32 0.0, %v4031
        %v4033 = vpop.f32.mrf.mxu0
        %4034 = vdwg.mxu0
        %4035 = vmatpush.bf16.msra.mxu0 %v3988
        %4036 = vmatpush.bf16.msra.mxu0 %v3987
        %4037 = vmatpush.bf16.msra.mxu0 %v3986
        %4038 = vmatpush.bf16.msra.mxu0 %v3985
        %4039 = vmatpush.bf16.msra.mxu0 %v3984
        %4040 = vmatpush.bf16.msra.mxu0 %v3983
        %4041 = vmatpush.bf16.msra.mxu0 %v3982
        %4042 = vmatpush.bf16.msra.mxu0 %v3981
        %4043 = vmatmul.bf16.gmra.mxu0 %v3838
        %v4044 = vpop.f32.mrf.mxu0
        %v4045 = vadd.f32 %v4032, %v4044
        %v4046 = vpop.f32.mrf.mxu0
        %4047 = vdwg.mxu0
        %4048 = vmatpush.bf16.msra.mxu0 0
        %4049 = vmatpush.bf16.msra.mxu0 0
        %4050 = vmatpush.bf16.msra.mxu0 %v4020
        %4051 = vmatpush.bf16.msra.mxu0 %v3993
        %4052 = vmatpush.bf16.msra.mxu0 %v3992
        %4053 = vmatpush.bf16.msra.mxu0 %v3991
        %4054 = vmatpush.bf16.msra.mxu0 %v3990
        %4055 = vmatpush.bf16.msra.mxu0 %v3989
        %4056 = vmatmul.bf16.gmra.mxu0 %v4017
        %v4057 = vpop.f32.mrf.mxu0
        %v4058 = vadd.f32 %v4045, %v4057
        %v4059 = vpop.f32.mrf.mxu0
        %4060 = vdwg.mxu0
        %v4061 = vadd.f32 %v3817, %v4058
        %s4062 = scalar_lea.vmem [#allocation4], 26
        %v4063 = vld [vmem:[%s4062] ss:$8 sm:$0x7]
        %s4064 = scalar_lea.vmem [#allocation4], 27
        %v4065 = vld [vmem:[%s4064] ss:$8 sm:$0x7]
        %v4066 = vmax.f32 %v4063, %v4065
        %4068 = vrot.lane.b32.xlu0 %v4066, 127
        %v4069 = vpop.permute.xlu0 %4068
        %v4070 = vrot.slane %v4069, 1
        %v4071 = vsel %vm962, %v4069, %v4070
        %v4073 = vmax.f32 %v4066, %v4071
        %v4075 = vperm.slane %v4073, 0
        %v4076 = vperm.slane %v4073, 1
        %v4077 = vperm.slane %v4073, 2
        %v4081 = vpack.c.bf16 %v4075, %v4075
        %v4082 = vpack.c.bf16 %v4076, %v4076
        %v4083 = vpack.c.bf16 %v4077, %v4077
        %s4084 = scalar_lea.vmem %s5, 880
        %v4085 = vld [vmem:[%s4084] sm:$0xf]
        %v4086 = vld [vmem:[%s4084 + $0x4] sm:$0xf]
        %v4087 = vld [vmem:[%s4084 + $0x8] sm:$0xf]
        %v4088 = vld [vmem:[%s4084 + $0xc] sm:$0xf]
        %v4089 = vld [vmem:[%s4084 + $0x10] sm:$0xf]
        %v4090 = vld [vmem:[%s4084 + $0x14] sm:$0xf]
        %v4091 = vld [vmem:[%s4084 + $0x18] sm:$0xf]
        %v4092 = vld [vmem:[%s4084 + $0x1c] sm:$0xf]
        %v4093 = vld [vmem:[%s4084 + $0x20] sm:$0xf]
        %v4094 = vld [vmem:[%s4084 + $0x24] sm:$0xf]
        %v4095 = vld [vmem:[%s4084 + $0x28] sm:$0xf]
        %v4096 = vld [vmem:[%s4084 + $0x2c] sm:$0xf]
        %v4097 = vld [vmem:[%s4084 + $0x30] sm:$0xf]
        %v4098 = vld [vmem:[%s4084 + $0x34] sm:$0xf]
        %v4099 = vld [vmem:[%s4084 + $0x38] sm:$0xf]
        %v4100 = vld [vmem:[%s4084 + $0x3c] sm:$0xf]
        %v4101 = vld [vmem:[%s4084 + $0x40] sm:$0xf]
        %v4102 = vld [vmem:[%s4084 + $0x44] sm:$0xf]
        %v4103 = vld [vmem:[%s4084 + $0x48] sm:$0xf]
        %v4104 = vld [vmem:[%s4084 + $0x4c] sm:$0xf]
        %v4105 = vld [vmem:[%s4084 + $0x50] sm:$0xf]
        %v4106 = vld [vmem:[%s4084 + $0x54] sm:$0xf]
        %v4107 = vld [vmem:[%s4084 + $0x58] sm:$0xf]
        %v4108 = vld [vmem:[%s4084 + $0x5c] sm:$0xf]
        %v4109 = vld [vmem:[%s4084 + $0x60] sm:$0xf]
        %v4110 = vld [vmem:[%s4084 + $0x64] sm:$0xf]
        %v4111 = vld [vmem:[%s4084 + $0x68] sm:$0xf]
        %v4112 = vld [vmem:[%s4084 + $0x6c] sm:$0xf]
        %v4113 = vld [vmem:[%s4084 + $0x70] sm:$0xf]
        %v4114 = vld [vmem:[%s4084 + $0x74] sm:$0xf]
        %v4115 = vld [vmem:[%s4084 + $0x78] sm:$0xf]
        %v4116 = vld [vmem:[%s4084 + $0x7c] sm:$0xf]
        %v4117 = vld [vmem:[%s4084 + $0x80] sm:$0xf]
        %v4118 = vld [vmem:[%s4084 + $0x84] sm:$0xf]
        %v4119 = vld [vmem:[%s4084 + $0x88] sm:$0xf]
        %v4120 = vld [vmem:[%s4084 + $0x8c] sm:$0xf]
        %v4121 = vld [vmem:[%s4084 + $0x90] sm:$0xf]
        %v4122 = vld [vmem:[%s4084 + $0x94] sm:$0xf]
        %v4123 = vld [vmem:[%s4084 + $0x98] sm:$0xf]
        %v4124 = vld [vmem:[%s4084 + $0x9c] sm:$0xf]
        %v4125 = vld [vmem:[%s4084 + $0xa0] sm:$0xf]
        %v4126 = vld [vmem:[%s4084 + $0xa4] sm:$0xf]
        %v4127 = vld [vmem:[%s4084 + $0xa8] sm:$0xf]
        %v4128 = vld [vmem:[%s4084 + $0xac] sm:$0xf]
        %v4173 = vunpack.c.l.b16 %v4085
        %v4174 = vunpack.c.l.b16 %v4086
        %v4175 = vunpack.c.l.b16 %v4087
        %v4176 = vunpack.c.l.b16 %v4088
        %v4177 = vunpack.c.l.b16 %v4089
        %v4178 = vunpack.c.l.b16 %v4090
        %v4179 = vunpack.c.l.b16 %v4091
        %v4180 = vunpack.c.l.b16 %v4092
        %v4181 = vunpack.c.l.b16 %v4093
        %v4182 = vunpack.c.l.b16 %v4094
        %v4183 = vunpack.c.l.b16 %v4095
        %v4184 = vunpack.c.l.b16 %v4096
        %v4185 = vunpack.c.l.b16 %v4097
        %v4186 = vunpack.c.l.b16 %v4098
        %v4187 = vunpack.c.l.b16 %v4099
        %v4188 = vunpack.c.l.b16 %v4100
        %v4189 = vunpack.c.l.b16 %v4101
        %v4190 = vunpack.c.l.b16 %v4102
        %v4191 = vunpack.c.l.b16 %v4103
        %v4192 = vunpack.c.l.b16 %v4104
        %v4193 = vunpack.c.l.b16 %v4105
        %v4194 = vunpack.c.l.b16 %v4106
        %v4195 = vunpack.c.l.b16 %v4107
        %v4196 = vunpack.c.l.b16 %v4108
        %v4197 = vunpack.c.l.b16 %v4109
        %v4198 = vunpack.c.l.b16 %v4110
        %v4199 = vunpack.c.l.b16 %v4111
        %v4200 = vunpack.c.l.b16 %v4112
        %v4201 = vunpack.c.l.b16 %v4113
        %v4202 = vunpack.c.l.b16 %v4114
        %v4203 = vunpack.c.l.b16 %v4115
        %v4204 = vunpack.c.l.b16 %v4116
        %v4205 = vunpack.c.l.b16 %v4117
        %v4206 = vunpack.c.l.b16 %v4118
        %v4207 = vunpack.c.l.b16 %v4119
        %v4208 = vunpack.c.l.b16 %v4120
        %v4209 = vunpack.c.l.b16 %v4121
        %v4210 = vunpack.c.l.b16 %v4122
        %v4211 = vunpack.c.l.b16 %v4123
        %v4212 = vunpack.c.l.b16 %v4124
        %v4213 = vunpack.c.l.b16 %v4125
        %v4214 = vunpack.c.l.b16 %v4126
        %v4215 = vunpack.c.l.b16 %v4127
        %v4216 = vunpack.c.l.b16 %v4128
        %v4217 = vpack.c.b16 %v4174, %v4173
        %v4218 = vpack.c.b16 %v4176, %v4175
        %v4219 = vpack.c.b16 %v4178, %v4177
        %v4220 = vpack.c.b16 %v4180, %v4179
        %v4221 = vpack.c.b16 %v4182, %v4181
        %v4222 = vpack.c.b16 %v4184, %v4183
        %v4223 = vpack.c.b16 %v4186, %v4185
        %v4224 = vpack.c.b16 %v4188, %v4187
        %v4225 = vpack.c.b16 %v4190, %v4189
        %v4226 = vpack.c.b16 %v4192, %v4191
        %v4227 = vpack.c.b16 %v4194, %v4193
        %v4228 = vpack.c.b16 %v4196, %v4195
        %v4229 = vpack.c.b16 %v4198, %v4197
        %v4230 = vpack.c.b16 %v4200, %v4199
        %v4231 = vpack.c.b16 %v4202, %v4201
        %v4232 = vpack.c.b16 %v4204, %v4203
        %v4233 = vpack.c.b16 %v4206, %v4205
        %v4234 = vpack.c.b16 %v4208, %v4207
        %v4235 = vpack.c.b16 %v4210, %v4209
        %v4236 = vpack.c.b16 %v4212, %v4211
        %v4237 = vpack.c.b16 %v4214, %v4213
        %v4238 = vpack.c.b16 %v4216, %v4215
        %v4261 = vsel %vm3039, %v4083, 0
        %v4264 = vand.u32 %v4238, %v1724
        %4266 = vmatpush.bf16.msra.mxu0 %v4224
        %4267 = vmatpush.bf16.msra.mxu0 %v4223
        %4268 = vmatpush.bf16.msra.mxu0 %v4222
        %4269 = vmatpush.bf16.msra.mxu0 %v4221
        %4270 = vmatpush.bf16.msra.mxu0 %v4220
        %4271 = vmatpush.bf16.msra.mxu0 %v4219
        %4272 = vmatpush.bf16.msra.mxu0 %v4218
        %4273 = vmatpush.bf16.msra.mxu0 %v4217
        %4274 = vmatmul.bf16.gmra.mxu0 %v4081
        %v4275 = vpop.f32.mrf.mxu0
        %v4276 = vadd.f32 0.0, %v4275
        %v4277 = vpop.f32.mrf.mxu0
        %4278 = vdwg.mxu0
        %4279 = vmatpush.bf16.msra.mxu0 %v4232
        %4280 = vmatpush.bf16.msra.mxu0 %v4231
        %4281 = vmatpush.bf16.msra.mxu0 %v4230
        %4282 = vmatpush.bf16.msra.mxu0 %v4229
        %4283 = vmatpush.bf16.msra.mxu0 %v4228
        %4284 = vmatpush.bf16.msra.mxu0 %v4227
        %4285 = vmatpush.bf16.msra.mxu0 %v4226
        %4286 = vmatpush.bf16.msra.mxu0 %v4225
        %4287 = vmatmul.bf16.gmra.mxu0 %v4082
        %v4288 = vpop.f32.mrf.mxu0
        %v4289 = vadd.f32 %v4276, %v4288
        %v4290 = vpop.f32.mrf.mxu0
        %4291 = vdwg.mxu0
        %4292 = vmatpush.bf16.msra.mxu0 0
        %4293 = vmatpush.bf16.msra.mxu0 0
        %4294 = vmatpush.bf16.msra.mxu0 %v4264
        %4295 = vmatpush.bf16.msra.mxu0 %v4237
        %4296 = vmatpush.bf16.msra.mxu0 %v4236
        %4297 = vmatpush.bf16.msra.mxu0 %v4235
        %4298 = vmatpush.bf16.msra.mxu0 %v4234
        %4299 = vmatpush.bf16.msra.mxu0 %v4233
        %4300 = vmatmul.bf16.gmra.mxu0 %v4261
        %v4301 = vpop.f32.mrf.mxu0
        %v4302 = vadd.f32 %v4289, %v4301
        %v4303 = vpop.f32.mrf.mxu0
        %4304 = vdwg.mxu0
        %v4305 = vadd.f32 %v4061, %v4302
        %s4306 = scalar_lea.vmem [#allocation4], 28
        %v4307 = vld [vmem:[%s4306] ss:$8 sm:$0x7]
        %s4308 = scalar_lea.vmem [#allocation4], 29
        %v4309 = vld [vmem:[%s4308] ss:$8 sm:$0x7]
        %v4310 = vmax.f32 %v4307, %v4309
        %4312 = vrot.lane.b32.xlu0 %v4310, 127
        %v4313 = vpop.permute.xlu0 %4312
        %v4314 = vrot.slane %v4313, 1
        %v4315 = vsel %vm962, %v4313, %v4314
        %v4317 = vmax.f32 %v4310, %v4315
        %v4319 = vperm.slane %v4317, 0
        %v4320 = vperm.slane %v4317, 1
        %v4321 = vperm.slane %v4317, 2
        %v4325 = vpack.c.bf16 %v4319, %v4319
        %v4326 = vpack.c.bf16 %v4320, %v4320
        %v4327 = vpack.c.bf16 %v4321, %v4321
        %s4328 = scalar_lea.vmem %s5, 1056
        %v4329 = vld [vmem:[%s4328] sm:$0xf]
        %v4330 = vld [vmem:[%s4328 + $0x4] sm:$0xf]
        %v4331 = vld [vmem:[%s4328 + $0x8] sm:$0xf]
        %v4332 = vld [vmem:[%s4328 + $0xc] sm:$0xf]
        %v4333 = vld [vmem:[%s4328 + $0x10] sm:$0xf]
        %v4334 = vld [vmem:[%s4328 + $0x14] sm:$0xf]
        %v4335 = vld [vmem:[%s4328 + $0x18] sm:$0xf]
        %v4336 = vld [vmem:[%s4328 + $0x1c] sm:$0xf]
        %v4337 = vld [vmem:[%s4328 + $0x20] sm:$0xf]
        %v4338 = vld [vmem:[%s4328 + $0x24] sm:$0xf]
        %v4339 = vld [vmem:[%s4328 + $0x28] sm:$0xf]
        %v4340 = vld [vmem:[%s4328 + $0x2c] sm:$0xf]
        %v4341 = vld [vmem:[%s4328 + $0x30] sm:$0xf]
        %v4342 = vld [vmem:[%s4328 + $0x34] sm:$0xf]
        %v4343 = vld [vmem:[%s4328 + $0x38] sm:$0xf]
        %v4344 = vld [vmem:[%s4328 + $0x3c] sm:$0xf]
        %v4345 = vld [vmem:[%s4328 + $0x40] sm:$0xf]
        %v4346 = vld [vmem:[%s4328 + $0x44] sm:$0xf]
        %v4347 = vld [vmem:[%s4328 + $0x48] sm:$0xf]
        %v4348 = vld [vmem:[%s4328 + $0x4c] sm:$0xf]
        %v4349 = vld [vmem:[%s4328 + $0x50] sm:$0xf]
        %v4350 = vld [vmem:[%s4328 + $0x54] sm:$0xf]
        %v4351 = vld [vmem:[%s4328 + $0x58] sm:$0xf]
        %v4352 = vld [vmem:[%s4328 + $0x5c] sm:$0xf]
        %v4353 = vld [vmem:[%s4328 + $0x60] sm:$0xf]
        %v4354 = vld [vmem:[%s4328 + $0x64] sm:$0xf]
        %v4355 = vld [vmem:[%s4328 + $0x68] sm:$0xf]
        %v4356 = vld [vmem:[%s4328 + $0x6c] sm:$0xf]
        %v4357 = vld [vmem:[%s4328 + $0x70] sm:$0xf]
        %v4358 = vld [vmem:[%s4328 + $0x74] sm:$0xf]
        %v4359 = vld [vmem:[%s4328 + $0x78] sm:$0xf]
        %v4360 = vld [vmem:[%s4328 + $0x7c] sm:$0xf]
        %v4361 = vld [vmem:[%s4328 + $0x80] sm:$0xf]
        %v4362 = vld [vmem:[%s4328 + $0x84] sm:$0xf]
        %v4363 = vld [vmem:[%s4328 + $0x88] sm:$0xf]
        %v4364 = vld [vmem:[%s4328 + $0x8c] sm:$0xf]
        %v4365 = vld [vmem:[%s4328 + $0x90] sm:$0xf]
        %v4366 = vld [vmem:[%s4328 + $0x94] sm:$0xf]
        %v4367 = vld [vmem:[%s4328 + $0x98] sm:$0xf]
        %v4368 = vld [vmem:[%s4328 + $0x9c] sm:$0xf]
        %v4369 = vld [vmem:[%s4328 + $0xa0] sm:$0xf]
        %v4370 = vld [vmem:[%s4328 + $0xa4] sm:$0xf]
        %v4371 = vld [vmem:[%s4328 + $0xa8] sm:$0xf]
        %v4372 = vld [vmem:[%s4328 + $0xac] sm:$0xf]
        %v4417 = vunpack.c.l.b16 %v4329
        %v4418 = vunpack.c.l.b16 %v4330
        %v4419 = vunpack.c.l.b16 %v4331
        %v4420 = vunpack.c.l.b16 %v4332
        %v4421 = vunpack.c.l.b16 %v4333
        %v4422 = vunpack.c.l.b16 %v4334
        %v4423 = vunpack.c.l.b16 %v4335
        %v4424 = vunpack.c.l.b16 %v4336
        %v4425 = vunpack.c.l.b16 %v4337
        %v4426 = vunpack.c.l.b16 %v4338
        %v4427 = vunpack.c.l.b16 %v4339
        %v4428 = vunpack.c.l.b16 %v4340
        %v4429 = vunpack.c.l.b16 %v4341
        %v4430 = vunpack.c.l.b16 %v4342
        %v4431 = vunpack.c.l.b16 %v4343
        %v4432 = vunpack.c.l.b16 %v4344
        %v4433 = vunpack.c.l.b16 %v4345
        %v4434 = vunpack.c.l.b16 %v4346
        %v4435 = vunpack.c.l.b16 %v4347
        %v4436 = vunpack.c.l.b16 %v4348
        %v4437 = vunpack.c.l.b16 %v4349
        %v4438 = vunpack.c.l.b16 %v4350
        %v4439 = vunpack.c.l.b16 %v4351
        %v4440 = vunpack.c.l.b16 %v4352
        %v4441 = vunpack.c.l.b16 %v4353
        %v4442 = vunpack.c.l.b16 %v4354
        %v4443 = vunpack.c.l.b16 %v4355
        %v4444 = vunpack.c.l.b16 %v4356
        %v4445 = vunpack.c.l.b16 %v4357
        %v4446 = vunpack.c.l.b16 %v4358
        %v4447 = vunpack.c.l.b16 %v4359
        %v4448 = vunpack.c.l.b16 %v4360
        %v4449 = vunpack.c.l.b16 %v4361
        %v4450 = vunpack.c.l.b16 %v4362
        %v4451 = vunpack.c.l.b16 %v4363
        %v4452 = vunpack.c.l.b16 %v4364
        %v4453 = vunpack.c.l.b16 %v4365
        %v4454 = vunpack.c.l.b16 %v4366
        %v4455 = vunpack.c.l.b16 %v4367
        %v4456 = vunpack.c.l.b16 %v4368
        %v4457 = vunpack.c.l.b16 %v4369
        %v4458 = vunpack.c.l.b16 %v4370
        %v4459 = vunpack.c.l.b16 %v4371
        %v4460 = vunpack.c.l.b16 %v4372
        %v4461 = vpack.c.b16 %v4418, %v4417
        %v4462 = vpack.c.b16 %v4420, %v4419
        %v4463 = vpack.c.b16 %v4422, %v4421
        %v4464 = vpack.c.b16 %v4424, %v4423
        %v4465 = vpack.c.b16 %v4426, %v4425
        %v4466 = vpack.c.b16 %v4428, %v4427
        %v4467 = vpack.c.b16 %v4430, %v4429
        %v4468 = vpack.c.b16 %v4432, %v4431
        %v4469 = vpack.c.b16 %v4434, %v4433
        %v4470 = vpack.c.b16 %v4436, %v4435
        %v4471 = vpack.c.b16 %v4438, %v4437
        %v4472 = vpack.c.b16 %v4440, %v4439
        %v4473 = vpack.c.b16 %v4442, %v4441
        %v4474 = vpack.c.b16 %v4444, %v4443
        %v4475 = vpack.c.b16 %v4446, %v4445
        %v4476 = vpack.c.b16 %v4448, %v4447
        %v4477 = vpack.c.b16 %v4450, %v4449
        %v4478 = vpack.c.b16 %v4452, %v4451
        %v4479 = vpack.c.b16 %v4454, %v4453
        %v4480 = vpack.c.b16 %v4456, %v4455
        %v4481 = vpack.c.b16 %v4458, %v4457
        %v4482 = vpack.c.b16 %v4460, %v4459
        %v4505 = vsel %vm3039, %v4327, 0
        %v4508 = vand.u32 %v4482, %v1724
        %4510 = vmatpush.bf16.msra.mxu0 %v4468
        %4511 = vmatpush.bf16.msra.mxu0 %v4467
        %4512 = vmatpush.bf16.msra.mxu0 %v4466
        %4513 = vmatpush.bf16.msra.mxu0 %v4465
        %4514 = vmatpush.bf16.msra.mxu0 %v4464
        %4515 = vmatpush.bf16.msra.mxu0 %v4463
        %4516 = vmatpush.bf16.msra.mxu0 %v4462
        %4517 = vmatpush.bf16.msra.mxu0 %v4461
        %4518 = vmatmul.bf16.gmra.mxu0 %v4325
        %v4519 = vpop.f32.mrf.mxu0
        %v4520 = vadd.f32 0.0, %v4519
        %v4521 = vpop.f32.mrf.mxu0
        %4522 = vdwg.mxu0
        %4523 = vmatpush.bf16.msra.mxu0 %v4476
        %4524 = vmatpush.bf16.msra.mxu0 %v4475
        %4525 = vmatpush.bf16.msra.mxu0 %v4474
        %4526 = vmatpush.bf16.msra.mxu0 %v4473
        %4527 = vmatpush.bf16.msra.mxu0 %v4472
        %4528 = vmatpush.bf16.msra.mxu0 %v4471
        %4529 = vmatpush.bf16.msra.mxu0 %v4470
        %4530 = vmatpush.bf16.msra.mxu0 %v4469
        %4531 = vmatmul.bf16.gmra.mxu0 %v4326
        %v4532 = vpop.f32.mrf.mxu0
        %v4533 = vadd.f32 %v4520, %v4532
        %v4534 = vpop.f32.mrf.mxu0
        %4535 = vdwg.mxu0
        %4536 = vmatpush.bf16.msra.mxu0 0
        %4537 = vmatpush.bf16.msra.mxu0 0
        %4538 = vmatpush.bf16.msra.mxu0 %v4508
        %4539 = vmatpush.bf16.msra.mxu0 %v4481
        %4540 = vmatpush.bf16.msra.mxu0 %v4480
        %4541 = vmatpush.bf16.msra.mxu0 %v4479
        %4542 = vmatpush.bf16.msra.mxu0 %v4478
        %4543 = vmatpush.bf16.msra.mxu0 %v4477
        %4544 = vmatmul.bf16.gmra.mxu0 %v4505
        %v4545 = vpop.f32.mrf.mxu0
        %v4546 = vadd.f32 %v4533, %v4545
        %v4547 = vpop.f32.mrf.mxu0
        %4548 = vdwg.mxu0
        %v4549 = vadd.f32 %v4305, %v4546
        %s4550 = scalar_lea.vmem [#allocation4], 30
        %v4551 = vld [vmem:[%s4550] ss:$8 sm:$0x7]
        %s4552 = scalar_lea.vmem [#allocation4], 31
        %v4553 = vld [vmem:[%s4552] ss:$8 sm:$0x7]
        %v4554 = vmax.f32 %v4551, %v4553
        %4556 = vrot.lane.b32.xlu0 %v4554, 127
        %v4557 = vpop.permute.xlu0 %4556
        %v4558 = vrot.slane %v4557, 1
        %v4559 = vsel %vm962, %v4557, %v4558
        %v4561 = vmax.f32 %v4554, %v4559
        %v4563 = vperm.slane %v4561, 0
        %v4564 = vperm.slane %v4561, 1
        %v4565 = vperm.slane %v4561, 2
        %v4569 = vpack.c.bf16 %v4563, %v4563
        %v4570 = vpack.c.bf16 %v4564, %v4564
        %v4571 = vpack.c.bf16 %v4565, %v4565
        %s4572 = scalar_lea.vmem %s5, 1232
        %v4573 = vld [vmem:[%s4572] sm:$0xf]
        %v4574 = vld [vmem:[%s4572 + $0x4] sm:$0xf]
        %v4575 = vld [vmem:[%s4572 + $0x8] sm:$0xf]
        %v4576 = vld [vmem:[%s4572 + $0xc] sm:$0xf]
        %v4577 = vld [vmem:[%s4572 + $0x10] sm:$0xf]
        %v4578 = vld [vmem:[%s4572 + $0x14] sm:$0xf]
        %v4579 = vld [vmem:[%s4572 + $0x18] sm:$0xf]
        %v4580 = vld [vmem:[%s4572 + $0x1c] sm:$0xf]
        %v4581 = vld [vmem:[%s4572 + $0x20] sm:$0xf]
        %v4582 = vld [vmem:[%s4572 + $0x24] sm:$0xf]
        %v4583 = vld [vmem:[%s4572 + $0x28] sm:$0xf]
        %v4584 = vld [vmem:[%s4572 + $0x2c] sm:$0xf]
        %v4585 = vld [vmem:[%s4572 + $0x30] sm:$0xf]
        %v4586 = vld [vmem:[%s4572 + $0x34] sm:$0xf]
        %v4587 = vld [vmem:[%s4572 + $0x38] sm:$0xf]
        %v4588 = vld [vmem:[%s4572 + $0x3c] sm:$0xf]
        %v4589 = vld [vmem:[%s4572 + $0x40] sm:$0xf]
        %v4590 = vld [vmem:[%s4572 + $0x44] sm:$0xf]
        %v4591 = vld [vmem:[%s4572 + $0x48] sm:$0xf]
        %v4592 = vld [vmem:[%s4572 + $0x4c] sm:$0xf]
        %v4593 = vld [vmem:[%s4572 + $0x50] sm:$0xf]
        %v4594 = vld [vmem:[%s4572 + $0x54] sm:$0xf]
        %v4595 = vld [vmem:[%s4572 + $0x58] sm:$0xf]
        %v4596 = vld [vmem:[%s4572 + $0x5c] sm:$0xf]
        %v4597 = vld [vmem:[%s4572 + $0x60] sm:$0xf]
        %v4598 = vld [vmem:[%s4572 + $0x64] sm:$0xf]
        %v4599 = vld [vmem:[%s4572 + $0x68] sm:$0xf]
        %v4600 = vld [vmem:[%s4572 + $0x6c] sm:$0xf]
        %v4601 = vld [vmem:[%s4572 + $0x70] sm:$0xf]
        %v4602 = vld [vmem:[%s4572 + $0x74] sm:$0xf]
        %v4603 = vld [vmem:[%s4572 + $0x78] sm:$0xf]
        %v4604 = vld [vmem:[%s4572 + $0x7c] sm:$0xf]
        %v4605 = vld [vmem:[%s4572 + $0x80] sm:$0xf]
        %v4606 = vld [vmem:[%s4572 + $0x84] sm:$0xf]
        %v4607 = vld [vmem:[%s4572 + $0x88] sm:$0xf]
        %v4608 = vld [vmem:[%s4572 + $0x8c] sm:$0xf]
        %v4609 = vld [vmem:[%s4572 + $0x90] sm:$0xf]
        %v4610 = vld [vmem:[%s4572 + $0x94] sm:$0xf]
        %v4611 = vld [vmem:[%s4572 + $0x98] sm:$0xf]
        %v4612 = vld [vmem:[%s4572 + $0x9c] sm:$0xf]
        %v4613 = vld [vmem:[%s4572 + $0xa0] sm:$0xf]
        %v4614 = vld [vmem:[%s4572 + $0xa4] sm:$0xf]
        %v4615 = vld [vmem:[%s4572 + $0xa8] sm:$0xf]
        %v4616 = vld [vmem:[%s4572 + $0xac] sm:$0xf]
        %v4661 = vunpack.c.l.b16 %v4573
        %v4662 = vunpack.c.l.b16 %v4574
        %v4663 = vunpack.c.l.b16 %v4575
        %v4664 = vunpack.c.l.b16 %v4576
        %v4665 = vunpack.c.l.b16 %v4577
        %v4666 = vunpack.c.l.b16 %v4578
        %v4667 = vunpack.c.l.b16 %v4579
        %v4668 = vunpack.c.l.b16 %v4580
        %v4669 = vunpack.c.l.b16 %v4581
        %v4670 = vunpack.c.l.b16 %v4582
        %v4671 = vunpack.c.l.b16 %v4583
        %v4672 = vunpack.c.l.b16 %v4584
        %v4673 = vunpack.c.l.b16 %v4585
        %v4674 = vunpack.c.l.b16 %v4586
        %v4675 = vunpack.c.l.b16 %v4587
        %v4676 = vunpack.c.l.b16 %v4588
        %v4677 = vunpack.c.l.b16 %v4589
        %v4678 = vunpack.c.l.b16 %v4590
        %v4679 = vunpack.c.l.b16 %v4591
        %v4680 = vunpack.c.l.b16 %v4592
        %v4681 = vunpack.c.l.b16 %v4593
        %v4682 = vunpack.c.l.b16 %v4594
        %v4683 = vunpack.c.l.b16 %v4595
        %v4684 = vunpack.c.l.b16 %v4596
        %v4685 = vunpack.c.l.b16 %v4597
        %v4686 = vunpack.c.l.b16 %v4598
        %v4687 = vunpack.c.l.b16 %v4599
        %v4688 = vunpack.c.l.b16 %v4600
        %v4689 = vunpack.c.l.b16 %v4601
        %v4690 = vunpack.c.l.b16 %v4602
        %v4691 = vunpack.c.l.b16 %v4603
        %v4692 = vunpack.c.l.b16 %v4604
        %v4693 = vunpack.c.l.b16 %v4605
        %v4694 = vunpack.c.l.b16 %v4606
        %v4695 = vunpack.c.l.b16 %v4607
        %v4696 = vunpack.c.l.b16 %v4608
        %v4697 = vunpack.c.l.b16 %v4609
        %v4698 = vunpack.c.l.b16 %v4610
        %v4699 = vunpack.c.l.b16 %v4611
        %v4700 = vunpack.c.l.b16 %v4612
        %v4701 = vunpack.c.l.b16 %v4613
        %v4702 = vunpack.c.l.b16 %v4614
        %v4703 = vunpack.c.l.b16 %v4615
        %v4704 = vunpack.c.l.b16 %v4616
        %v4705 = vpack.c.b16 %v4662, %v4661
        %v4706 = vpack.c.b16 %v4664, %v4663
        %v4707 = vpack.c.b16 %v4666, %v4665
        %v4708 = vpack.c.b16 %v4668, %v4667
        %v4709 = vpack.c.b16 %v4670, %v4669
        %v4710 = vpack.c.b16 %v4672, %v4671
        %v4711 = vpack.c.b16 %v4674, %v4673
        %v4712 = vpack.c.b16 %v4676, %v4675
        %v4713 = vpack.c.b16 %v4678, %v4677
        %v4714 = vpack.c.b16 %v4680, %v4679
        %v4715 = vpack.c.b16 %v4682, %v4681
        %v4716 = vpack.c.b16 %v4684, %v4683
        %v4717 = vpack.c.b16 %v4686, %v4685
        %v4718 = vpack.c.b16 %v4688, %v4687
        %v4719 = vpack.c.b16 %v4690, %v4689
        %v4720 = vpack.c.b16 %v4692, %v4691
        %v4721 = vpack.c.b16 %v4694, %v4693
        %v4722 = vpack.c.b16 %v4696, %v4695
        %v4723 = vpack.c.b16 %v4698, %v4697
        %v4724 = vpack.c.b16 %v4700, %v4699
        %v4725 = vpack.c.b16 %v4702, %v4701
        %v4726 = vpack.c.b16 %v4704, %v4703
        %v4749 = vsel %vm3039, %v4571, 0
        %v4752 = vand.u32 %v4726, %v1724
        %4754 = vmatpush.bf16.msra.mxu0 %v4712
        %4755 = vmatpush.bf16.msra.mxu0 %v4711
        %4756 = vmatpush.bf16.msra.mxu0 %v4710
        %4757 = vmatpush.bf16.msra.mxu0 %v4709
        %4758 = vmatpush.bf16.msra.mxu0 %v4708
        %4759 = vmatpush.bf16.msra.mxu0 %v4707
        %4760 = vmatpush.bf16.msra.mxu0 %v4706
        %4761 = vmatpush.bf16.msra.mxu0 %v4705
        %4762 = vmatmul.bf16.gmra.mxu0 %v4569
        %v4763 = vpop.f32.mrf.mxu0
        %v4764 = vadd.f32 0.0, %v4763
        %v4765 = vpop.f32.mrf.mxu0
        %4766 = vdwg.mxu0
        %4767 = vmatpush.bf16.msra.mxu0 %v4720
        %4768 = vmatpush.bf16.msra.mxu0 %v4719
        %4769 = vmatpush.bf16.msra.mxu0 %v4718
        %4770 = vmatpush.bf16.msra.mxu0 %v4717
        %4771 = vmatpush.bf16.msra.mxu0 %v4716
        %4772 = vmatpush.bf16.msra.mxu0 %v4715
        %4773 = vmatpush.bf16.msra.mxu0 %v4714
        %4774 = vmatpush.bf16.msra.mxu0 %v4713
        %4775 = vmatmul.bf16.gmra.mxu0 %v4570
        %v4776 = vpop.f32.mrf.mxu0
        %v4777 = vadd.f32 %v4764, %v4776
        %v4778 = vpop.f32.mrf.mxu0
        %4779 = vdwg.mxu0
        %4780 = vmatpush.bf16.msra.mxu0 0
        %4781 = vmatpush.bf16.msra.mxu0 0
        %4782 = vmatpush.bf16.msra.mxu0 %v4752
        %4783 = vmatpush.bf16.msra.mxu0 %v4725
        %4784 = vmatpush.bf16.msra.mxu0 %v4724
        %4785 = vmatpush.bf16.msra.mxu0 %v4723
        %4786 = vmatpush.bf16.msra.mxu0 %v4722
        %4787 = vmatpush.bf16.msra.mxu0 %v4721
        %4788 = vmatmul.bf16.gmra.mxu0 %v4749
        %v4789 = vpop.f32.mrf.mxu0
        %v4790 = vadd.f32 %v4777, %v4789
        %v4791 = vpop.f32.mrf.mxu0
        %4792 = vdwg.mxu0
        %v4793 = vadd.f32 %v4549, %v4790
        %v4794 = vmax.f32 %v4793, 0.0
        %v4795 = vpack.c.bf16 %v4794, %v4794
        %v4796 = vld [vmem:[%s7] sm:$0xf]
        %v4797 = vld [vmem:[%s7 + $0x4] sm:$0xf]
        %v4798 = vld [vmem:[%s7 + $0x8] sm:$0xf]
        %v4799 = vld [vmem:[%s7 + $0xc] sm:$0xf]
        %v4800 = vld [vmem:[%s7 + $0x10] sm:$0xf]
        %v4801 = vld [vmem:[%s7 + $0x14] sm:$0xf]
        %v4802 = vld [vmem:[%s7 + $0x18] sm:$0xf]
        %v4803 = vld [vmem:[%s7 + $0x1c] sm:$0xf]
        %v4804 = vld [vmem:[%s7 + $0x20] sm:$0xf]
        %v4805 = vld [vmem:[%s7 + $0x24] sm:$0xf]
        %v4806 = vld [vmem:[%s7 + $0x28] sm:$0xf]
        %v4807 = vld [vmem:[%s7 + $0x2c] sm:$0xf]
        %v4808 = vld [vmem:[%s7 + $0x30] sm:$0xf]
        %v4809 = vld [vmem:[%s7 + $0x34] sm:$0xf]
        %v4810 = vld [vmem:[%s7 + $0x38] sm:$0xf]
        %v4811 = vld [vmem:[%s7 + $0x3c] sm:$0xf]
        %v4812 = vld [vmem:[%s8] sm:$0x1]
        %v4829 = vunpack.c.l.b16 %v4796
        %v4830 = vunpack.c.l.b16 %v4797
        %v4831 = vunpack.c.l.b16 %v4798
        %v4832 = vunpack.c.l.b16 %v4799
        %v4833 = vunpack.c.l.b16 %v4800
        %v4834 = vunpack.c.l.b16 %v4801
        %v4835 = vunpack.c.l.b16 %v4802
        %v4836 = vunpack.c.l.b16 %v4803
        %v4837 = vunpack.c.l.b16 %v4804
        %v4838 = vunpack.c.l.b16 %v4805
        %v4839 = vunpack.c.l.b16 %v4806
        %v4840 = vunpack.c.l.b16 %v4807
        %v4841 = vunpack.c.l.b16 %v4808
        %v4842 = vunpack.c.l.b16 %v4809
        %v4843 = vunpack.c.l.b16 %v4810
        %v4844 = vunpack.c.l.b16 %v4811
        %v4845 = vpack.c.b16 %v4830, %v4829
        %v4846 = vpack.c.b16 %v4832, %v4831
        %v4847 = vpack.c.b16 %v4834, %v4833
        %v4848 = vpack.c.b16 %v4836, %v4835
        %v4849 = vpack.c.b16 %v4838, %v4837
        %v4850 = vpack.c.b16 %v4840, %v4839
        %v4851 = vpack.c.b16 %v4842, %v4841
        %v4852 = vpack.c.b16 %v4844, %v4843
        %4861 = vmatpush.bf16.msra.mxu0 %v4852
        %4862 = vmatpush.bf16.msra.mxu0 %v4851
        %4863 = vmatpush.bf16.msra.mxu0 %v4850
        %4864 = vmatpush.bf16.msra.mxu0 %v4849
        %4865 = vmatpush.bf16.msra.mxu0 %v4848
        %4866 = vmatpush.bf16.msra.mxu0 %v4847
        %4867 = vmatpush.bf16.msra.mxu0 %v4846
        %4868 = vmatpush.bf16.msra.mxu0 %v4845
        %4869 = vmatmul.bf16.gmra.mxu0 %v4795
        %v4870 = vpop.f32.mrf.mxu0
        %v4871 = vadd.f32 %v4812, %v4870
        %v4872 = vpop.f32.mrf.mxu0
        %4873 = vdwg.mxu0
        %v4874 = vmax.f32 %v4871, 0.0
        %v4875 = vpack.c.bf16 %v4874, %v4874
        %v4876 = vld [vmem:[%s9] sm:$0xf]
        %v4877 = vld [vmem:[%s9 + $0x4] sm:$0xf]
        %v4878 = vld [vmem:[%s9 + $0x8] sm:$0xf]
        %v4879 = vld [vmem:[%s9 + $0xc] sm:$0xf]
        %v4880 = vld [vmem:[%s10] sm:$0x1]
        %v4885 = vunpack.c.l.b16 %v4876
        %v4886 = vunpack.c.l.b16 %v4877
        %v4887 = vunpack.c.l.b16 %v4878
        %v4888 = vunpack.c.l.b16 %v4879
        %v4889 = vpack.c.b16 %v4886, %v4885
        %v4890 = vpack.c.b16 %v4888, %v4887
        %v4894 = vsel %vm939, %v4875, 0
        %4896 = vmatpush.bf16.msra.mxu0 0
        %4897 = vmatpush.bf16.msra.mxu0 0
        %4898 = vmatpush.bf16.msra.mxu0 0
        %4899 = vmatpush.bf16.msra.mxu0 0
        %4900 = vmatpush.bf16.msra.mxu0 0
        %4901 = vmatpush.bf16.msra.mxu0 0
        %4902 = vmatpush.bf16.msra.mxu0 %v4890
        %4903 = vmatpush.bf16.msra.mxu0 %v4889
        %4904 = vmatmul.bf16.gmra.mxu0 %v4894
        %v4905 = vpop.f32.mrf.mxu0
        %v4906 = vadd.f32 %v4880, %v4905
        %v4907 = vpop.f32.mrf.mxu0
        %4908 = vdwg.mxu0
        %vm4909 = vcmask 8192
        %4910 = vst.msk [vmem:[%s378] sm:$0x1] %vm4909, %v4906
        %s4911 = sand.u32 %s269, 1
        %s4912 = scalar_lea.sflag [#allocation6], %s4911
        %s4913 = sand.u32 %s269, 1
        %s4914 = scalar_lea.vmem [#allocation5], %s4913
        // Predicated region
        $region65: #{lenet_timit_forward.1} parent=63 // pred_check
          %p4915 = pneg %p279
        $region66: #{lenet_timit_forward.1} parent=63 // pred_check_branch
          %4917 = sbr.rel (%p4915) target = $region68
        $region67: #{lenet_timit_forward.1} parent=63 // pred_region
          %4919 = vsyncadd %s4912, 0
          %s4920 = scalar_lea.hbm %s11, %s25
          %s4922 = sshll.u32 %s4914, 4
          %s4923 = int_to_ptr.vmem [resolvable:$true] %s4922
          %s4924 = sshll.u32 %s4920, 4
          %s4925 = int_to_ptr.hbm [resolvable:$true] %s4924
          %4927 = dma.vmem_to_hbm [thread:$0]  %s4923, 16, %s4925, %s4912
        $region68: #{lenet_timit_forward.1} parent=63 // pred_fallthru
          _
      $region64: #{lenet_timit_forward.1} parent=5 // pred_fallthru
        _
      %p4928 = scmp.le.s32.totalorder 2, %s20
      // Predicated region
      $region69: #{lenet_timit_forward.1} parent=5 // pred_check
        %p4929 = pneg %p4928
      $region70: #{lenet_timit_forward.1} parent=5 // pred_check_branch
        %4931 = sbr.rel (%p4929) target = $region72
      $region71: #{lenet_timit_forward.1} parent=5 // pred_region
        %s4932 = ssub.s32 %s20, 2
        // Predicated region
        $region73: #{lenet_timit_forward.1} parent=71 // pred_check
          %p4933 = pneg %p285
        $region74: #{lenet_timit_forward.1} parent=71 // pred_check_branch
          %4935 = sbr.rel (%p4933) target = $region76
        $region75: #{lenet_timit_forward.1} parent=71 // pred_region
          %s4936 = sand.u32 %s270, 1
          %s4937 = scalar_lea.sflag [#allocation6], %s4936
          %s4938 = sand.u32 %s270, 1
          %s4939 = scalar_lea.vmem [#allocation5], %s4938
          %4941 = dma.done %s4937, 16
        $region76: #{lenet_timit_forward.1} parent=71 // pred_fallthru
          _
      $region72: #{lenet_timit_forward.1} parent=5 // pred_fallthru
        _
    $region6: #{lenet_timit_forward.1} parent=1 // loop_footer
      %s24 = sadd.s32 1, %s20
    $region7: #{lenet_timit_forward.1} parent=1 // loop_footer_branch
      %19 = sbr.rel target = $region3
    $region8: #{lenet_timit_forward.1} parent=1 // loop_exit
      _
    %4942 = vsyncpa [#allocation6], 1
    %s4943 = scalar_lea.sflag [#allocation6], 1
    %4944 = vsyncpa %s4943, 1

</llo_original>
